<compile_context>
chip_gen: v6e
topology: v6e:2x2x1
jax: 0.10.0
libtpu: 0.0.40
codegen_flags: <defaults>
</compile_context>

<pallas_src>
import functools
import math

import jax
import jax.numpy as jnp
from jax.experimental import pallas as pl
from jax.experimental.pallas import tpu as pltpu

LANE = 128


def _round_up(x, m):
    return (x + m - 1) // m * m


def _cdiv(a, b):
    return -(-a // b)


# ----------------------------- Pallas kernels ------------------------------

def _gemm_bn_stats_kernel(a_ref, b_ref, y_ref, sum_ref, sq_ref):
    # [tm, K](bf16) @ [K, tn](bf16) -> [tm, tn](f32)  + per-channel sum / sumsq epilogue.
    y = jnp.dot(a_ref[...], b_ref[...], preferred_element_type=jnp.float32)
    y_ref[...] = y
    sum_ref[...] = jnp.sum(y, axis=0, keepdims=True)[None]
    sq_ref[...] = jnp.sum(y * y, axis=0, keepdims=True)[None]


def _gemm_bnin_stats_kernel(a_ref, s_ref, b_ref, w_ref, y_ref, sum_ref, sq_ref,
                            *, m_true, tile_m, padded):
    # Previous layer's BN-apply + ReLU fused into the GEMM prologue:
    #   a = relu(a_raw * s + b)  (f32, VPU)  -> bf16 -> MXU dot.
    a = jnp.maximum(a_ref[...] * s_ref[...] + b_ref[...], 0.0)
    if padded:  # keep padded rows exactly zero so the fused BN stats stay correct
        row = jax.lax.broadcasted_iota(jnp.int32, a.shape, 0) + pl.program_id(0) * tile_m
        a = jnp.where(row < m_true, a, 0.0)
    y = jnp.dot(a.astype(jnp.bfloat16), w_ref[...], preferred_element_type=jnp.float32)
    y_ref[...] = y
    sum_ref[...] = jnp.sum(y, axis=0, keepdims=True)[None]
    sq_ref[...] = jnp.sum(y * y, axis=0, keepdims=True)[None]


def _conv3x3_bn_stats_kernel(x_ref, w_ref, y_ref, sum_ref, sq_ref, *, stride, oh, ow):
    # x_ref: [stride*stride, ph, pw, Cin] bf16 phase planes of one padded image.
    # w_ref: [9, Cin, Cout] bf16.  Accumulates the 9 taps in-kernel (no HBM im2col).
    cin = x_ref.shape[-1]
    cout = w_ref.shape[-1]
    acc = jnp.zeros((oh * ow, cout), jnp.float32)
    for di in range(3):
        for dj in range(3):
            plane = (di % stride) * stride + (dj % stride)
            r0, c0 = di // stride, dj // stride
            patch = x_ref[plane, r0:r0 + oh, c0:c0 + ow, :].reshape(oh * ow, cin)
            acc = acc + jnp.dot(patch, w_ref[di * 3 + dj],
                                preferred_element_type=jnp.float32)
    y_ref[...] = acc[None]
    sum_ref[...] = jnp.sum(acc, axis=0, keepdims=True)[None]
    sq_ref[...] = jnp.sum(acc * acc, axis=0, keepdims=True)[None]


def _bn_apply_kernel(y_ref, s_ref, b_ref, o_ref, *, relu, m_true, tile_m, padded):
    v = y_ref[...] * s_ref[...] + b_ref[...]
    if relu:
        v = jnp.maximum(v, 0.0)
    if padded:  # keep padded rows exactly zero so downstream fused stats stay correct
        row = jax.lax.broadcasted_iota(jnp.int32, v.shape, 0) + pl.program_id(0) * tile_m
        v = jnp.where(row < m_true, v, 0.0)
    o_ref[...] = v.astype(o_ref.dtype)


def _bn_apply_res_kernel(y_ref, s_ref, b_ref, r_ref, o_ref, *, relu, m_true, tile_m, padded):
    v = y_ref[...] * s_ref[...] + b_ref[...] + r_ref[...]
    if relu:
        v = jnp.maximum(v, 0.0)
    if padded:
        row = jax.lax.broadcasted_iota(jnp.int32, v.shape, 0) + pl.program_id(0) * tile_m
        v = jnp.where(row < m_true, v, 0.0)
    o_ref[...] = v.astype(o_ref.dtype)


def _bn_apply_dualres_kernel(y_ref, s_ref, b_ref, r_ref, rs_ref, rb_ref, o_ref,
                             *, relu, m_true, tile_m, padded):
    # bn3-apply + downsample-branch bn-apply + residual add + (ReLU) in one pass.
    v = (y_ref[...] * s_ref[...] + b_ref[...]) + (r_ref[...] * rs_ref[...] + rb_ref[...])
    if relu:
        v = jnp.maximum(v, 0.0)
    if padded:
        row = jax.lax.broadcasted_iota(jnp.int32, v.shape, 0) + pl.program_id(0) * tile_m
        v = jnp.where(row < m_true, v, 0.0)
    o_ref[...] = v.astype(o_ref.dtype)


# ------------------------------ op wrappers --------------------------------

def _gemm_bn_stats(a, w_bf, in_scale=None, in_bias=None):
    """a: [M, K] (bf16, or f32 when a fused input-BN is requested); w_bf: [K, Np] bf16
    (Np % 128 == 0).  Returns conv output [M, Np] f32 plus per-channel sum / sum-of-squares.
    If in_scale/in_bias are given, relu(a*scale+bias) is applied in the GEMM prologue."""
    M, K = a.shape
    Kw, Np = w_bf.shape
    assert K == Kw and Np % LANE == 0
    tn = LANE
    tm = M if M <= 512 else 512
    Mp = _round_up(M, tm)
    padded = Mp != M
    if padded:
        a = jnp.pad(a, ((0, Mp - M), (0, 0)))
    n_i, n_j = Mp // tm, Np // tn
    cost = pl.CostEstimate(
        flops=2 * Mp * Np * K, transcendentals=0,
        bytes_accessed=Mp * K * a.dtype.itemsize + K * Np * 2 + Mp * Np * 4)
    if in_scale is None:
        kern = _gemm_bn_stats_kernel
        arrays = [a, w_bf]
        in_specs = [pl.BlockSpec((tm, K), lambda i, j: (i, 0)),
                    pl.BlockSpec((K, tn), lambda i, j: (0, j))]
    else:
        kern = functools.partial(_gemm_bnin_stats_kernel, m_true=M, tile_m=tm, padded=padded)
        arrays = [a, in_scale, in_bias, w_bf]
        in_specs = [pl.BlockSpec((tm, K), lambda i, j: (i, 0)),
                    pl.BlockSpec((1, K), lambda i, j: (0, 0)),
                    pl.BlockSpec((1, K), lambda i, j: (0, 0)),
                    pl.BlockSpec((K, tn), lambda i, j: (0, j))]
    y, psum, psq = pl.pallas_call(
        kern,
        out_shape=(jax.ShapeDtypeStruct((Mp, Np), jnp.float32),
                   jax.ShapeDtypeStruct((n_i, 1, Np), jnp.float32),
                   jax.ShapeDtypeStruct((n_i, 1, Np), jnp.float32)),
        grid_spec=pltpu.PrefetchScalarGridSpec(
            num_scalar_prefetch=0,
            grid=(n_i, n_j),
            in_specs=in_specs,
            out_specs=(pl.BlockSpec((tm, tn), lambda i, j: (i, j)),
                       pl.BlockSpec((1, 1, tn), lambda i, j: (i, 0, j)),
                       pl.BlockSpec((1, 1, tn), lambda i, j: (i, 0, j)))),
        compiler_params=pltpu.CompilerParams(
            dimension_semantics=("parallel", "parallel")),
        cost_estimate=cost,
    )(*arrays)
    if padded:
        y = y[:M]
    return y, jnp.sum(psum, axis=(0, 1)), jnp.sum(psq, axis=(0, 1))


def _conv3x3_bn_stats(x_bf, w9, stride):
    """x_bf: [N, H, W, Cp] bf16 (lane-padded channels); w9: [9, Cp, OCp] bf16.
    Returns y [N*OH*OW, OCp] f32, channel sum/sumsq [OCp], and OH, OW."""
    N, H, W, Cp = x_bf.shape
    _, _, OCp = w9.shape
    k, p = 3, 1
    OH = (H + 2 * p - k) // stride + 1
    OW = (W + 2 * p - k) // stride + 1
    ph = OH + _cdiv(k - 1, stride)
    pw = OW + _cdiv(k - 1, stride)
    xp = jnp.pad(x_bf, ((0, 0),
                        (p, stride * ph - H - p),
                        (p, stride * pw - W - p),
                        (0, 0)))
    # One-pass space-to-depth: planes[n*S*S + a*S + b, i, j, :] = xp[n, S*i + a, S*j + b, :]
    planes = xp.reshape(N, ph, stride, pw, stride, Cp)
    planes = jnp.transpose(planes, (0, 2, 4, 1, 3, 5))
    planes = planes.reshape(N * stride * stride, ph, pw, Cp)

    ss = stride * stride
    kern = functools.partial(_conv3x3_bn_stats_kernel, stride=stride, oh=OH, ow=OW)
    cost = pl.CostEstimate(
        flops=2 * N * OH * OW * 9 * Cp * OCp,
        transcendentals=0,
        bytes_accessed=planes.size * 2 + w9.size * 2 + N * OH * OW * OCp * 4)
    y, psum, psq = pl.pallas_call(
        kern,
        out_shape=(jax.ShapeDtypeStruct((N, OH * OW, OCp), jnp.float32),
                   jax.ShapeDtypeStruct((N, 1, OCp), jnp.float32),
                   jax.ShapeDtypeStruct((N, 1, OCp), jnp.float32)),
        grid_spec=pltpu.PrefetchScalarGridSpec(
            num_scalar_prefetch=0,
            grid=(N,),
            in_specs=[pl.BlockSpec((ss, ph, pw, Cp), lambda n: (n, 0, 0, 0)),
                      pl.BlockSpec((9, Cp, OCp), lambda n: (0, 0, 0))],
            out_specs=(pl.BlockSpec((1, OH * OW, OCp), lambda n: (n, 0, 0)),
                       pl.BlockSpec((1, 1, OCp), lambda n: (n, 0, 0)),
                       pl.BlockSpec((1, 1, OCp), lambda n: (n, 0, 0)))),
        compiler_params=pltpu.CompilerParams(dimension_semantics=("parallel",)),
        cost_estimate=cost,
    )(planes, w9)
    return (y.reshape(N * OH * OW, OCp),
            jnp.sum(psum, axis=(0, 1)), jnp.sum(psq, axis=(0, 1)), OH, OW)


def _bn_apply(y, scale, bias, *, relu, out_dtype, residual=None,
              res_scale=None, res_bias=None):
    """Elementwise y*scale + bias (+[scaled] residual) (+ReLU).  Lane-dense output."""
    M, Cp = y.shape
    tm = M if M <= 1024 else 512
    Mp = _round_up(M, tm)
    padded = Mp != M
    if padded:
        y = jnp.pad(y, ((0, Mp - M), (0, 0)))
    arrays = [y, scale, bias]
    in_specs = [pl.BlockSpec((tm, Cp), lambda i: (i, 0)),
                pl.BlockSpec((1, Cp), lambda i: (0, 0)),
                pl.BlockSpec((1, Cp), lambda i: (0, 0))]
    common = dict(relu=relu, m_true=M, tile_m=tm, padded=padded)
    if residual is None:
        kern = functools.partial(_bn_apply_kernel, **common)
    else:
        r = jnp.pad(residual, ((0, Mp - M), (0, 0))) if padded else residual
        arrays.append(r)
        in_specs.append(pl.BlockSpec((tm, Cp), lambda i: (i, 0)))
        if res_scale is None:
            kern = functools.partial(_bn_apply_res_kernel, **common)
        else:
            arrays.extend([res_scale, res_bias])
            in_specs.extend([pl.BlockSpec((1, Cp), lambda i: (0, 0)),
                             pl.BlockSpec((1, Cp), lambda i: (0, 0))])
            kern = functools.partial(_bn_apply_dualres_kernel, **common)
    out = pl.pallas_call(
        kern,
        out_shape=jax.ShapeDtypeStruct((Mp, Cp), out_dtype),
        grid_spec=pltpu.PrefetchScalarGridSpec(
            num_scalar_prefetch=0,
            grid=(Mp // tm,),
            in_specs=in_specs,
            out_specs=pl.BlockSpec((tm, Cp), lambda i: (i, 0))),
        compiler_params=pltpu.CompilerParams(dimension_semantics=("parallel",)),
    )(*arrays)
    return out[:M] if padded else out


def _fused_scale_bias(ssum, ssq, count, gamma, beta, cp, eps=1e-5):
    """Training-mode BN (biased batch variance) folded into per-channel scale/bias (f32)."""
    g = jnp.pad(gamma, (0, cp - gamma.shape[0]))
    b = jnp.pad(beta, (0, cp - beta.shape[0]))
    mean = ssum / count
    var = jnp.maximum(ssq / count - mean * mean, 0.0)   # clamp against cancellation
    scale = g * jax.lax.rsqrt(var + eps)
    bias = b - mean * scale
    return scale.reshape(1, cp), bias.reshape(1, cp)


def _prep_w1x1(w, icp, ocp):
    oc, ic = w.shape[:2]
    w2 = jnp.pad(w.reshape(oc, ic).T, ((0, icp - ic), (0, ocp - oc)))
    return w2.astype(jnp.bfloat16)


def _prep_w3x3(w, icp, ocp):
    oc, ic = w.shape[:2]
    w2 = jnp.transpose(w, (2, 3, 1, 0)).reshape(9, ic, oc)
    w2 = jnp.pad(w2, ((0, 0), (0, icp - ic), (0, ocp - oc)))
    return w2.astype(jnp.bfloat16)


# ----------------------------- Bottleneck forward --------------------------

def bottleneck_forward(x_nchw, params):
    stride = params['stride']
    x = jnp.transpose(x_nchw, (0, 2, 3, 1)).astype(jnp.float32)     # NCHW -> NHWC
    N, H, W, Cin = x.shape
    cin_p = _round_up(Cin, LANE)
    x_p = jnp.pad(x, ((0, 0), (0, 0), (0, 0), (0, cin_p - Cin)))    # lane-pad channels once
    x_bf = x_p.astype(jnp.bfloat16)
    M1 = N * H * W

    width = params['conv1_w'].shape[0]
    w_p = _round_up(width, LANE)
    c_out = params['conv3_w'].shape[0]          # planes * expansion
    cout_p = _round_up(c_out, LANE)

    # conv1 (1x1) + bn1 + relu   (GEMM with fused BN-stats epilogue, then fused apply)
    w1 = _prep_w1x1(params['conv1_w'], cin_p, w_p)
    y1, s1, q1 = _gemm_bn_stats(x_bf.reshape(M1, cin_p), w1)
    sc1, b1 = _fused_scale_bias(s1, q1, M1, *params['bn1'], w_p)
    a1 = _bn_apply(y1, sc1, b1, relu=True, out_dtype=jnp.bfloat16)

    # conv2 (3x3, stride) + bn2-stats  (in-kernel tap accumulation, no HBM im2col)
    w2 = _prep_w3x3(params['conv2_w'], w_p, w_p)
    y2, s2, q2, OH, OW = _conv3x3_bn_stats(a1.reshape(N, H, W, w_p), w2, stride)
    M2 = N * OH * OW
    sc2, b2 = _fused_scale_bias(s2, q2, M2, *params['bn2'], w_p)

    # conv3 (1x1): bn2-apply + ReLU fused into the GEMM prologue; bn3 stats in the epilogue.
    w3 = _prep_w1x1(params['conv3_w'], w_p, cout_p)
    y3, s3, q3 = _gemm_bn_stats(y2, w3, in_scale=sc2, in_bias=b2)
    sc3, b3 = _fused_scale_bias(s3, q3, M2, *params['bn3'], cout_p)

    # identity / downsample branch + final fused bn-apply(s) + residual add + relu
    if 'ds_w' in params:
        wd = _prep_w1x1(params['ds_w'], cin_p, cout_p)
        xd = x_bf[:, ::stride, ::stride, :].reshape(M2, cin_p)
        yd, sd, qd = _gemm_bn_stats(xd, wd)
        scd, bd = _fused_scale_bias(sd, qd, M2, *params['ds_bn'], cout_p)
        out = _bn_apply(y3, sc3, b3, relu=True, out_dtype=jnp.float32,
                        residual=yd, res_scale=scd, res_bias=bd)
    else:
        assert stride == 1 and Cin == c_out and cin_p == cout_p
        identity = x_p.reshape(M1, cin_p)
        out = _bn_apply(y3, sc3, b3, relu=True, out_dtype=jnp.float32, residual=identity)

    out = out.reshape(N, OH, OW, cout_p)[:, :, :, :c_out]
    return jnp.transpose(out, (0, 3, 1, 2))                          # NHWC -> NCHW


# ----------------------------- params & reference --------------------------

def init_bottleneck_params(key, *, inplanes, planes, stride, with_downsample):
    expansion = 4
    width = planes                      # base_width=64, groups=1
    ks = jax.random.split(key, 4)

    def conv_w(k, oc, ic, kh, kw):
        fan = kh * kw * oc
        return jax.random.normal(k, (oc, ic, kh, kw), jnp.float32) * math.sqrt(2.0 / fan)

    def bn(c):
        return (jnp.ones((c,), jnp.float32), jnp.zeros((c,), jnp.float32))

    p = {
        'stride': stride,
        'conv1_w': conv_w(ks[0], width, inplanes, 1, 1),
        'bn1': bn(width),
        'conv2_w': conv_w(ks[1], width, width, 3, 3),
        'bn2': bn(width),
        'conv3_w': conv_w(ks[2], planes * expansion, width, 1, 1),
        'bn3': bn(planes * expansion),
    }
    if with_downsample:
        p['ds_w'] = conv_w(ks[3], planes * expansion, inplanes, 1, 1)
        p['ds_bn'] = bn(planes * expansion)
    return p


def _bottleneck_ref(x_nchw, p, eps=1e-5):
    """Pure-jnp reference (training-mode BN, bf16 conv operands to mirror kernel numerics)."""
    x = jnp.transpose(x_nchw, (0, 2, 3, 1)).astype(jnp.float32)

    def conv(v, w, stride, pad):
        return jax.lax.conv_general_dilated(
            v.astype(jnp.bfloat16),
            jnp.transpose(w, (2, 3, 1, 0)).astype(jnp.bfloat16),
            window_strides=(stride, stride),
            padding=[(pad, pad), (pad, pad)],
            dimension_numbers=("NHWC", "HWIO", "NHWC"),
            preferred_element_type=jnp.float32)

    def bn(v, gb):
        gamma, beta = gb
        mean = jnp.mean(v, axis=(0, 1, 2))
        var = jnp.var(v, axis=(0, 1, 2))
        return (v - mean) * (gamma * jax.lax.rsqrt(var + eps)) + beta

    out = jax.nn.relu(bn(conv(x, p['conv1_w'], 1, 0), p['bn1']))
    out = jax.nn.relu(bn(conv(out, p['conv2_w'], p['stride'], 1), p['bn2']))
    out = bn(conv(out, p['conv3_w'], 1, 0), p['bn3'])
    if 'ds_w' in p:
        identity = bn(conv(x, p['ds_w'], p['stride'], 0), p['ds_bn'])
    else:
        identity = x
    out = jax.nn.relu(out + identity)
    return jnp.transpose(out, (0, 3, 1, 2))


if __name__ == "__main__":
    key = jax.random.PRNGKey(0)
    kpa, kxa, kpb, kxb = jax.random.split(key, 4)

    # Config A: stage-entry Bottleneck -- stride 2 with conv1x1+BN downsample branch.
    params_a = init_bottleneck_params(kpa, inplanes=32, planes=16, stride=2,
                                      with_downsample=True)
    x_a = jax.random.normal(kxa, (2, 32, 16, 16), jnp.float32)

    # Config B: identity Bottleneck -- stride 1, inplanes == planes*expansion, no downsample.
    params_b = init_bottleneck_params(kpb, inplanes=64, planes=16, stride=1,
                                      with_downsample=False)
    x_b = jax.random.normal(kxb, (2, 64, 16, 16), jnp.float32)

    out_a = jax.block_until_ready(jax.jit(lambda v: bottleneck_forward(v, params_a))(x_a))
    out_b = jax.block_until_ready(jax.jit(lambda v: bottleneck_forward(v, params_b))(x_b))

    assert tuple(out_a.shape) == (2, 64, 8, 8), out_a.shape
    assert tuple(out_b.shape) == (2, 64, 16, 16), out_b.shape
    assert bool(jnp.all(jnp.isfinite(out_a))) and bool(jnp.all(jnp.isfinite(out_b)))

    ref_a = _bottleneck_ref(x_a, params_a)
    ref_b = _bottleneck_ref(x_b, params_b)
    err_a = float(jnp.max(jnp.abs(out_a - ref_a)))
    err_b = float(jnp.max(jnp.abs(out_b - ref_b)))
    assert err_a < 1e-1 and err_b < 1e-1, (err_a, err_b)

    print("KERNEL_OK")
</pallas_src>

<mosaic_0001>
module attributes {stable_mosaic.version = 11 : i64} {
  func.func @_gemm_bn_stats_kernel(%arg0: i32, %arg1: i32, %arg2: memref<128x128xbf16, #tpu.memory_space<vmem>>, %arg3: memref<128x128xbf16, #tpu.memory_space<vmem>>, %arg4: memref<128x128xf32, #tpu.memory_space<vmem>>, %arg5: memref<1x1x128xf32, #tpu.memory_space<vmem>>, %arg6: memref<1x1x128xf32, #tpu.memory_space<vmem>>) attributes {dimension_semantics = [#tpu.dimension_semantics<parallel>, #tpu.dimension_semantics<parallel>], iteration_bounds = array<i64: 1, 1>, scalar_prefetch = 0 : i64, scratch_operands = 0 : i64, tpu.core_type = #tpu.core_type<tc>, window_params = [{transform_indices = @transform_0, window_bounds = array<i64: 128, 128>}, {transform_indices = @transform_1, window_bounds = array<i64: 128, 128>}, {transform_indices = @transform_2, window_bounds = array<i64: 128, 128>}, {transform_indices = @transform_3, window_bounds = array<i64: 1, 1, 128>}, {transform_indices = @transform_4, window_bounds = array<i64: 1, 1, 128>}]} {
    %c0 = arith.constant 0 : index
    %c0_0 = arith.constant 0 : index
    %0 = vector.load %arg2[%c0, %c0_0] : memref<128x128xbf16, #tpu.memory_space<vmem>>, vector<128x128xbf16>
    %c0_1 = arith.constant 0 : index
    %c0_2 = arith.constant 0 : index
    %1 = vector.load %arg3[%c0_1, %c0_2] : memref<128x128xbf16, #tpu.memory_space<vmem>>, vector<128x128xbf16>
    %cst = arith.constant dense<0.000000e+00> : vector<128x128xf32>
    %2 = tpu.matmul %0, %1, %cst {dimension_numbers = #tpu.dot_dimension_numbers<[1], [0], [0], [1], [0, 0, 1, 1], [], []>} : vector<128x128xbf16>, vector<128x128xbf16>, vector<128x128xf32> -> vector<128x128xf32>
    %c0_3 = arith.constant 0 : index
    %c0_4 = arith.constant 0 : index
    %3 = vector.load %arg4[%c0_3, %c0_4] : memref<128x128xf32, #tpu.memory_space<vmem>>, vector<128x128xf32>
    tpu.vector_store %arg4[%c0_3, %c0_4], %2 {strides = array<i32>} : memref<128x128xf32, #tpu.memory_space<vmem>>, vector<128x128xf32>,
    %cst_5 = arith.constant dense<0.000000e+00> : vector<128xf32>
    %4 = vector.multi_reduction <add>, %2, %cst_5 [0] : vector<128x128xf32> to vector<128xf32>
    %5 = vector.shape_cast %4 : vector<128xf32> to vector<1x128xf32>
    %6 = vector.shape_cast %5 : vector<1x128xf32> to vector<1x1x128xf32>
    %c0_6 = arith.constant 0 : index
    %c0_7 = arith.constant 0 : index
    %c0_8 = arith.constant 0 : index
    %7 = vector.load %arg5[%c0_6, %c0_7, %c0_8] : memref<1x1x128xf32, #tpu.memory_space<vmem>>, vector<1x1x128xf32>
    tpu.vector_store %arg5[%c0_6, %c0_7, %c0_8], %6 {strides = array<i32>} : memref<1x1x128xf32, #tpu.memory_space<vmem>>, vector<1x1x128xf32>,
    %8 = arith.mulf %2, %2 : vector<128x128xf32>
    %cst_9 = arith.constant dense<0.000000e+00> : vector<128xf32>
    %9 = vector.multi_reduction <add>, %8, %cst_9 [0] : vector<128x128xf32> to vector<128xf32>
    %10 = vector.shape_cast %9 : vector<128xf32> to vector<1x128xf32>
    %11 = vector.shape_cast %10 : vector<1x128xf32> to vector<1x1x128xf32>
    %c0_10 = arith.constant 0 : index
    %c0_11 = arith.constant 0 : index
    %c0_12 = arith.constant 0 : index
    %12 = vector.load %arg6[%c0_10, %c0_11, %c0_12] : memref<1x1x128xf32, #tpu.memory_space<vmem>>, vector<1x1x128xf32>
    tpu.vector_store %arg6[%c0_10, %c0_11, %c0_12], %11 {strides = array<i32>} : memref<1x1x128xf32, #tpu.memory_space<vmem>>, vector<1x1x128xf32>,
    return
  }
  func.func @transform_0(%arg0: i32, %arg1: i32) -> (i32, i32) {
    %c0_i32 = arith.constant 0 : i32
    %c0_i32_0 = arith.constant 0 : i32
    return %arg0, %c0_i32 : i32, i32
  }
  func.func @transform_1(%arg0: i32, %arg1: i32) -> (i32, i32) {
    %c0_i32 = arith.constant 0 : i32
    %c0_i32_0 = arith.constant 0 : i32
    return %c0_i32, %arg1 : i32, i32
  }
  func.func @transform_2(%arg0: i32, %arg1: i32) -> (i32, i32) {
    %c0_i32 = arith.constant 0 : i32
    return %arg0, %arg1 : i32, i32
  }
  func.func @transform_3(%arg0: i32, %arg1: i32) -> (i32, i32, i32) {
    %c0_i32 = arith.constant 0 : i32
    %c0_i32_0 = arith.constant 0 : i32
    return %arg0, %c0_i32, %arg1 : i32, i32, i32
  }
  func.func @transform_4(%arg0: i32, %arg1: i32) -> (i32, i32, i32) {
    %c0_i32 = arith.constant 0 : i32
    %c0_i32_0 = arith.constant 0 : i32
    return %arg0, %c0_i32, %arg1 : i32, i32, i32
  }
}

module attributes {stable_mosaic.version = 11 : i64} {
  func.func @_gemm_bn_stats_kernel(%arg0: i32, %arg1: i32, %arg2: memref<512x128xbf16, #tpu.memory_space<vmem>>, %arg3: memref<128x128xbf16, #tpu.memory_space<vmem>>, %arg4: memref<512x128xf32, #tpu.memory_space<vmem>>, %arg5: memref<1x1x128xf32, #tpu.memory_space<vmem>>, %arg6: memref<1x1x128xf32, #tpu.memory_space<vmem>>) attributes {dimension_semantics = [#tpu.dimension_semantics<parallel>, #tpu.dimension_semantics<parallel>], iteration_bounds = array<i64: 1, 1>, scalar_prefetch = 0 : i64, scratch_operands = 0 : i64, tpu.core_type = #tpu.core_type<tc>, window_params = [{transform_indices = @transform_0, window_bounds = array<i64: 512, 128>}, {transform_indices = @transform_1, window_bounds = array<i64: 128, 128>}, {transform_indices = @transform_2, window_bounds = array<i64: 512, 128>}, {transform_indices = @transform_3, window_bounds = array<i64: 1, 1, 128>}, {transform_indices = @transform_4, window_bounds = array<i64: 1, 1, 128>}]} {
    %c0 = arith.constant 0 : index
    %c0_0 = arith.constant 0 : index
    %0 = vector.load %arg2[%c0, %c0_0] : memref<512x128xbf16, #tpu.memory_space<vmem>>, vector<512x128xbf16>
    %c0_1 = arith.constant 0 : index
    %c0_2 = arith.constant 0 : index
    %1 = vector.load %arg3[%c0_1, %c0_2] : memref<128x128xbf16, #tpu.memory_space<vmem>>, vector<128x128xbf16>
    %cst = arith.constant dense<0.000000e+00> : vector<512x128xf32>
    %2 = tpu.matmul %0, %1, %cst {dimension_numbers = #tpu.dot_dimension_numbers<[1], [0], [0], [1], [0, 0, 1, 1], [], []>} : vector<512x128xbf16>, vector<128x128xbf16>, vector<512x128xf32> -> vector<512x128xf32>
    %c0_3 = arith.constant 0 : index
    %c0_4 = arith.constant 0 : index
    %3 = vector.load %arg4[%c0_3, %c0_4] : memref<512x128xf32, #tpu.memory_space<vmem>>, vector<512x128xf32>
    tpu.vector_store %arg4[%c0_3, %c0_4], %2 {strides = array<i32>} : memref<512x128xf32, #tpu.memory_space<vmem>>, vector<512x128xf32>,
    %cst_5 = arith.constant dense<0.000000e+00> : vector<128xf32>
    %4 = vector.multi_reduction <add>, %2, %cst_5 [0] : vector<512x128xf32> to vector<128xf32>
    %5 = vector.shape_cast %4 : vector<128xf32> to vector<1x128xf32>
    %6 = vector.shape_cast %5 : vector<1x128xf32> to vector<1x1x128xf32>
    %c0_6 = arith.constant 0 : index
    %c0_7 = arith.constant 0 : index
    %c0_8 = arith.constant 0 : index
    %7 = vector.load %arg5[%c0_6, %c0_7, %c0_8] : memref<1x1x128xf32, #tpu.memory_space<vmem>>, vector<1x1x128xf32>
    tpu.vector_store %arg5[%c0_6, %c0_7, %c0_8], %6 {strides = array<i32>} : memref<1x1x128xf32, #tpu.memory_space<vmem>>, vector<1x1x128xf32>,
    %8 = arith.mulf %2, %2 : vector<512x128xf32>
    %cst_9 = arith.constant dense<0.000000e+00> : vector<128xf32>
    %9 = vector.multi_reduction <add>, %8, %cst_9 [0] : vector<512x128xf32> to vector<128xf32>
    %10 = vector.shape_cast %9 : vector<128xf32> to vector<1x128xf32>
    %11 = vector.shape_cast %10 : vector<1x128xf32> to vector<1x1x128xf32>
    %c0_10 = arith.constant 0 : index
    %c0_11 = arith.constant 0 : index
    %c0_12 = arith.constant 0 : index
    %12 = vector.load %arg6[%c0_10, %c0_11, %c0_12] : memref<1x1x128xf32, #tpu.memory_space<vmem>>, vector<1x1x128xf32>
    tpu.vector_store %arg6[%c0_10, %c0_11, %c0_12], %11 {strides = array<i32>} : memref<1x1x128xf32, #tpu.memory_space<vmem>>, vector<1x1x128xf32>,
    return
  }
  func.func @transform_0(%arg0: i32, %arg1: i32) -> (i32, i32) {
    %c0_i32 = arith.constant 0 : i32
    %c0_i32_0 = arith.constant 0 : i32
    return %arg0, %c0_i32 : i32, i32
  }
  func.func @transform_1(%arg0: i32, %arg1: i32) -> (i32, i32) {
    %c0_i32 = arith.constant 0 : i32
    %c0_i32_0 = arith.constant 0 : i32
    return %c0_i32, %arg1 : i32, i32
  }
  func.func @transform_2(%arg0: i32, %arg1: i32) -> (i32, i32) {
    %c0_i32 = arith.constant 0 : i32
    return %arg0, %arg1 : i32, i32
  }
  func.func @transform_3(%arg0: i32, %arg1: i32) -> (i32, i32, i32) {
    %c0_i32 = arith.constant 0 : i32
    %c0_i32_0 = arith.constant 0 : i32
    return %arg0, %c0_i32, %arg1 : i32, i32, i32
  }
  func.func @transform_4(%arg0: i32, %arg1: i32) -> (i32, i32, i32) {
    %c0_i32 = arith.constant 0 : i32
    %c0_i32_0 = arith.constant 0 : i32
    return %arg0, %c0_i32, %arg1 : i32, i32, i32
  }
}

module attributes {stable_mosaic.version = 11 : i64} {
  func.func @_bn_apply_kernel(%arg0: i32, %arg1: memref<512x128xf32, #tpu.memory_space<vmem>>, %arg2: memref<1x128xf32, #tpu.memory_space<vmem>>, %arg3: memref<1x128xf32, #tpu.memory_space<vmem>>, %arg4: memref<512x128xbf16, #tpu.memory_space<vmem>>) attributes {dimension_semantics = [#tpu.dimension_semantics<parallel>], iteration_bounds = array<i64: 1>, scalar_prefetch = 0 : i64, scratch_operands = 0 : i64, tpu.core_type = #tpu.core_type<tc>, window_params = [{transform_indices = @transform_0, window_bounds = array<i64: 512, 128>}, {pipeline_mode = #tpu.pipeline_mode<synchronous>, transform_indices = @transform_1, window_bounds = array<i64: 1, 128>}, {pipeline_mode = #tpu.pipeline_mode<synchronous>, transform_indices = @transform_2, window_bounds = array<i64: 1, 128>}, {transform_indices = @transform_3, window_bounds = array<i64: 512, 128>}]} {
    %c0 = arith.constant 0 : index
    %c0_0 = arith.constant 0 : index
    %0 = vector.load %arg1[%c0, %c0_0] : memref<512x128xf32, #tpu.memory_space<vmem>>, vector<512x128xf32>
    %c0_1 = arith.constant 0 : index
    %c0_2 = arith.constant 0 : index
    %1 = vector.load %arg2[%c0_1, %c0_2] : memref<1x128xf32, #tpu.memory_space<vmem>>, vector<1x128xf32>
    %2 = vector.broadcast %1 : vector<1x128xf32> to vector<512x128xf32>
    %3 = arith.mulf %0, %2 : vector<512x128xf32>
    %c0_3 = arith.constant 0 : index
    %c0_4 = arith.constant 0 : index
    %4 = vector.load %arg3[%c0_3, %c0_4] : memref<1x128xf32, #tpu.memory_space<vmem>>, vector<1x128xf32>
    %5 = vector.broadcast %4 : vector<1x128xf32> to vector<512x128xf32>
    %6 = arith.addf %3, %5 : vector<512x128xf32>
    %cst = arith.constant 0.000000e+00 : f32
    %7 = vector.broadcast %cst : f32 to vector<512x128xf32>
    %8 = arith.maximumf %6, %7 : vector<512x128xf32>
    %9 = arith.truncf %8 : vector<512x128xf32> to vector<512x128xbf16>
    %c0_5 = arith.constant 0 : index
    %c0_6 = arith.constant 0 : index
    %10 = vector.load %arg4[%c0_5, %c0_6] : memref<512x128xbf16, #tpu.memory_space<vmem>>, vector<512x128xbf16>
    tpu.vector_store %arg4[%c0_5, %c0_6], %9 {strides = array<i32>} : memref<512x128xbf16, #tpu.memory_space<vmem>>, vector<512x128xbf16>,
    return
  }
  func.func @transform_0(%arg0: i32) -> (i32, i32) {
    %c0_i32 = arith.constant 0 : i32
    %c0_i32_0 = arith.constant 0 : i32
    return %arg0, %c0_i32 : i32, i32
  }
  func.func @transform_1(%arg0: i32) -> (i32, i32) {
    %c0_i32 = arith.constant 0 : i32
    %c0_i32_0 = arith.constant 0 : i32
    %c0_i32_1 = arith.constant 0 : i32
    return %c0_i32, %c0_i32_0 : i32, i32
  }
  func.func @transform_2(%arg0: i32) -> (i32, i32) {
    %c0_i32 = arith.constant 0 : i32
    %c0_i32_0 = arith.constant 0 : i32
    %c0_i32_1 = arith.constant 0 : i32
    return %c0_i32, %c0_i32_0 : i32, i32
  }
  func.func @transform_3(%arg0: i32) -> (i32, i32) {
    %c0_i32 = arith.constant 0 : i32
    %c0_i32_0 = arith.constant 0 : i32
    return %arg0, %c0_i32 : i32, i32
  }
}

module attributes {stable_mosaic.version = 11 : i64} {
  func.func @_conv3x3_bn_stats_kernel(%arg0: i32, %arg1: memref<4x9x9x128xbf16, #tpu.memory_space<vmem>>, %arg2: memref<9x128x128xbf16, #tpu.memory_space<vmem>>, %arg3: memref<1x64x128xf32, #tpu.memory_space<vmem>>, %arg4: memref<1x1x128xf32, #tpu.memory_space<vmem>>, %arg5: memref<1x1x128xf32, #tpu.memory_space<vmem>>) attributes {dimension_semantics = [#tpu.dimension_semantics<parallel>], iteration_bounds = array<i64: 2>, scalar_prefetch = 0 : i64, scratch_operands = 0 : i64, tpu.core_type = #tpu.core_type<tc>, window_params = [{transform_indices = @transform_0, window_bounds = array<i64: 4, 9, 9, 128>}, {pipeline_mode = #tpu.pipeline_mode<synchronous>, transform_indices = @transform_1, window_bounds = array<i64: 9, 128, 128>}, {transform_indices = @transform_2, window_bounds = array<i64: 1, 64, 128>}, {transform_indices = @transform_3, window_bounds = array<i64: 1, 1, 128>}, {transform_indices = @transform_4, window_bounds = array<i64: 1, 1, 128>}]} {
    %cst = arith.constant 0.000000e+00 : f32
    %0 = vector.broadcast %cst : f32 to vector<64x128xf32>
    %c0 = arith.constant 0 : index
    %c0_0 = arith.constant 0 : index
    %c0_1 = arith.constant 0 : index
    %c0_2 = arith.constant 0 : index
    %1 = vector.load %arg1[%c0, %c0_0, %c0_1, %c0_2] : memref<4x9x9x128xbf16, #tpu.memory_space<vmem>>, vector<1x8x8x128xbf16>
    %2 = vector.shape_cast %1 : vector<1x8x8x128xbf16> to vector<8x8x128xbf16>
    %3 = vector.shape_cast %2 : vector<8x8x128xbf16> to vector<64x128xbf16>
    %c0_3 = arith.constant 0 : index
    %c0_4 = arith.constant 0 : index
    %c0_5 = arith.constant 0 : index
    %4 = vector.load %arg2[%c0_3, %c0_4, %c0_5] : memref<9x128x128xbf16, #tpu.memory_space<vmem>>, vector<1x128x128xbf16>
    %5 = vector.shape_cast %4 : vector<1x128x128xbf16> to vector<128x128xbf16>
    %cst_6 = arith.constant dense<0.000000e+00> : vector<64x128xf32>
    %6 = tpu.matmul %3, %5, %cst_6 {dimension_numbers = #tpu.dot_dimension_numbers<[1], [0], [0], [1], [0, 0, 1, 1], [], []>} : vector<64x128xbf16>, vector<128x128xbf16>, vector<64x128xf32> -> vector<64x128xf32>
    %7 = arith.addf %0, %6 : vector<64x128xf32>
    %c1 = arith.constant 1 : index
    %c0_7 = arith.constant 0 : index
    %c0_8 = arith.constant 0 : index
    %c0_9 = arith.constant 0 : index
    %8 = vector.load %arg1[%c1, %c0_7, %c0_8, %c0_9] : memref<4x9x9x128xbf16, #tpu.memory_space<vmem>>, vector<1x8x8x128xbf16>
    %9 = vector.shape_cast %8 : vector<1x8x8x128xbf16> to vector<8x8x128xbf16>
    %10 = vector.shape_cast %9 : vector<8x8x128xbf16> to vector<64x128xbf16>
    %c1_10 = arith.constant 1 : index
    %c0_11 = arith.constant 0 : index
    %c0_12 = arith.constant 0 : index
    %11 = vector.load %arg2[%c1_10, %c0_11, %c0_12] : memref<9x128x128xbf16, #tpu.memory_space<vmem>>, vector<1x128x128xbf16>
    %12 = vector.shape_cast %11 : vector<1x128x128xbf16> to vector<128x128xbf16>
    %cst_13 = arith.constant dense<0.000000e+00> : vector<64x128xf32>
    %13 = tpu.matmul %10, %12, %cst_13 {dimension_numbers = #tpu.dot_dimension_numbers<[1], [0], [0], [1], [0, 0, 1, 1], [], []>} : vector<64x128xbf16>, vector<128x128xbf16>, vector<64x128xf32> -> vector<64x128xf32>
    %14 = arith.addf %7, %13 : vector<64x128xf32>
    %c0_14 = arith.constant 0 : index
    %c0_15 = arith.constant 0 : index
    %c1_16 = arith.constant 1 : index
    %c0_17 = arith.constant 0 : index
    %15 = vector.load %arg1[%c0_14, %c0_15, %c1_16, %c0_17] : memref<4x9x9x128xbf16, #tpu.memory_space<vmem>>, vector<1x8x8x128xbf16>
    %16 = vector.shape_cast %15 : vector<1x8x8x128xbf16> to vector<8x8x128xbf16>
    %17 = vector.shape_cast %16 : vector<8x8x128xbf16> to vector<64x128xbf16>
    %c2 = arith.constant 2 : index
    %c0_18 = arith.constant 0 : index
    %c0_19 = arith.constant 0 : index
    %18 = vector.load %arg2[%c2, %c0_18, %c0_19] : memref<9x128x128xbf16, #tpu.memory_space<vmem>>, vector<1x128x128xbf16>
    %19 = vector.shape_cast %18 : vector<1x128x128xbf16> to vector<128x128xbf16>
    %cst_20 = arith.constant dense<0.000000e+00> : vector<64x128xf32>
    %20 = tpu.matmul %17, %19, %cst_20 {dimension_numbers = #tpu.dot_dimension_numbers<[1], [0], [0], [1], [0, 0, 1, 1], [], []>} : vector<64x128xbf16>, vector<128x128xbf16>, vector<64x128xf32> -> vector<64x128xf32>
    %21 = arith.addf %14, %20 : vector<64x128xf32>
    %c2_21 = arith.constant 2 : index
    %c0_22 = arith.constant 0 : index
    %c0_23 = arith.constant 0 : index
    %c0_24 = arith.constant 0 : index
    %22 = vector.load %arg1[%c2_21, %c0_22, %c0_23, %c0_24] : memref<4x9x9x128xbf16, #tpu.memory_space<vmem>>, vector<1x8x8x128xbf16>
    %23 = vector.shape_cast %22 : vector<1x8x8x128xbf16> to vector<8x8x128xbf16>
    %24 = vector.shape_cast %23 : vector<8x8x128xbf16> to vector<64x128xbf16>
    %c3 = arith.constant 3 : index
    %c0_25 = arith.constant 0 : index
    %c0_26 = arith.constant 0 : index
    %25 = vector.load %arg2[%c3, %c0_25, %c0_26] : memref<9x128x128xbf16, #tpu.memory_space<vmem>>, vector<1x128x128xbf16>
    %26 = vector.shape_cast %25 : vector<1x128x128xbf16> to vector<128x128xbf16>
    %cst_27 = arith.constant dense<0.000000e+00> : vector<64x128xf32>
    %27 = tpu.matmul %24, %26, %cst_27 {dimension_numbers = #tpu.dot_dimension_numbers<[1], [0], [0], [1], [0, 0, 1, 1], [], []>} : vector<64x128xbf16>, vector<128x128xbf16>, vector<64x128xf32> -> vector<64x128xf32>
    %28 = arith.addf %21, %27 : vector<64x128xf32>
    %c3_28 = arith.constant 3 : index
    %c0_29 = arith.constant 0 : index
    %c0_30 = arith.constant 0 : index
    %c0_31 = arith.constant 0 : index
    %29 = vector.load %arg1[%c3_28, %c0_29, %c0_30, %c0_31] : memref<4x9x9x128xbf16, #tpu.memory_space<vmem>>, vector<1x8x8x128xbf16>
    %30 = vector.shape_cast %29 : vector<1x8x8x128xbf16> to vector<8x8x128xbf16>
    %31 = vector.shape_cast %30 : vector<8x8x128xbf16> to vector<64x128xbf16>
    %c4 = arith.constant 4 : index
    %c0_32 = arith.constant 0 : index
    %c0_33 = arith.constant 0 : index
    %32 = vector.load %arg2[%c4, %c0_32, %c0_33] : memref<9x128x128xbf16, #tpu.memory_space<vmem>>, vector<1x128x128xbf16>
    %33 = vector.shape_cast %32 : vector<1x128x128xbf16> to vector<128x128xbf16>
    %cst_34 = arith.constant dense<0.000000e+00> : vector<64x128xf32>
    %34 = tpu.matmul %31, %33, %cst_34 {dimension_numbers = #tpu.dot_dimension_numbers<[1], [0], [0], [1], [0, 0, 1, 1], [], []>} : vector<64x128xbf16>, vector<128x128xbf16>, vector<64x128xf32> -> vector<64x128xf32>
    %35 = arith.addf %28, %34 : vector<64x128xf32>
    %c2_35 = arith.constant 2 : index
    %c0_36 = arith.constant 0 : index
    %c1_37 = arith.constant 1 : index
    %c0_38 = arith.constant 0 : index
    %36 = vector.load %arg1[%c2_35, %c0_36, %c1_37, %c0_38] : memref<4x9x9x128xbf16, #tpu.memory_space<vmem>>, vector<1x8x8x128xbf16>
    %37 = vector.shape_cast %36 : vector<1x8x8x128xbf16> to vector<8x8x128xbf16>
    %38 = vector.shape_cast %37 : vector<8x8x128xbf16> to vector<64x128xbf16>
    %c5 = arith.constant 5 : index
    %c0_39 = arith.constant 0 : index
    %c0_40 = arith.constant 0 : index
    %39 = vector.load %arg2[%c5, %c0_39, %c0_40] : memref<9x128x128xbf16, #tpu.memory_space<vmem>>, vector<1x128x128xbf16>
    %40 = vector.shape_cast %39 : vector<1x128x128xbf16> to vector<128x128xbf16>
    %cst_41 = arith.constant dense<0.000000e+00> : vector<64x128xf32>
    %41 = tpu.matmul %38, %40, %cst_41 {dimension_numbers = #tpu.dot_dimension_numbers<[1], [0], [0], [1], [0, 0, 1, 1], [], []>} : vector<64x128xbf16>, vector<128x128xbf16>, vector<64x128xf32> -> vector<64x128xf32>
    %42 = arith.addf %35, %41 : vector<64x128xf32>
    %c0_42 = arith.constant 0 : index
    %c1_43 = arith.constant 1 : index
    %c0_44 = arith.constant 0 : index
    %c0_45 = arith.constant 0 : index
    %43 = vector.load %arg1[%c0_42, %c1_43, %c0_44, %c0_45] : memref<4x9x9x128xbf16, #tpu.memory_space<vmem>>, vector<1x8x8x128xbf16>
    %44 = vector.shape_cast %43 : vector<1x8x8x128xbf16> to vector<8x8x128xbf16>
    %45 = vector.shape_cast %44 : vector<8x8x128xbf16> to vector<64x128xbf16>
    %c6 = arith.constant 6 : index
    %c0_46 = arith.constant 0 : index
    %c0_47 = arith.constant 0 : index
    %46 = vector.load %arg2[%c6, %c0_46, %c0_47] : memref<9x128x128xbf16, #tpu.memory_space<vmem>>, vector<1x128x128xbf16>
    %47 = vector.shape_cast %46 : vector<1x128x128xbf16> to vector<128x128xbf16>
    %cst_48 = arith.constant dense<0.000000e+00> : vector<64x128xf32>
    %48 = tpu.matmul %45, %47, %cst_48 {dimension_numbers = #tpu.dot_dimension_numbers<[1], [0], [0], [1], [0, 0, 1, 1], [], []>} : vector<64x128xbf16>, vector<128x128xbf16>, vector<64x128xf32> -> vector<64x128xf32>
    %49 = arith.addf %42, %48 : vector<64x128xf32>
    %c1_49 = arith.constant 1 : index
    %c1_50 = arith.constant 1 : index
    %c0_51 = arith.constant 0 : index
    %c0_52 = arith.constant 0 : index
    %50 = vector.load %arg1[%c1_49, %c1_50, %c0_51, %c0_52] : memref<4x9x9x128xbf16, #tpu.memory_space<vmem>>, vector<1x8x8x128xbf16>
    %51 = vector.shape_cast %50 : vector<1x8x8x128xbf16> to vector<8x8x128xbf16>
    %52 = vector.shape_cast %51 : vector<8x8x128xbf16> to vector<64x128xbf16>
    %c7 = arith.constant 7 : index
    %c0_53 = arith.constant 0 : index
    %c0_54 = arith.constant 0 : index
    %53 = vector.load %arg2[%c7, %c0_53, %c0_54] : memref<9x128x128xbf16, #tpu.memory_space<vmem>>, vector<1x128x128xbf16>
    %54 = vector.shape_cast %53 : vector<1x128x128xbf16> to vector<128x128xbf16>
    %cst_55 = arith.constant dense<0.000000e+00> : vector<64x128xf32>
    %55 = tpu.matmul %52, %54, %cst_55 {dimension_numbers = #tpu.dot_dimension_numbers<[1], [0], [0], [1], [0, 0, 1, 1], [], []>} : vector<64x128xbf16>, vector<128x128xbf16>, vector<64x128xf32> -> vector<64x128xf32>
    %56 = arith.addf %49, %55 : vector<64x128xf32>
    %c0_56 = arith.constant 0 : index
    %c1_57 = arith.constant 1 : index
    %c1_58 = arith.constant 1 : index
    %c0_59 = arith.constant 0 : index
    %57 = vector.load %arg1[%c0_56, %c1_57, %c1_58, %c0_59] : memref<4x9x9x128xbf16, #tpu.memory_space<vmem>>, vector<1x8x8x128xbf16>
    %58 = vector.shape_cast %57 : vector<1x8x8x128xbf16> to vector<8x8x128xbf16>
    %59 = vector.shape_cast %58 : vector<8x8x128xbf16> to vector<64x128xbf16>
    %c8 = arith.constant 8 : index
    %c0_60 = arith.constant 0 : index
    %c0_61 = arith.constant 0 : index
    %60 = vector.load %arg2[%c8, %c0_60, %c0_61] : memref<9x128x128xbf16, #tpu.memory_space<vmem>>, vector<1x128x128xbf16>
    %61 = vector.shape_cast %60 : vector<1x128x128xbf16> to vector<128x128xbf16>
    %cst_62 = arith.constant dense<0.000000e+00> : vector<64x128xf32>
    %62 = tpu.matmul %59, %61, %cst_62 {dimension_numbers = #tpu.dot_dimension_numbers<[1], [0], [0], [1], [0, 0, 1, 1], [], []>} : vector<64x128xbf16>, vector<128x128xbf16>, vector<64x128xf32> -> vector<64x128xf32>
    %63 = arith.addf %56, %62 : vector<64x128xf32>
    %64 = vector.shape_cast %63 : vector<64x128xf32> to vector<1x64x128xf32>
    %c0_63 = arith.constant 0 : index
    %c0_64 = arith.constant 0 : index
    %c0_65 = arith.constant 0 : index
    %65 = vector.load %arg3[%c0_63, %c0_64, %c0_65] : memref<1x64x128xf32, #tpu.memory_space<vmem>>, vector<1x64x128xf32>
    tpu.vector_store %arg3[%c0_63, %c0_64, %c0_65], %64 {strides = array<i32>} : memref<1x64x128xf32, #tpu.memory_space<vmem>>, vector<1x64x128xf32>,
    %cst_66 = arith.constant dense<0.000000e+00> : vector<128xf32>
    %66 = vector.multi_reduction <add>, %63, %cst_66 [0] : vector<64x128xf32> to vector<128xf32>
    %67 = vector.shape_cast %66 : vector<128xf32> to vector<1x128xf32>
    %68 = vector.shape_cast %67 : vector<1x128xf32> to vector<1x1x128xf32>
    %c0_67 = arith.constant 0 : index
    %c0_68 = arith.constant 0 : index
    %c0_69 = arith.constant 0 : index
    %69 = vector.load %arg4[%c0_67, %c0_68, %c0_69] : memref<1x1x128xf32, #tpu.memory_space<vmem>>, vector<1x1x128xf32>
    tpu.vector_store %arg4[%c0_67, %c0_68, %c0_69], %68 {strides = array<i32>} : memref<1x1x128xf32, #tpu.memory_space<vmem>>, vector<1x1x128xf32>,
    %70 = arith.mulf %63, %63 : vector<64x128xf32>
    %cst_70 = arith.constant dense<0.000000e+00> : vector<128xf32>
    %71 = vector.multi_reduction <add>, %70, %cst_70 [0] : vector<64x128xf32> to vector<128xf32>
    %72 = vector.shape_cast %71 : vector<128xf32> to vector<1x128xf32>
    %73 = vector.shape_cast %72 : vector<1x128xf32> to vector<1x1x128xf32>
    %c0_71 = arith.constant 0 : index
    %c0_72 = arith.constant 0 : index
    %c0_73 = arith.constant 0 : index
    %74 = vector.load %arg5[%c0_71, %c0_72, %c0_73] : memref<1x1x128xf32, #tpu.memory_space<vmem>>, vector<1x1x128xf32>
    tpu.vector_store %arg5[%c0_71, %c0_72, %c0_73], %73 {strides = array<i32>} : memref<1x1x128xf32, #tpu.memory_space<vmem>>, vector<1x1x128xf32>,
    return
  }
  func.func @transform_0(%arg0: i32) -> (i32, i32, i32, i32) {
    %c0_i32 = arith.constant 0 : i32
    %c0_i32_0 = arith.constant 0 : i32
    %c0_i32_1 = arith.constant 0 : i32
    %c0_i32_2 = arith.constant 0 : i32
    return %arg0, %c0_i32, %c0_i32_0, %c0_i32_1 : i32, i32, i32, i32
  }
  func.func @transform_1(%arg0: i32) -> (i32, i32, i32) {
    %c0_i32 = arith.constant 0 : i32
    %c0_i32_0 = arith.constant 0 : i32
    %c0_i32_1 = arith.constant 0 : i32
    %c0_i32_2 = arith.constant 0 : i32
    return %c0_i32, %c0_i32_0, %c0_i32_1 : i32, i32, i32
  }
  func.func @transform_2(%arg0: i32) -> (i32, i32, i32) {
    %c0_i32 = arith.constant 0 : i32
    %c0_i32_0 = arith.constant 0 : i32
    %c0_i32_1 = arith.constant 0 : i32
    return %arg0, %c0_i32, %c0_i32_0 : i32, i32, i32
  }
  func.func @transform_3(%arg0: i32) -> (i32, i32, i32) {
    %c0_i32 = arith.constant 0 : i32
    %c0_i32_0 = arith.constant 0 : i32
    %c0_i32_1 = arith.constant 0 : i32
    return %arg0, %c0_i32, %c0_i32_0 : i32, i32, i32
  }
  func.func @transform_4(%arg0: i32) -> (i32, i32, i32) {
    %c0_i32 = arith.constant 0 : i32
    %c0_i32_0 = arith.constant 0 : i32
    %c0_i32_1 = arith.constant 0 : i32
    return %arg0, %c0_i32, %c0_i32_0 : i32, i32, i32
  }
}

module attributes {stable_mosaic.version = 11 : i64} {
  func.func @_bn_apply_dualres_kernel(%arg0: i32, %arg1: memref<128x128xf32, #tpu.memory_space<vmem>>, %arg2: memref<1x128xf32, #tpu.memory_space<vmem>>, %arg3: memref<1x128xf32, #tpu.memory_space<vmem>>, %arg4: memref<128x128xf32, #tpu.memory_space<vmem>>, %arg5: memref<1x128xf32, #tpu.memory_space<vmem>>, %arg6: memref<1x128xf32, #tpu.memory_space<vmem>>, %arg7: memref<128x128xf32, #tpu.memory_space<vmem>>) attributes {dimension_semantics = [#tpu.dimension_semantics<parallel>], iteration_bounds = array<i64: 1>, scalar_prefetch = 0 : i64, scratch_operands = 0 : i64, tpu.core_type = #tpu.core_type<tc>, window_params = [{transform_indices = @transform_0, window_bounds = array<i64: 128, 128>}, {pipeline_mode = #tpu.pipeline_mode<synchronous>, transform_indices = @transform_1, window_bounds = array<i64: 1, 128>}, {pipeline_mode = #tpu.pipeline_mode<synchronous>, transform_indices = @transform_2, window_bounds = array<i64: 1, 128>}, {transform_indices = @transform_3, window_bounds = array<i64: 128, 128>}, {pipeline_mode = #tpu.pipeline_mode<synchronous>, transform_indices = @transform_4, window_bounds = array<i64: 1, 128>}, {pipeline_mode = #tpu.pipeline_mode<synchronous>, transform_indices = @transform_5, window_bounds = array<i64: 1, 128>}, {transform_indices = @transform_6, window_bounds = array<i64: 128, 128>}]} {
    %c0 = arith.constant 0 : index
    %c0_0 = arith.constant 0 : index
    %0 = vector.load %arg1[%c0, %c0_0] : memref<128x128xf32, #tpu.memory_space<vmem>>, vector<128x128xf32>
    %c0_1 = arith.constant 0 : index
    %c0_2 = arith.constant 0 : index
    %1 = vector.load %arg2[%c0_1, %c0_2] : memref<1x128xf32, #tpu.memory_space<vmem>>, vector<1x128xf32>
    %2 = vector.broadcast %1 : vector<1x128xf32> to vector<128x128xf32>
    %3 = arith.mulf %0, %2 : vector<128x128xf32>
    %c0_3 = arith.constant 0 : index
    %c0_4 = arith.constant 0 : index
    %4 = vector.load %arg3[%c0_3, %c0_4] : memref<1x128xf32, #tpu.memory_space<vmem>>, vector<1x128xf32>
    %5 = vector.broadcast %4 : vector<1x128xf32> to vector<128x128xf32>
    %6 = arith.addf %3, %5 : vector<128x128xf32>
    %c0_5 = arith.constant 0 : index
    %c0_6 = arith.constant 0 : index
    %7 = vector.load %arg4[%c0_5, %c0_6] : memref<128x128xf32, #tpu.memory_space<vmem>>, vector<128x128xf32>
    %c0_7 = arith.constant 0 : index
    %c0_8 = arith.constant 0 : index
    %8 = vector.load %arg5[%c0_7, %c0_8] : memref<1x128xf32, #tpu.memory_space<vmem>>, vector<1x128xf32>
    %9 = vector.broadcast %8 : vector<1x128xf32> to vector<128x128xf32>
    %10 = arith.mulf %7, %9 : vector<128x128xf32>
    %c0_9 = arith.constant 0 : index
    %c0_10 = arith.constant 0 : index
    %11 = vector.load %arg6[%c0_9, %c0_10] : memref<1x128xf32, #tpu.memory_space<vmem>>, vector<1x128xf32>
    %12 = vector.broadcast %11 : vector<1x128xf32> to vector<128x128xf32>
    %13 = arith.addf %10, %12 : vector<128x128xf32>
    %14 = arith.addf %6, %13 : vector<128x128xf32>
    %cst = arith.constant 0.000000e+00 : f32
    %15 = vector.broadcast %cst : f32 to vector<128x128xf32>
    %16 = arith.maximumf %14, %15 : vector<128x128xf32>
    %c0_11 = arith.constant 0 : index
    %c0_12 = arith.constant 0 : index
    %17 = vector.load %arg7[%c0_11, %c0_12] : memref<128x128xf32, #tpu.memory_space<vmem>>, vector<128x128xf32>
    tpu.vector_store %arg7[%c0_11, %c0_12], %16 {strides = array<i32>} : memref<128x128xf32, #tpu.memory_space<vmem>>, vector<128x128xf32>,
    return
  }
  func.func @transform_0(%arg0: i32) -> (i32, i32) {
    %c0_i32 = arith.constant 0 : i32
    %c0_i32_0 = arith.constant 0 : i32
    return %arg0, %c0_i32 : i32, i32
  }
  func.func @transform_1(%arg0: i32) -> (i32, i32) {
    %c0_i32 = arith.constant 0 : i32
    %c0_i32_0 = arith.constant 0 : i32
    %c0_i32_1 = arith.constant 0 : i32
    return %c0_i32, %c0_i32_0 : i32, i32
  }
  func.func @transform_2(%arg0: i32) -> (i32, i32) {
    %c0_i32 = arith.constant 0 : i32
    %c0_i32_0 = arith.constant 0 : i32
    %c0_i32_1 = arith.constant 0 : i32
    return %c0_i32, %c0_i32_0 : i32, i32
  }
  func.func @transform_3(%arg0: i32) -> (i32, i32) {
    %c0_i32 = arith.constant 0 : i32
    %c0_i32_0 = arith.constant 0 : i32
    return %arg0, %c0_i32 : i32, i32
  }
  func.func @transform_4(%arg0: i32) -> (i32, i32) {
    %c0_i32 = arith.constant 0 : i32
    %c0_i32_0 = arith.constant 0 : i32
    %c0_i32_1 = arith.constant 0 : i32
    return %c0_i32, %c0_i32_0 : i32, i32
  }
  func.func @transform_5(%arg0: i32) -> (i32, i32) {
    %c0_i32 = arith.constant 0 : i32
    %c0_i32_0 = arith.constant 0 : i32
    %c0_i32_1 = arith.constant 0 : i32
    return %c0_i32, %c0_i32_0 : i32, i32
  }
  func.func @transform_6(%arg0: i32) -> (i32, i32) {
    %c0_i32 = arith.constant 0 : i32
    %c0_i32_0 = arith.constant 0 : i32
    return %arg0, %c0_i32 : i32, i32
  }
}

module attributes {stable_mosaic.version = 11 : i64} {
  func.func @_gemm_bnin_stats_kernel(%arg0: i32, %arg1: i32, %arg2: memref<128x128xf32, #tpu.memory_space<vmem>>, %arg3: memref<1x128xf32, #tpu.memory_space<vmem>>, %arg4: memref<1x128xf32, #tpu.memory_space<vmem>>, %arg5: memref<128x128xbf16, #tpu.memory_space<vmem>>, %arg6: memref<128x128xf32, #tpu.memory_space<vmem>>, %arg7: memref<1x1x128xf32, #tpu.memory_space<vmem>>, %arg8: memref<1x1x128xf32, #tpu.memory_space<vmem>>) attributes {dimension_semantics = [#tpu.dimension_semantics<parallel>, #tpu.dimension_semantics<parallel>], iteration_bounds = array<i64: 1, 1>, scalar_prefetch = 0 : i64, scratch_operands = 0 : i64, tpu.core_type = #tpu.core_type<tc>, window_params = [{transform_indices = @transform_0, window_bounds = array<i64: 128, 128>}, {pipeline_mode = #tpu.pipeline_mode<synchronous>, transform_indices = @transform_1, window_bounds = array<i64: 1, 128>}, {pipeline_mode = #tpu.pipeline_mode<synchronous>, transform_indices = @transform_2, window_bounds = array<i64: 1, 128>}, {transform_indices = @transform_3, window_bounds = array<i64: 128, 128>}, {transform_indices = @transform_4, window_bounds = array<i64: 128, 128>}, {transform_indices = @transform_5, window_bounds = array<i64: 1, 1, 128>}, {transform_indices = @transform_6, window_bounds = array<i64: 1, 1, 128>}]} {
    %c0 = arith.constant 0 : index
    %c0_0 = arith.constant 0 : index
    %0 = vector.load %arg2[%c0, %c0_0] : memref<128x128xf32, #tpu.memory_space<vmem>>, vector<128x128xf32>
    %c0_1 = arith.constant 0 : index
    %c0_2 = arith.constant 0 : index
    %1 = vector.load %arg3[%c0_1, %c0_2] : memref<1x128xf32, #tpu.memory_space<vmem>>, vector<1x128xf32>
    %2 = vector.broadcast %1 : vector<1x128xf32> to vector<128x128xf32>
    %3 = arith.mulf %0, %2 : vector<128x128xf32>
    %c0_3 = arith.constant 0 : index
    %c0_4 = arith.constant 0 : index
    %4 = vector.load %arg4[%c0_3, %c0_4] : memref<1x128xf32, #tpu.memory_space<vmem>>, vector<1x128xf32>
    %5 = vector.broadcast %4 : vector<1x128xf32> to vector<128x128xf32>
    %6 = arith.addf %3, %5 : vector<128x128xf32>
    %cst = arith.constant 0.000000e+00 : f32
    %7 = vector.broadcast %cst : f32 to vector<128x128xf32>
    %8 = arith.maximumf %6, %7 : vector<128x128xf32>
    %9 = arith.truncf %8 : vector<128x128xf32> to vector<128x128xbf16>
    %c0_5 = arith.constant 0 : index
    %c0_6 = arith.constant 0 : index
    %10 = vector.load %arg5[%c0_5, %c0_6] : memref<128x128xbf16, #tpu.memory_space<vmem>>, vector<128x128xbf16>
    %cst_7 = arith.constant dense<0.000000e+00> : vector<128x128xf32>
    %11 = tpu.matmul %9, %10, %cst_7 {dimension_numbers = #tpu.dot_dimension_numbers<[1], [0], [0], [1], [0, 0, 1, 1], [], []>} : vector<128x128xbf16>, vector<128x128xbf16>, vector<128x128xf32> -> vector<128x128xf32>
    %c0_8 = arith.constant 0 : index
    %c0_9 = arith.constant 0 : index
    %12 = vector.load %arg6[%c0_8, %c0_9] : memref<128x128xf32, #tpu.memory_space<vmem>>, vector<128x128xf32>
    tpu.vector_store %arg6[%c0_8, %c0_9], %11 {strides = array<i32>} : memref<128x128xf32, #tpu.memory_space<vmem>>, vector<128x128xf32>,
    %cst_10 = arith.constant dense<0.000000e+00> : vector<128xf32>
    %13 = vector.multi_reduction <add>, %11, %cst_10 [0] : vector<128x128xf32> to vector<128xf32>
    %14 = vector.shape_cast %13 : vector<128xf32> to vector<1x128xf32>
    %15 = vector.shape_cast %14 : vector<1x128xf32> to vector<1x1x128xf32>
    %c0_11 = arith.constant 0 : index
    %c0_12 = arith.constant 0 : index
    %c0_13 = arith.constant 0 : index
    %16 = vector.load %arg7[%c0_11, %c0_12, %c0_13] : memref<1x1x128xf32, #tpu.memory_space<vmem>>, vector<1x1x128xf32>
    tpu.vector_store %arg7[%c0_11, %c0_12, %c0_13], %15 {strides = array<i32>} : memref<1x1x128xf32, #tpu.memory_space<vmem>>, vector<1x1x128xf32>,
    %17 = arith.mulf %11, %11 : vector<128x128xf32>
    %cst_14 = arith.constant dense<0.000000e+00> : vector<128xf32>
    %18 = vector.multi_reduction <add>, %17, %cst_14 [0] : vector<128x128xf32> to vector<128xf32>
    %19 = vector.shape_cast %18 : vector<128xf32> to vector<1x128xf32>
    %20 = vector.shape_cast %19 : vector<1x128xf32> to vector<1x1x128xf32>
    %c0_15 = arith.constant 0 : index
    %c0_16 = arith.constant 0 : index
    %c0_17 = arith.constant 0 : index
    %21 = vector.load %arg8[%c0_15, %c0_16, %c0_17] : memref<1x1x128xf32, #tpu.memory_space<vmem>>, vector<1x1x128xf32>
    tpu.vector_store %arg8[%c0_15, %c0_16, %c0_17], %20 {strides = array<i32>} : memref<1x1x128xf32, #tpu.memory_space<vmem>>, vector<1x1x128xf32>,
    return
  }
  func.func @transform_0(%arg0: i32, %arg1: i32) -> (i32, i32) {
    %c0_i32 = arith.constant 0 : i32
    %c0_i32_0 = arith.constant 0 : i32
    return %arg0, %c0_i32 : i32, i32
  }
  func.func @transform_1(%arg0: i32, %arg1: i32) -> (i32, i32) {
    %c0_i32 = arith.constant 0 : i32
    %c0_i32_0 = arith.constant 0 : i32
    %c0_i32_1 = arith.constant 0 : i32
    return %c0_i32, %c0_i32_0 : i32, i32
  }
  func.func @transform_2(%arg0: i32, %arg1: i32) -> (i32, i32) {
    %c0_i32 = arith.constant 0 : i32
    %c0_i32_0 = arith.constant 0 : i32
    %c0_i32_1 = arith.constant 0 : i32
    return %c0_i32, %c0_i32_0 : i32, i32
  }
  func.func @transform_3(%arg0: i32, %arg1: i32) -> (i32, i32) {
    %c0_i32 = arith.constant 0 : i32
    %c0_i32_0 = arith.constant 0 : i32
    return %c0_i32, %arg1 : i32, i32
  }
  func.func @transform_4(%arg0: i32, %arg1: i32) -> (i32, i32) {
    %c0_i32 = arith.constant 0 : i32
    return %arg0, %arg1 : i32, i32
  }
  func.func @transform_5(%arg0: i32, %arg1: i32) -> (i32, i32, i32) {
    %c0_i32 = arith.constant 0 : i32
    %c0_i32_0 = arith.constant 0 : i32
    return %arg0, %c0_i32, %arg1 : i32, i32, i32
  }
  func.func @transform_6(%arg0: i32, %arg1: i32) -> (i32, i32, i32) {
    %c0_i32 = arith.constant 0 : i32
    %c0_i32_0 = arith.constant 0 : i32
    return %arg0, %c0_i32, %arg1 : i32, i32, i32
  }
}

</mosaic_0001>

<llo_original>
// kernel: _lambda_.10
$region0: #{_lambda_.10}
  #allocation0 [shape = 'u32[]', space=smem, size = 0x4, offset = 0x4, fixed_abs, tag = 'smem constant byte address 0x4 - core index']
  #allocation1 [shape = 'u32[144,128]{1,0:T(1,128)}', space=vmem, size = 0x12000, scoped, tag = 'internal scratch']
  %s0 = inlined_call_operand.vmem [shape: bf16[128,128], index: 0, kind: input, shape index: {}]
  %s1 = inlined_call_operand.vmem [shape: bf16[128,128], index: 1, kind: input, shape index: {}]
  %s2 = inlined_call_operand.vmem [shape: f32[128,128], index: 2, kind: output, shape index: {0}]
  %s3 = inlined_call_operand.vmem [shape: f32[1,1,128], index: 3, kind: output, shape index: {1}]
  %s4 = inlined_call_operand.vmem [shape: f32[1,1,128], index: 4, kind: output, shape index: {2}]
  %5 = xla_tuple %s2, %s3, %s4
  %s6 = sld [smem:[#allocation0]]
  $region34: #{_lambda_.10} parent=0
    _
  %s8 = ssub.s32 1, %s6
  %s9 = scalar_select 0, %s8, %s6
  // Predicated region
  $region2: #{_lambda_.10} parent=0 // pred_check
    _
  $region3: #{_lambda_.10} parent=0 // pred_check_branch
    %11 = sbr.rel (0) target = $region5
  $region4: #{_lambda_.10} parent=0 // pred_region
    _
  $region5: #{_lambda_.10} parent=0 // pred_fallthru
    _
  // Predicated region
  $region6: #{_lambda_.10} parent=0 // pred_check
    _
  $region7: #{_lambda_.10} parent=0 // pred_check_branch
    %13 = sbr.rel (0) target = $region9
  $region8: #{_lambda_.10} parent=0 // pred_region
    _
  $region9: #{_lambda_.10} parent=0 // pred_fallthru
    _
  %v15 = vld [vmem:[%s0] sm:$0xf]
  %v16 = vld [vmem:[%s0 + $0x4] sm:$0xf]
  %v17 = vld [vmem:[%s0 + $0x8] sm:$0xf]
  %v18 = vld [vmem:[%s0 + $0xc] sm:$0xf]
  %v19 = vld [vmem:[%s0 + $0x10] sm:$0xf]
  %v20 = vld [vmem:[%s0 + $0x14] sm:$0xf]
  %v21 = vld [vmem:[%s0 + $0x18] sm:$0xf]
  %v22 = vld [vmem:[%s0 + $0x1c] sm:$0xf]
  %v23 = vld [vmem:[%s0 + $0x20] sm:$0xf]
  %v24 = vld [vmem:[%s0 + $0x24] sm:$0xf]
  %v25 = vld [vmem:[%s0 + $0x28] sm:$0xf]
  %v26 = vld [vmem:[%s0 + $0x2c] sm:$0xf]
  %v27 = vld [vmem:[%s0 + $0x30] sm:$0xf]
  %v28 = vld [vmem:[%s0 + $0x34] sm:$0xf]
  %v29 = vld [vmem:[%s0 + $0x38] sm:$0xf]
  %v30 = vld [vmem:[%s0 + $0x3c] sm:$0xf]
  %v31 = vld [vmem:[%s1] sm:$0xf]
  %v32 = vld [vmem:[%s1 + $0x4] sm:$0xf]
  %v33 = vld [vmem:[%s1 + $0x8] sm:$0xf]
  %v34 = vld [vmem:[%s1 + $0xc] sm:$0xf]
  %v35 = vld [vmem:[%s1 + $0x10] sm:$0xf]
  %v36 = vld [vmem:[%s1 + $0x14] sm:$0xf]
  %v37 = vld [vmem:[%s1 + $0x18] sm:$0xf]
  %v38 = vld [vmem:[%s1 + $0x1c] sm:$0xf]
  %v39 = vld [vmem:[%s1 + $0x20] sm:$0xf]
  %v40 = vld [vmem:[%s1 + $0x24] sm:$0xf]
  %v41 = vld [vmem:[%s1 + $0x28] sm:$0xf]
  %v42 = vld [vmem:[%s1 + $0x2c] sm:$0xf]
  %v43 = vld [vmem:[%s1 + $0x30] sm:$0xf]
  %v44 = vld [vmem:[%s1 + $0x34] sm:$0xf]
  %v45 = vld [vmem:[%s1 + $0x38] sm:$0xf]
  %v46 = vld [vmem:[%s1 + $0x3c] sm:$0xf]
  %v63 = vunpack.c.l.b16 %v15
  %v64 = vunpack.c.l.b16 %v16
  %v65 = vunpack.c.l.b16 %v17
  %v66 = vunpack.c.l.b16 %v18
  %v67 = vunpack.c.l.b16 %v19
  %v68 = vunpack.c.l.b16 %v20
  %v69 = vunpack.c.l.b16 %v21
  %v70 = vunpack.c.l.b16 %v22
  %v71 = vunpack.c.l.b16 %v23
  %v72 = vunpack.c.l.b16 %v24
  %v73 = vunpack.c.l.b16 %v25
  %v74 = vunpack.c.l.b16 %v26
  %v75 = vunpack.c.l.b16 %v27
  %v76 = vunpack.c.l.b16 %v28
  %v77 = vunpack.c.l.b16 %v29
  %v78 = vunpack.c.l.b16 %v30
  %v79 = vpack.c.b16 %v64, %v63
  %v80 = vpack.c.b16 %v66, %v65
  %v81 = vpack.c.b16 %v68, %v67
  %v82 = vpack.c.b16 %v70, %v69
  %v83 = vpack.c.b16 %v72, %v71
  %v84 = vpack.c.b16 %v74, %v73
  %v85 = vpack.c.b16 %v76, %v75
  %v86 = vpack.c.b16 %v78, %v77
  %v111 = vunpack.c.l.b16 %v31
  %v112 = vunpack.c.l.b16 %v32
  %v113 = vunpack.c.l.b16 %v33
  %v114 = vunpack.c.l.b16 %v34
  %v115 = vunpack.c.l.b16 %v35
  %v116 = vunpack.c.l.b16 %v36
  %v117 = vunpack.c.l.b16 %v37
  %v118 = vunpack.c.l.b16 %v38
  %v119 = vunpack.c.l.b16 %v39
  %v120 = vunpack.c.l.b16 %v40
  %v121 = vunpack.c.l.b16 %v41
  %v122 = vunpack.c.l.b16 %v42
  %v123 = vunpack.c.l.b16 %v43
  %v124 = vunpack.c.l.b16 %v44
  %v125 = vunpack.c.l.b16 %v45
  %v126 = vunpack.c.l.b16 %v46
  %v127 = vpack.c.b16 %v112, %v111
  %v128 = vpack.c.b16 %v114, %v113
  %v129 = vpack.c.b16 %v116, %v115
  %v130 = vpack.c.b16 %v118, %v117
  %v131 = vpack.c.b16 %v120, %v119
  %v132 = vpack.c.b16 %v122, %v121
  %v133 = vpack.c.b16 %v124, %v123
  %v134 = vpack.c.b16 %v126, %v125
  %143 = vmatprep.subr.bf16.mxu0 0
  %144 = vmatpush1.bf16.msra.mxu0 %v134
  %145 = vmatprep.subr.bf16.mxu0 0
  %146 = vmatpush1.bf16.msra.mxu0 %v133
  %147 = vmatprep.subr.bf16.mxu0 0
  %148 = vmatpush1.bf16.msra.mxu0 %v132
  %149 = vmatprep.subr.bf16.mxu0 0
  %150 = vmatpush1.bf16.msra.mxu0 %v131
  %151 = vmatprep.subr.bf16.mxu0 0
  %152 = vmatpush1.bf16.msra.mxu0 %v130
  %153 = vmatprep.subr.bf16.mxu0 0
  %154 = vmatpush1.bf16.msra.mxu0 %v129
  %155 = vmatprep.subr.bf16.mxu0 0
  %156 = vmatpush1.bf16.msra.mxu0 %v128
  %157 = vmatprep.subr.bf16.mxu0 0
  %158 = vmatpush1.bf16.msra.mxu0 %v127
  %159 = vmatprep.subr.bf16.mxu0 0
  %160 = vmatpush2.bf16.msra.mxu0 0
  %161 = vmatprep.subr.bf16.mxu0 0
  %162 = vmatpush2.bf16.msra.mxu0 0
  %163 = vmatprep.subr.bf16.mxu0 0
  %164 = vmatpush2.bf16.msra.mxu0 0
  %165 = vmatprep.subr.bf16.mxu0 0
  %166 = vmatpush2.bf16.msra.mxu0 0
  %167 = vmatprep.subr.bf16.mxu0 0
  %168 = vmatpush2.bf16.msra.mxu0 0
  %169 = vmatprep.subr.bf16.mxu0 0
  %170 = vmatpush2.bf16.msra.mxu0 0
  %171 = vmatprep.subr.bf16.mxu0 0
  %172 = vmatpush2.bf16.msra.mxu0 0
  %173 = vmatprep.subr.bf16.mxu0 0
  %174 = vmatpush2.bf16.msra.mxu0 0
  %175 = vmatprep.mubr.bf16.mxu0 0
  %176 = vmatmul.mubr.bf16.gmra.mxu0 %v79
  %v177 = vpop.f32.mrf.mxu0
  %v178 = vadd.f32 0.0, %v177
  %v179 = vpop.f32.mrf.mxu0
  %v180 = vpop.f32.mrf.mxu0
  %v181 = vadd.f32 0.0, %v180
  %v182 = vpop.f32.mrf.mxu0
  %183 = vmatprep.mubr.bf16.mxu0 0
  %184 = vmatmul.mubr.bf16.gmra.mxu0 %v80
  %v185 = vpop.f32.mrf.mxu0
  %v186 = vadd.f32 0.0, %v185
  %v187 = vpop.f32.mrf.mxu0
  %v188 = vpop.f32.mrf.mxu0
  %v189 = vadd.f32 0.0, %v188
  %v190 = vpop.f32.mrf.mxu0
  %191 = vmatprep.mubr.bf16.mxu0 0
  %192 = vmatmul.mubr.bf16.gmra.mxu0 %v81
  %v193 = vpop.f32.mrf.mxu0
  %v194 = vadd.f32 0.0, %v193
  %v195 = vpop.f32.mrf.mxu0
  %v196 = vpop.f32.mrf.mxu0
  %v197 = vadd.f32 0.0, %v196
  %v198 = vpop.f32.mrf.mxu0
  %199 = vmatprep.mubr.bf16.mxu0 0
  %200 = vmatmul.mubr.bf16.gmra.mxu0 %v82
  %v201 = vpop.f32.mrf.mxu0
  %v202 = vadd.f32 0.0, %v201
  %v203 = vpop.f32.mrf.mxu0
  %v204 = vpop.f32.mrf.mxu0
  %v205 = vadd.f32 0.0, %v204
  %v206 = vpop.f32.mrf.mxu0
  %207 = vmatprep.mubr.bf16.mxu0 0
  %208 = vmatmul.mubr.bf16.gmra.mxu0 %v83
  %v209 = vpop.f32.mrf.mxu0
  %v210 = vadd.f32 0.0, %v209
  %v211 = vpop.f32.mrf.mxu0
  %v212 = vpop.f32.mrf.mxu0
  %v213 = vadd.f32 0.0, %v212
  %v214 = vpop.f32.mrf.mxu0
  %215 = vmatprep.mubr.bf16.mxu0 0
  %216 = vmatmul.mubr.bf16.gmra.mxu0 %v84
  %v217 = vpop.f32.mrf.mxu0
  %v218 = vadd.f32 0.0, %v217
  %v219 = vpop.f32.mrf.mxu0
  %v220 = vpop.f32.mrf.mxu0
  %v221 = vadd.f32 0.0, %v220
  %v222 = vpop.f32.mrf.mxu0
  %223 = vmatprep.mubr.bf16.mxu0 0
  %224 = vmatmul.mubr.bf16.gmra.mxu0 %v85
  %v225 = vpop.f32.mrf.mxu0
  %v226 = vadd.f32 0.0, %v225
  %v227 = vpop.f32.mrf.mxu0
  %v228 = vpop.f32.mrf.mxu0
  %v229 = vadd.f32 0.0, %v228
  %v230 = vpop.f32.mrf.mxu0
  %231 = vmatprep.mubr.bf16.mxu0 0
  %232 = vmatmul.mubr.bf16.gmra.mxu0 %v86
  %v233 = vpop.f32.mrf.mxu0
  %v234 = vadd.f32 0.0, %v233
  %v235 = vpop.f32.mrf.mxu0
  %v236 = vpop.f32.mrf.mxu0
  %v237 = vadd.f32 0.0, %v236
  %v238 = vpop.f32.mrf.mxu0
  %239 = vdwg.mxu0
  %240 = vst [vmem:[%s2] sm:$0xff] %v178
  %241 = vst [vmem:[%s2 + $0x8] sm:$0xff] %v181
  %242 = vst [vmem:[%s2 + $0x10] sm:$0xff] %v186
  %243 = vst [vmem:[%s2 + $0x18] sm:$0xff] %v189
  %244 = vst [vmem:[%s2 + $0x20] sm:$0xff] %v194
  %245 = vst [vmem:[%s2 + $0x28] sm:$0xff] %v197
  %246 = vst [vmem:[%s2 + $0x30] sm:$0xff] %v202
  %247 = vst [vmem:[%s2 + $0x38] sm:$0xff] %v205
  %248 = vst [vmem:[%s2 + $0x40] sm:$0xff] %v210
  %249 = vst [vmem:[%s2 + $0x48] sm:$0xff] %v213
  %250 = vst [vmem:[%s2 + $0x50] sm:$0xff] %v218
  %251 = vst [vmem:[%s2 + $0x58] sm:$0xff] %v221
  %252 = vst [vmem:[%s2 + $0x60] sm:$0xff] %v226
  %253 = vst [vmem:[%s2 + $0x68] sm:$0xff] %v229
  %254 = vst [vmem:[%s2 + $0x70] sm:$0xff] %v234
  %255 = vst [vmem:[%s2 + $0x78] sm:$0xff] %v237
  %v256 = vadd.f32 %v178, %v181
  %v257 = vadd.f32 %v256, %v186
  %v258 = vadd.f32 %v257, %v189
  %v259 = vadd.f32 %v258, %v194
  %v260 = vadd.f32 %v259, %v197
  %v261 = vadd.f32 %v260, %v202
  %v262 = vadd.f32 %v261, %v205
  %v263 = vadd.f32 %v262, %v210
  %v264 = vadd.f32 %v263, %v213
  %v265 = vadd.f32 %v264, %v218
  %v266 = vadd.f32 %v265, %v221
  %v267 = vadd.f32 %v266, %v226
  %v268 = vadd.f32 %v267, %v229
  %v269 = vadd.f32 %v268, %v234
  %v270 = vadd.f32 %v269, %v237
  %v271 = vrot.slane %v270, 4
  %v272 = vadd.f32 %v270, %v271
  %v273 = vrot.slane %v272, 2
  %v274 = vadd.f32 %v272, %v273
  %v275 = vrot.slane %v274, 1
  %v276 = vadd.f32 %v274, %v275
  %277 = vst [vmem:[%s3] sm:$0x1] %v276
  %v278 = vmul.f32 %v178, %v178
  %v279 = vmul.f32 %v181, %v181
  %v280 = vmul.f32 %v186, %v186
  %v281 = vmul.f32 %v189, %v189
  %v282 = vmul.f32 %v194, %v194
  %v283 = vmul.f32 %v197, %v197
  %v284 = vmul.f32 %v202, %v202
  %v285 = vmul.f32 %v205, %v205
  %v286 = vmul.f32 %v210, %v210
  %v287 = vmul.f32 %v213, %v213
  %v288 = vmul.f32 %v218, %v218
  %v289 = vmul.f32 %v221, %v221
  %v290 = vmul.f32 %v226, %v226
  %v291 = vmul.f32 %v229, %v229
  %v292 = vmul.f32 %v234, %v234
  %v293 = vmul.f32 %v237, %v237
  %v294 = vadd.f32 %v278, %v279
  %v295 = vadd.f32 %v294, %v280
  %v296 = vadd.f32 %v295, %v281
  %v297 = vadd.f32 %v296, %v282
  %v298 = vadd.f32 %v297, %v283
  %v299 = vadd.f32 %v298, %v284
  %v300 = vadd.f32 %v299, %v285
  %v301 = vadd.f32 %v300, %v286
  %v302 = vadd.f32 %v301, %v287
  %v303 = vadd.f32 %v302, %v288
  %v304 = vadd.f32 %v303, %v289
  %v305 = vadd.f32 %v304, %v290
  %v306 = vadd.f32 %v305, %v291
  %v307 = vadd.f32 %v306, %v292
  %v308 = vadd.f32 %v307, %v293
  %v309 = vrot.slane %v308, 4
  %v310 = vadd.f32 %v308, %v309
  %v311 = vrot.slane %v310, 2
  %v312 = vadd.f32 %v310, %v311
  %v313 = vrot.slane %v312, 1
  %v314 = vadd.f32 %v312, %v313
  %315 = vst [vmem:[%s4] sm:$0x1] %v314
  // Predicated region
  $region10: #{_lambda_.10} parent=0 // pred_check
    _
  $region11: #{_lambda_.10} parent=0 // pred_check_branch
    %317 = sbr.rel (0) target = $region13
  $region12: #{_lambda_.10} parent=0 // pred_region
    _
  $region13: #{_lambda_.10} parent=0 // pred_fallthru
    _
  // Predicated region
  $region14: #{_lambda_.10} parent=0 // pred_check
    _
  $region15: #{_lambda_.10} parent=0 // pred_check_branch
    %319 = sbr.rel (0) target = $region17
  $region16: #{_lambda_.10} parent=0 // pred_region
    _
  $region17: #{_lambda_.10} parent=0 // pred_fallthru
    _
  // Predicated region
  $region18: #{_lambda_.10} parent=0 // pred_check
    _
  $region19: #{_lambda_.10} parent=0 // pred_check_branch
    %321 = sbr.rel (0) target = $region21
  $region20: #{_lambda_.10} parent=0 // pred_region
    _
  $region21: #{_lambda_.10} parent=0 // pred_fallthru
    _
  // Predicated region
  $region22: #{_lambda_.10} parent=0 // pred_check
    _
  $region23: #{_lambda_.10} parent=0 // pred_check_branch
    %323 = sbr.rel (0) target = $region25
  $region24: #{_lambda_.10} parent=0 // pred_region
    _
  $region25: #{_lambda_.10} parent=0 // pred_fallthru
    _
  // Predicated region
  $region26: #{_lambda_.10} parent=0 // pred_check
    _
  $region27: #{_lambda_.10} parent=0 // pred_check_branch
    %325 = sbr.rel (0) target = $region29
  $region28: #{_lambda_.10} parent=0 // pred_region
    _
  $region29: #{_lambda_.10} parent=0 // pred_fallthru
    _
  // Predicated region
  $region30: #{_lambda_.10} parent=0 // pred_check
    _
  $region31: #{_lambda_.10} parent=0 // pred_check_branch
    %327 = sbr.rel (0) target = $region33
  $region32: #{_lambda_.10} parent=0 // pred_region
    _
  $region33: #{_lambda_.10} parent=0 // pred_fallthru
    _

// kernel: _lambda_.6
$region0: #{_lambda_.6}
  #allocation0 [shape = 'u32[]', space=smem, size = 0x4, offset = 0x4, fixed_abs, tag = 'smem constant byte address 0x4 - core index']
  #allocation1 [shape = 'u32[144,128]{1,0:T(1,128)}', space=vmem, size = 0x12000, scoped, tag = 'internal scratch']
  %s0 = inlined_call_operand.vmem [shape: bf16[512,128], index: 0, kind: input, shape index: {}]
  %s1 = inlined_call_operand.vmem [shape: bf16[128,128], index: 1, kind: input, shape index: {}]
  %s2 = inlined_call_operand.vmem [shape: f32[512,128], index: 2, kind: output, shape index: {0}]
  %s3 = inlined_call_operand.vmem [shape: f32[1,1,128], index: 3, kind: output, shape index: {1}]
  %s4 = inlined_call_operand.vmem [shape: f32[1,1,128], index: 4, kind: output, shape index: {2}]
  %5 = xla_tuple %s2, %s3, %s4
  %s6 = sld [smem:[#allocation0]]
  $region34: #{_lambda_.6} parent=0
    _
  %s8 = ssub.s32 1, %s6
  %s9 = scalar_select 0, %s8, %s6
  // Predicated region
  $region2: #{_lambda_.6} parent=0 // pred_check
    _
  $region3: #{_lambda_.6} parent=0 // pred_check_branch
    %11 = sbr.rel (0) target = $region5
  $region4: #{_lambda_.6} parent=0 // pred_region
    _
  $region5: #{_lambda_.6} parent=0 // pred_fallthru
    _
  // Predicated region
  $region6: #{_lambda_.6} parent=0 // pred_check
    _
  $region7: #{_lambda_.6} parent=0 // pred_check_branch
    %13 = sbr.rel (0) target = $region9
  $region8: #{_lambda_.6} parent=0 // pred_region
    _
  $region9: #{_lambda_.6} parent=0 // pred_fallthru
    _
  %v15 = vld [vmem:[%s0] sm:$0xf]
  %v16 = vld [vmem:[%s0 + $0x4] sm:$0xf]
  %v17 = vld [vmem:[%s0 + $0x8] sm:$0xf]
  %v18 = vld [vmem:[%s0 + $0xc] sm:$0xf]
  %v19 = vld [vmem:[%s0 + $0x10] sm:$0xf]
  %v20 = vld [vmem:[%s0 + $0x14] sm:$0xf]
  %v21 = vld [vmem:[%s0 + $0x18] sm:$0xf]
  %v22 = vld [vmem:[%s0 + $0x1c] sm:$0xf]
  %v23 = vld [vmem:[%s0 + $0x20] sm:$0xf]
  %v24 = vld [vmem:[%s0 + $0x24] sm:$0xf]
  %v25 = vld [vmem:[%s0 + $0x28] sm:$0xf]
  %v26 = vld [vmem:[%s0 + $0x2c] sm:$0xf]
  %v27 = vld [vmem:[%s0 + $0x30] sm:$0xf]
  %v28 = vld [vmem:[%s0 + $0x34] sm:$0xf]
  %v29 = vld [vmem:[%s0 + $0x38] sm:$0xf]
  %v30 = vld [vmem:[%s0 + $0x3c] sm:$0xf]
  %v31 = vld [vmem:[%s0 + $0x40] sm:$0xf]
  %v32 = vld [vmem:[%s0 + $0x44] sm:$0xf]
  %v33 = vld [vmem:[%s0 + $0x48] sm:$0xf]
  %v34 = vld [vmem:[%s0 + $0x4c] sm:$0xf]
  %v35 = vld [vmem:[%s0 + $0x50] sm:$0xf]
  %v36 = vld [vmem:[%s0 + $0x54] sm:$0xf]
  %v37 = vld [vmem:[%s0 + $0x58] sm:$0xf]
  %v38 = vld [vmem:[%s0 + $0x5c] sm:$0xf]
  %v39 = vld [vmem:[%s0 + $0x60] sm:$0xf]
  %v40 = vld [vmem:[%s0 + $0x64] sm:$0xf]
  %v41 = vld [vmem:[%s0 + $0x68] sm:$0xf]
  %v42 = vld [vmem:[%s0 + $0x6c] sm:$0xf]
  %v43 = vld [vmem:[%s0 + $0x70] sm:$0xf]
  %v44 = vld [vmem:[%s0 + $0x74] sm:$0xf]
  %v45 = vld [vmem:[%s0 + $0x78] sm:$0xf]
  %v46 = vld [vmem:[%s0 + $0x7c] sm:$0xf]
  %v47 = vld [vmem:[%s0 + $0x80] sm:$0xf]
  %v48 = vld [vmem:[%s0 + $0x84] sm:$0xf]
  %v49 = vld [vmem:[%s0 + $0x88] sm:$0xf]
  %v50 = vld [vmem:[%s0 + $0x8c] sm:$0xf]
  %v51 = vld [vmem:[%s0 + $0x90] sm:$0xf]
  %v52 = vld [vmem:[%s0 + $0x94] sm:$0xf]
  %v53 = vld [vmem:[%s0 + $0x98] sm:$0xf]
  %v54 = vld [vmem:[%s0 + $0x9c] sm:$0xf]
  %v55 = vld [vmem:[%s0 + $0xa0] sm:$0xf]
  %v56 = vld [vmem:[%s0 + $0xa4] sm:$0xf]
  %v57 = vld [vmem:[%s0 + $0xa8] sm:$0xf]
  %v58 = vld [vmem:[%s0 + $0xac] sm:$0xf]
  %v59 = vld [vmem:[%s0 + $0xb0] sm:$0xf]
  %v60 = vld [vmem:[%s0 + $0xb4] sm:$0xf]
  %v61 = vld [vmem:[%s0 + $0xb8] sm:$0xf]
  %v62 = vld [vmem:[%s0 + $0xbc] sm:$0xf]
  %v63 = vld [vmem:[%s0 + $0xc0] sm:$0xf]
  %v64 = vld [vmem:[%s0 + $0xc4] sm:$0xf]
  %v65 = vld [vmem:[%s0 + $0xc8] sm:$0xf]
  %v66 = vld [vmem:[%s0 + $0xcc] sm:$0xf]
  %v67 = vld [vmem:[%s0 + $0xd0] sm:$0xf]
  %v68 = vld [vmem:[%s0 + $0xd4] sm:$0xf]
  %v69 = vld [vmem:[%s0 + $0xd8] sm:$0xf]
  %v70 = vld [vmem:[%s0 + $0xdc] sm:$0xf]
  %v71 = vld [vmem:[%s0 + $0xe0] sm:$0xf]
  %v72 = vld [vmem:[%s0 + $0xe4] sm:$0xf]
  %v73 = vld [vmem:[%s0 + $0xe8] sm:$0xf]
  %v74 = vld [vmem:[%s0 + $0xec] sm:$0xf]
  %v75 = vld [vmem:[%s0 + $0xf0] sm:$0xf]
  %v76 = vld [vmem:[%s0 + $0xf4] sm:$0xf]
  %v77 = vld [vmem:[%s0 + $0xf8] sm:$0xf]
  %v78 = vld [vmem:[%s0 + $0xfc] sm:$0xf]
  %v79 = vld [vmem:[%s1] sm:$0xf]
  %v80 = vld [vmem:[%s1 + $0x4] sm:$0xf]
  %v81 = vld [vmem:[%s1 + $0x8] sm:$0xf]
  %v82 = vld [vmem:[%s1 + $0xc] sm:$0xf]
  %v83 = vld [vmem:[%s1 + $0x10] sm:$0xf]
  %v84 = vld [vmem:[%s1 + $0x14] sm:$0xf]
  %v85 = vld [vmem:[%s1 + $0x18] sm:$0xf]
  %v86 = vld [vmem:[%s1 + $0x1c] sm:$0xf]
  %v87 = vld [vmem:[%s1 + $0x20] sm:$0xf]
  %v88 = vld [vmem:[%s1 + $0x24] sm:$0xf]
  %v89 = vld [vmem:[%s1 + $0x28] sm:$0xf]
  %v90 = vld [vmem:[%s1 + $0x2c] sm:$0xf]
  %v91 = vld [vmem:[%s1 + $0x30] sm:$0xf]
  %v92 = vld [vmem:[%s1 + $0x34] sm:$0xf]
  %v93 = vld [vmem:[%s1 + $0x38] sm:$0xf]
  %v94 = vld [vmem:[%s1 + $0x3c] sm:$0xf]
  %v159 = vunpack.c.l.b16 %v15
  %v160 = vunpack.c.l.b16 %v16
  %v161 = vunpack.c.l.b16 %v17
  %v162 = vunpack.c.l.b16 %v18
  %v163 = vunpack.c.l.b16 %v19
  %v164 = vunpack.c.l.b16 %v20
  %v165 = vunpack.c.l.b16 %v21
  %v166 = vunpack.c.l.b16 %v22
  %v167 = vunpack.c.l.b16 %v23
  %v168 = vunpack.c.l.b16 %v24
  %v169 = vunpack.c.l.b16 %v25
  %v170 = vunpack.c.l.b16 %v26
  %v171 = vunpack.c.l.b16 %v27
  %v172 = vunpack.c.l.b16 %v28
  %v173 = vunpack.c.l.b16 %v29
  %v174 = vunpack.c.l.b16 %v30
  %v175 = vunpack.c.l.b16 %v31
  %v176 = vunpack.c.l.b16 %v32
  %v177 = vunpack.c.l.b16 %v33
  %v178 = vunpack.c.l.b16 %v34
  %v179 = vunpack.c.l.b16 %v35
  %v180 = vunpack.c.l.b16 %v36
  %v181 = vunpack.c.l.b16 %v37
  %v182 = vunpack.c.l.b16 %v38
  %v183 = vunpack.c.l.b16 %v39
  %v184 = vunpack.c.l.b16 %v40
  %v185 = vunpack.c.l.b16 %v41
  %v186 = vunpack.c.l.b16 %v42
  %v187 = vunpack.c.l.b16 %v43
  %v188 = vunpack.c.l.b16 %v44
  %v189 = vunpack.c.l.b16 %v45
  %v190 = vunpack.c.l.b16 %v46
  %v191 = vunpack.c.l.b16 %v47
  %v192 = vunpack.c.l.b16 %v48
  %v193 = vunpack.c.l.b16 %v49
  %v194 = vunpack.c.l.b16 %v50
  %v195 = vunpack.c.l.b16 %v51
  %v196 = vunpack.c.l.b16 %v52
  %v197 = vunpack.c.l.b16 %v53
  %v198 = vunpack.c.l.b16 %v54
  %v199 = vunpack.c.l.b16 %v55
  %v200 = vunpack.c.l.b16 %v56
  %v201 = vunpack.c.l.b16 %v57
  %v202 = vunpack.c.l.b16 %v58
  %v203 = vunpack.c.l.b16 %v59
  %v204 = vunpack.c.l.b16 %v60
  %v205 = vunpack.c.l.b16 %v61
  %v206 = vunpack.c.l.b16 %v62
  %v207 = vunpack.c.l.b16 %v63
  %v208 = vunpack.c.l.b16 %v64
  %v209 = vunpack.c.l.b16 %v65
  %v210 = vunpack.c.l.b16 %v66
  %v211 = vunpack.c.l.b16 %v67
  %v212 = vunpack.c.l.b16 %v68
  %v213 = vunpack.c.l.b16 %v69
  %v214 = vunpack.c.l.b16 %v70
  %v215 = vunpack.c.l.b16 %v71
  %v216 = vunpack.c.l.b16 %v72
  %v217 = vunpack.c.l.b16 %v73
  %v218 = vunpack.c.l.b16 %v74
  %v219 = vunpack.c.l.b16 %v75
  %v220 = vunpack.c.l.b16 %v76
  %v221 = vunpack.c.l.b16 %v77
  %v222 = vunpack.c.l.b16 %v78
  %v223 = vpack.c.b16 %v160, %v159
  %v224 = vpack.c.b16 %v162, %v161
  %v225 = vpack.c.b16 %v164, %v163
  %v226 = vpack.c.b16 %v166, %v165
  %v227 = vpack.c.b16 %v168, %v167
  %v228 = vpack.c.b16 %v170, %v169
  %v229 = vpack.c.b16 %v172, %v171
  %v230 = vpack.c.b16 %v174, %v173
  %v231 = vpack.c.b16 %v176, %v175
  %v232 = vpack.c.b16 %v178, %v177
  %v233 = vpack.c.b16 %v180, %v179
  %v234 = vpack.c.b16 %v182, %v181
  %v235 = vpack.c.b16 %v184, %v183
  %v236 = vpack.c.b16 %v186, %v185
  %v237 = vpack.c.b16 %v188, %v187
  %v238 = vpack.c.b16 %v190, %v189
  %v239 = vpack.c.b16 %v192, %v191
  %v240 = vpack.c.b16 %v194, %v193
  %v241 = vpack.c.b16 %v196, %v195
  %v242 = vpack.c.b16 %v198, %v197
  %v243 = vpack.c.b16 %v200, %v199
  %v244 = vpack.c.b16 %v202, %v201
  %v245 = vpack.c.b16 %v204, %v203
  %v246 = vpack.c.b16 %v206, %v205
  %v247 = vpack.c.b16 %v208, %v207
  %v248 = vpack.c.b16 %v210, %v209
  %v249 = vpack.c.b16 %v212, %v211
  %v250 = vpack.c.b16 %v214, %v213
  %v251 = vpack.c.b16 %v216, %v215
  %v252 = vpack.c.b16 %v218, %v217
  %v253 = vpack.c.b16 %v220, %v219
  %v254 = vpack.c.b16 %v222, %v221
  %v303 = vunpack.c.l.b16 %v79
  %v304 = vunpack.c.l.b16 %v80
  %v305 = vunpack.c.l.b16 %v81
  %v306 = vunpack.c.l.b16 %v82
  %v307 = vunpack.c.l.b16 %v83
  %v308 = vunpack.c.l.b16 %v84
  %v309 = vunpack.c.l.b16 %v85
  %v310 = vunpack.c.l.b16 %v86
  %v311 = vunpack.c.l.b16 %v87
  %v312 = vunpack.c.l.b16 %v88
  %v313 = vunpack.c.l.b16 %v89
  %v314 = vunpack.c.l.b16 %v90
  %v315 = vunpack.c.l.b16 %v91
  %v316 = vunpack.c.l.b16 %v92
  %v317 = vunpack.c.l.b16 %v93
  %v318 = vunpack.c.l.b16 %v94
  %v319 = vpack.c.b16 %v304, %v303
  %v320 = vpack.c.b16 %v306, %v305
  %v321 = vpack.c.b16 %v308, %v307
  %v322 = vpack.c.b16 %v310, %v309
  %v323 = vpack.c.b16 %v312, %v311
  %v324 = vpack.c.b16 %v314, %v313
  %v325 = vpack.c.b16 %v316, %v315
  %v326 = vpack.c.b16 %v318, %v317
  %335 = vmatprep.subr.bf16.mxu0 0
  %336 = vmatpush1.bf16.msra.mxu0 %v326
  %337 = vmatprep.subr.bf16.mxu0 0
  %338 = vmatpush1.bf16.msra.mxu0 %v325
  %339 = vmatprep.subr.bf16.mxu0 0
  %340 = vmatpush1.bf16.msra.mxu0 %v324
  %341 = vmatprep.subr.bf16.mxu0 0
  %342 = vmatpush1.bf16.msra.mxu0 %v323
  %343 = vmatprep.subr.bf16.mxu0 0
  %344 = vmatpush1.bf16.msra.mxu0 %v322
  %345 = vmatprep.subr.bf16.mxu0 0
  %346 = vmatpush1.bf16.msra.mxu0 %v321
  %347 = vmatprep.subr.bf16.mxu0 0
  %348 = vmatpush1.bf16.msra.mxu0 %v320
  %349 = vmatprep.subr.bf16.mxu0 0
  %350 = vmatpush1.bf16.msra.mxu0 %v319
  %351 = vmatprep.subr.bf16.mxu0 0
  %352 = vmatpush2.bf16.msra.mxu0 0
  %353 = vmatprep.subr.bf16.mxu0 0
  %354 = vmatpush2.bf16.msra.mxu0 0
  %355 = vmatprep.subr.bf16.mxu0 0
  %356 = vmatpush2.bf16.msra.mxu0 0
  %357 = vmatprep.subr.bf16.mxu0 0
  %358 = vmatpush2.bf16.msra.mxu0 0
  %359 = vmatprep.subr.bf16.mxu0 0
  %360 = vmatpush2.bf16.msra.mxu0 0
  %361 = vmatprep.subr.bf16.mxu0 0
  %362 = vmatpush2.bf16.msra.mxu0 0
  %363 = vmatprep.subr.bf16.mxu0 0
  %364 = vmatpush2.bf16.msra.mxu0 0
  %365 = vmatprep.subr.bf16.mxu0 0
  %366 = vmatpush2.bf16.msra.mxu0 0
  %367 = vmatprep.mubr.bf16.mxu0 0
  %368 = vmatmul.mubr.bf16.gmra.mxu0 %v223
  %v369 = vpop.f32.mrf.mxu0
  %v370 = vadd.f32 0.0, %v369
  %v371 = vpop.f32.mrf.mxu0
  %v372 = vpop.f32.mrf.mxu0
  %v373 = vadd.f32 0.0, %v372
  %v374 = vpop.f32.mrf.mxu0
  %375 = vmatprep.mubr.bf16.mxu0 0
  %376 = vmatmul.mubr.bf16.gmra.mxu0 %v224
  %v377 = vpop.f32.mrf.mxu0
  %v378 = vadd.f32 0.0, %v377
  %v379 = vpop.f32.mrf.mxu0
  %v380 = vpop.f32.mrf.mxu0
  %v381 = vadd.f32 0.0, %v380
  %v382 = vpop.f32.mrf.mxu0
  %383 = vmatprep.mubr.bf16.mxu0 0
  %384 = vmatmul.mubr.bf16.gmra.mxu0 %v225
  %v385 = vpop.f32.mrf.mxu0
  %v386 = vadd.f32 0.0, %v385
  %v387 = vpop.f32.mrf.mxu0
  %v388 = vpop.f32.mrf.mxu0
  %v389 = vadd.f32 0.0, %v388
  %v390 = vpop.f32.mrf.mxu0
  %391 = vmatprep.mubr.bf16.mxu0 0
  %392 = vmatmul.mubr.bf16.gmra.mxu0 %v226
  %v393 = vpop.f32.mrf.mxu0
  %v394 = vadd.f32 0.0, %v393
  %v395 = vpop.f32.mrf.mxu0
  %v396 = vpop.f32.mrf.mxu0
  %v397 = vadd.f32 0.0, %v396
  %v398 = vpop.f32.mrf.mxu0
  %399 = vmatprep.mubr.bf16.mxu0 0
  %400 = vmatmul.mubr.bf16.gmra.mxu0 %v227
  %v401 = vpop.f32.mrf.mxu0
  %v402 = vadd.f32 0.0, %v401
  %v403 = vpop.f32.mrf.mxu0
  %v404 = vpop.f32.mrf.mxu0
  %v405 = vadd.f32 0.0, %v404
  %v406 = vpop.f32.mrf.mxu0
  %407 = vmatprep.mubr.bf16.mxu0 0
  %408 = vmatmul.mubr.bf16.gmra.mxu0 %v228
  %v409 = vpop.f32.mrf.mxu0
  %v410 = vadd.f32 0.0, %v409
  %v411 = vpop.f32.mrf.mxu0
  %v412 = vpop.f32.mrf.mxu0
  %v413 = vadd.f32 0.0, %v412
  %v414 = vpop.f32.mrf.mxu0
  %415 = vmatprep.mubr.bf16.mxu0 0
  %416 = vmatmul.mubr.bf16.gmra.mxu0 %v229
  %v417 = vpop.f32.mrf.mxu0
  %v418 = vadd.f32 0.0, %v417
  %v419 = vpop.f32.mrf.mxu0
  %v420 = vpop.f32.mrf.mxu0
  %v421 = vadd.f32 0.0, %v420
  %v422 = vpop.f32.mrf.mxu0
  %423 = vmatprep.mubr.bf16.mxu0 0
  %424 = vmatmul.mubr.bf16.gmra.mxu0 %v230
  %v425 = vpop.f32.mrf.mxu0
  %v426 = vadd.f32 0.0, %v425
  %v427 = vpop.f32.mrf.mxu0
  %v428 = vpop.f32.mrf.mxu0
  %v429 = vadd.f32 0.0, %v428
  %v430 = vpop.f32.mrf.mxu0
  %431 = vmatprep.mubr.bf16.mxu0 0
  %432 = vmatmul.mubr.bf16.gmra.mxu0 %v231
  %v433 = vpop.f32.mrf.mxu0
  %v434 = vadd.f32 0.0, %v433
  %v435 = vpop.f32.mrf.mxu0
  %v436 = vpop.f32.mrf.mxu0
  %v437 = vadd.f32 0.0, %v436
  %v438 = vpop.f32.mrf.mxu0
  %439 = vmatprep.mubr.bf16.mxu0 0
  %440 = vmatmul.mubr.bf16.gmra.mxu0 %v232
  %v441 = vpop.f32.mrf.mxu0
  %v442 = vadd.f32 0.0, %v441
  %v443 = vpop.f32.mrf.mxu0
  %v444 = vpop.f32.mrf.mxu0
  %v445 = vadd.f32 0.0, %v444
  %v446 = vpop.f32.mrf.mxu0
  %447 = vmatprep.mubr.bf16.mxu0 0
  %448 = vmatmul.mubr.bf16.gmra.mxu0 %v233
  %v449 = vpop.f32.mrf.mxu0
  %v450 = vadd.f32 0.0, %v449
  %v451 = vpop.f32.mrf.mxu0
  %v452 = vpop.f32.mrf.mxu0
  %v453 = vadd.f32 0.0, %v452
  %v454 = vpop.f32.mrf.mxu0
  %455 = vmatprep.mubr.bf16.mxu0 0
  %456 = vmatmul.mubr.bf16.gmra.mxu0 %v234
  %v457 = vpop.f32.mrf.mxu0
  %v458 = vadd.f32 0.0, %v457
  %v459 = vpop.f32.mrf.mxu0
  %v460 = vpop.f32.mrf.mxu0
  %v461 = vadd.f32 0.0, %v460
  %v462 = vpop.f32.mrf.mxu0
  %463 = vmatprep.mubr.bf16.mxu0 0
  %464 = vmatmul.mubr.bf16.gmra.mxu0 %v235
  %v465 = vpop.f32.mrf.mxu0
  %v466 = vadd.f32 0.0, %v465
  %v467 = vpop.f32.mrf.mxu0
  %v468 = vpop.f32.mrf.mxu0
  %v469 = vadd.f32 0.0, %v468
  %v470 = vpop.f32.mrf.mxu0
  %471 = vmatprep.mubr.bf16.mxu0 0
  %472 = vmatmul.mubr.bf16.gmra.mxu0 %v236
  %v473 = vpop.f32.mrf.mxu0
  %v474 = vadd.f32 0.0, %v473
  %v475 = vpop.f32.mrf.mxu0
  %v476 = vpop.f32.mrf.mxu0
  %v477 = vadd.f32 0.0, %v476
  %v478 = vpop.f32.mrf.mxu0
  %479 = vmatprep.mubr.bf16.mxu0 0
  %480 = vmatmul.mubr.bf16.gmra.mxu0 %v237
  %v481 = vpop.f32.mrf.mxu0
  %v482 = vadd.f32 0.0, %v481
  %v483 = vpop.f32.mrf.mxu0
  %v484 = vpop.f32.mrf.mxu0
  %v485 = vadd.f32 0.0, %v484
  %v486 = vpop.f32.mrf.mxu0
  %487 = vmatprep.mubr.bf16.mxu0 0
  %488 = vmatmul.mubr.bf16.gmra.mxu0 %v238
  %v489 = vpop.f32.mrf.mxu0
  %v490 = vadd.f32 0.0, %v489
  %v491 = vpop.f32.mrf.mxu0
  %v492 = vpop.f32.mrf.mxu0
  %v493 = vadd.f32 0.0, %v492
  %v494 = vpop.f32.mrf.mxu0
  %495 = vmatprep.mubr.bf16.mxu0 0
  %496 = vmatmul.mubr.bf16.gmra.mxu0 %v239
  %v497 = vpop.f32.mrf.mxu0
  %v498 = vadd.f32 0.0, %v497
  %v499 = vpop.f32.mrf.mxu0
  %v500 = vpop.f32.mrf.mxu0
  %v501 = vadd.f32 0.0, %v500
  %v502 = vpop.f32.mrf.mxu0
  %503 = vmatprep.mubr.bf16.mxu0 0
  %504 = vmatmul.mubr.bf16.gmra.mxu0 %v240
  %v505 = vpop.f32.mrf.mxu0
  %v506 = vadd.f32 0.0, %v505
  %v507 = vpop.f32.mrf.mxu0
  %v508 = vpop.f32.mrf.mxu0
  %v509 = vadd.f32 0.0, %v508
  %v510 = vpop.f32.mrf.mxu0
  %511 = vmatprep.mubr.bf16.mxu0 0
  %512 = vmatmul.mubr.bf16.gmra.mxu0 %v241
  %v513 = vpop.f32.mrf.mxu0
  %v514 = vadd.f32 0.0, %v513
  %v515 = vpop.f32.mrf.mxu0
  %v516 = vpop.f32.mrf.mxu0
  %v517 = vadd.f32 0.0, %v516
  %v518 = vpop.f32.mrf.mxu0
  %519 = vmatprep.mubr.bf16.mxu0 0
  %520 = vmatmul.mubr.bf16.gmra.mxu0 %v242
  %v521 = vpop.f32.mrf.mxu0
  %v522 = vadd.f32 0.0, %v521
  %v523 = vpop.f32.mrf.mxu0
  %v524 = vpop.f32.mrf.mxu0
  %v525 = vadd.f32 0.0, %v524
  %v526 = vpop.f32.mrf.mxu0
  %527 = vmatprep.mubr.bf16.mxu0 0
  %528 = vmatmul.mubr.bf16.gmra.mxu0 %v243
  %v529 = vpop.f32.mrf.mxu0
  %v530 = vadd.f32 0.0, %v529
  %v531 = vpop.f32.mrf.mxu0
  %v532 = vpop.f32.mrf.mxu0
  %v533 = vadd.f32 0.0, %v532
  %v534 = vpop.f32.mrf.mxu0
  %535 = vmatprep.mubr.bf16.mxu0 0
  %536 = vmatmul.mubr.bf16.gmra.mxu0 %v244
  %v537 = vpop.f32.mrf.mxu0
  %v538 = vadd.f32 0.0, %v537
  %v539 = vpop.f32.mrf.mxu0
  %v540 = vpop.f32.mrf.mxu0
  %v541 = vadd.f32 0.0, %v540
  %v542 = vpop.f32.mrf.mxu0
  %543 = vmatprep.mubr.bf16.mxu0 0
  %544 = vmatmul.mubr.bf16.gmra.mxu0 %v245
  %v545 = vpop.f32.mrf.mxu0
  %v546 = vadd.f32 0.0, %v545
  %v547 = vpop.f32.mrf.mxu0
  %v548 = vpop.f32.mrf.mxu0
  %v549 = vadd.f32 0.0, %v548
  %v550 = vpop.f32.mrf.mxu0
  %551 = vmatprep.mubr.bf16.mxu0 0
  %552 = vmatmul.mubr.bf16.gmra.mxu0 %v246
  %v553 = vpop.f32.mrf.mxu0
  %v554 = vadd.f32 0.0, %v553
  %v555 = vpop.f32.mrf.mxu0
  %v556 = vpop.f32.mrf.mxu0
  %v557 = vadd.f32 0.0, %v556
  %v558 = vpop.f32.mrf.mxu0
  %559 = vmatprep.mubr.bf16.mxu0 0
  %560 = vmatmul.mubr.bf16.gmra.mxu0 %v247
  %v561 = vpop.f32.mrf.mxu0
  %v562 = vadd.f32 0.0, %v561
  %v563 = vpop.f32.mrf.mxu0
  %v564 = vpop.f32.mrf.mxu0
  %v565 = vadd.f32 0.0, %v564
  %v566 = vpop.f32.mrf.mxu0
  %567 = vmatprep.mubr.bf16.mxu0 0
  %568 = vmatmul.mubr.bf16.gmra.mxu0 %v248
  %v569 = vpop.f32.mrf.mxu0
  %v570 = vadd.f32 0.0, %v569
  %v571 = vpop.f32.mrf.mxu0
  %v572 = vpop.f32.mrf.mxu0
  %v573 = vadd.f32 0.0, %v572
  %v574 = vpop.f32.mrf.mxu0
  %575 = vmatprep.mubr.bf16.mxu0 0
  %576 = vmatmul.mubr.bf16.gmra.mxu0 %v249
  %v577 = vpop.f32.mrf.mxu0
  %v578 = vadd.f32 0.0, %v577
  %v579 = vpop.f32.mrf.mxu0
  %v580 = vpop.f32.mrf.mxu0
  %v581 = vadd.f32 0.0, %v580
  %v582 = vpop.f32.mrf.mxu0
  %583 = vmatprep.mubr.bf16.mxu0 0
  %584 = vmatmul.mubr.bf16.gmra.mxu0 %v250
  %v585 = vpop.f32.mrf.mxu0
  %v586 = vadd.f32 0.0, %v585
  %v587 = vpop.f32.mrf.mxu0
  %v588 = vpop.f32.mrf.mxu0
  %v589 = vadd.f32 0.0, %v588
  %v590 = vpop.f32.mrf.mxu0
  %591 = vmatprep.mubr.bf16.mxu0 0
  %592 = vmatmul.mubr.bf16.gmra.mxu0 %v251
  %v593 = vpop.f32.mrf.mxu0
  %v594 = vadd.f32 0.0, %v593
  %v595 = vpop.f32.mrf.mxu0
  %v596 = vpop.f32.mrf.mxu0
  %v597 = vadd.f32 0.0, %v596
  %v598 = vpop.f32.mrf.mxu0
  %599 = vmatprep.mubr.bf16.mxu0 0
  %600 = vmatmul.mubr.bf16.gmra.mxu0 %v252
  %v601 = vpop.f32.mrf.mxu0
  %v602 = vadd.f32 0.0, %v601
  %v603 = vpop.f32.mrf.mxu0
  %v604 = vpop.f32.mrf.mxu0
  %v605 = vadd.f32 0.0, %v604
  %v606 = vpop.f32.mrf.mxu0
  %607 = vmatprep.mubr.bf16.mxu0 0
  %608 = vmatmul.mubr.bf16.gmra.mxu0 %v253
  %v609 = vpop.f32.mrf.mxu0
  %v610 = vadd.f32 0.0, %v609
  %v611 = vpop.f32.mrf.mxu0
  %v612 = vpop.f32.mrf.mxu0
  %v613 = vadd.f32 0.0, %v612
  %v614 = vpop.f32.mrf.mxu0
  %615 = vmatprep.mubr.bf16.mxu0 0
  %616 = vmatmul.mubr.bf16.gmra.mxu0 %v254
  %v617 = vpop.f32.mrf.mxu0
  %v618 = vadd.f32 0.0, %v617
  %v619 = vpop.f32.mrf.mxu0
  %v620 = vpop.f32.mrf.mxu0
  %v621 = vadd.f32 0.0, %v620
  %v622 = vpop.f32.mrf.mxu0
  %623 = vdwg.mxu0
  %624 = vst [vmem:[%s2] sm:$0xff] %v370
  %625 = vst [vmem:[%s2 + $0x8] sm:$0xff] %v373
  %626 = vst [vmem:[%s2 + $0x10] sm:$0xff] %v378
  %627 = vst [vmem:[%s2 + $0x18] sm:$0xff] %v381
  %628 = vst [vmem:[%s2 + $0x20] sm:$0xff] %v386
  %629 = vst [vmem:[%s2 + $0x28] sm:$0xff] %v389
  %630 = vst [vmem:[%s2 + $0x30] sm:$0xff] %v394
  %631 = vst [vmem:[%s2 + $0x38] sm:$0xff] %v397
  %632 = vst [vmem:[%s2 + $0x40] sm:$0xff] %v402
  %633 = vst [vmem:[%s2 + $0x48] sm:$0xff] %v405
  %634 = vst [vmem:[%s2 + $0x50] sm:$0xff] %v410
  %635 = vst [vmem:[%s2 + $0x58] sm:$0xff] %v413
  %636 = vst [vmem:[%s2 + $0x60] sm:$0xff] %v418
  %637 = vst [vmem:[%s2 + $0x68] sm:$0xff] %v421
  %638 = vst [vmem:[%s2 + $0x70] sm:$0xff] %v426
  %639 = vst [vmem:[%s2 + $0x78] sm:$0xff] %v429
  %640 = vst [vmem:[%s2 + $0x80] sm:$0xff] %v434
  %641 = vst [vmem:[%s2 + $0x88] sm:$0xff] %v437
  %642 = vst [vmem:[%s2 + $0x90] sm:$0xff] %v442
  %643 = vst [vmem:[%s2 + $0x98] sm:$0xff] %v445
  %644 = vst [vmem:[%s2 + $0xa0] sm:$0xff] %v450
  %645 = vst [vmem:[%s2 + $0xa8] sm:$0xff] %v453
  %646 = vst [vmem:[%s2 + $0xb0] sm:$0xff] %v458
  %647 = vst [vmem:[%s2 + $0xb8] sm:$0xff] %v461
  %648 = vst [vmem:[%s2 + $0xc0] sm:$0xff] %v466
  %649 = vst [vmem:[%s2 + $0xc8] sm:$0xff] %v469
  %650 = vst [vmem:[%s2 + $0xd0] sm:$0xff] %v474
  %651 = vst [vmem:[%s2 + $0xd8] sm:$0xff] %v477
  %652 = vst [vmem:[%s2 + $0xe0] sm:$0xff] %v482
  %653 = vst [vmem:[%s2 + $0xe8] sm:$0xff] %v485
  %654 = vst [vmem:[%s2 + $0xf0] sm:$0xff] %v490
  %655 = vst [vmem:[%s2 + $0xf8] sm:$0xff] %v493
  %656 = vst [vmem:[%s2 + $0x100] sm:$0xff] %v498
  %657 = vst [vmem:[%s2 + $0x108] sm:$0xff] %v501
  %658 = vst [vmem:[%s2 + $0x110] sm:$0xff] %v506
  %659 = vst [vmem:[%s2 + $0x118] sm:$0xff] %v509
  %660 = vst [vmem:[%s2 + $0x120] sm:$0xff] %v514
  %661 = vst [vmem:[%s2 + $0x128] sm:$0xff] %v517
  %662 = vst [vmem:[%s2 + $0x130] sm:$0xff] %v522
  %663 = vst [vmem:[%s2 + $0x138] sm:$0xff] %v525
  %664 = vst [vmem:[%s2 + $0x140] sm:$0xff] %v530
  %665 = vst [vmem:[%s2 + $0x148] sm:$0xff] %v533
  %666 = vst [vmem:[%s2 + $0x150] sm:$0xff] %v538
  %667 = vst [vmem:[%s2 + $0x158] sm:$0xff] %v541
  %668 = vst [vmem:[%s2 + $0x160] sm:$0xff] %v546
  %669 = vst [vmem:[%s2 + $0x168] sm:$0xff] %v549
  %670 = vst [vmem:[%s2 + $0x170] sm:$0xff] %v554
  %671 = vst [vmem:[%s2 + $0x178] sm:$0xff] %v557
  %672 = vst [vmem:[%s2 + $0x180] sm:$0xff] %v562
  %673 = vst [vmem:[%s2 + $0x188] sm:$0xff] %v565
  %674 = vst [vmem:[%s2 + $0x190] sm:$0xff] %v570
  %675 = vst [vmem:[%s2 + $0x198] sm:$0xff] %v573
  %676 = vst [vmem:[%s2 + $0x1a0] sm:$0xff] %v578
  %677 = vst [vmem:[%s2 + $0x1a8] sm:$0xff] %v581
  %678 = vst [vmem:[%s2 + $0x1b0] sm:$0xff] %v586
  %679 = vst [vmem:[%s2 + $0x1b8] sm:$0xff] %v589
  %680 = vst [vmem:[%s2 + $0x1c0] sm:$0xff] %v594
  %681 = vst [vmem:[%s2 + $0x1c8] sm:$0xff] %v597
  %682 = vst [vmem:[%s2 + $0x1d0] sm:$0xff] %v602
  %683 = vst [vmem:[%s2 + $0x1d8] sm:$0xff] %v605
  %684 = vst [vmem:[%s2 + $0x1e0] sm:$0xff] %v610
  %685 = vst [vmem:[%s2 + $0x1e8] sm:$0xff] %v613
  %686 = vst [vmem:[%s2 + $0x1f0] sm:$0xff] %v618
  %687 = vst [vmem:[%s2 + $0x1f8] sm:$0xff] %v621
  %v688 = vadd.f32 %v370, %v373
  %v689 = vadd.f32 %v688, %v378
  %v690 = vadd.f32 %v689, %v381
  %v691 = vadd.f32 %v690, %v386
  %v692 = vadd.f32 %v691, %v389
  %v693 = vadd.f32 %v692, %v394
  %v694 = vadd.f32 %v693, %v397
  %v695 = vadd.f32 %v694, %v402
  %v696 = vadd.f32 %v695, %v405
  %v697 = vadd.f32 %v696, %v410
  %v698 = vadd.f32 %v697, %v413
  %v699 = vadd.f32 %v698, %v418
  %v700 = vadd.f32 %v699, %v421
  %v701 = vadd.f32 %v700, %v426
  %v702 = vadd.f32 %v701, %v429
  %v703 = vadd.f32 %v702, %v434
  %v704 = vadd.f32 %v703, %v437
  %v705 = vadd.f32 %v704, %v442
  %v706 = vadd.f32 %v705, %v445
  %v707 = vadd.f32 %v706, %v450
  %v708 = vadd.f32 %v707, %v453
  %v709 = vadd.f32 %v708, %v458
  %v710 = vadd.f32 %v709, %v461
  %v711 = vadd.f32 %v710, %v466
  %v712 = vadd.f32 %v711, %v469
  %v713 = vadd.f32 %v712, %v474
  %v714 = vadd.f32 %v713, %v477
  %v715 = vadd.f32 %v714, %v482
  %v716 = vadd.f32 %v715, %v485
  %v717 = vadd.f32 %v716, %v490
  %v718 = vadd.f32 %v717, %v493
  %v719 = vadd.f32 %v718, %v498
  %v720 = vadd.f32 %v719, %v501
  %v721 = vadd.f32 %v720, %v506
  %v722 = vadd.f32 %v721, %v509
  %v723 = vadd.f32 %v722, %v514
  %v724 = vadd.f32 %v723, %v517
  %v725 = vadd.f32 %v724, %v522
  %v726 = vadd.f32 %v725, %v525
  %v727 = vadd.f32 %v726, %v530
  %v728 = vadd.f32 %v727, %v533
  %v729 = vadd.f32 %v728, %v538
  %v730 = vadd.f32 %v729, %v541
  %v731 = vadd.f32 %v730, %v546
  %v732 = vadd.f32 %v731, %v549
  %v733 = vadd.f32 %v732, %v554
  %v734 = vadd.f32 %v733, %v557
  %v735 = vadd.f32 %v734, %v562
  %v736 = vadd.f32 %v735, %v565
  %v737 = vadd.f32 %v736, %v570
  %v738 = vadd.f32 %v737, %v573
  %v739 = vadd.f32 %v738, %v578
  %v740 = vadd.f32 %v739, %v581
  %v741 = vadd.f32 %v740, %v586
  %v742 = vadd.f32 %v741, %v589
  %v743 = vadd.f32 %v742, %v594
  %v744 = vadd.f32 %v743, %v597
  %v745 = vadd.f32 %v744, %v602
  %v746 = vadd.f32 %v745, %v605
  %v747 = vadd.f32 %v746, %v610
  %v748 = vadd.f32 %v747, %v613
  %v749 = vadd.f32 %v748, %v618
  %v750 = vadd.f32 %v749, %v621
  %v751 = vrot.slane %v750, 4
  %v752 = vadd.f32 %v750, %v751
  %v753 = vrot.slane %v752, 2
  %v754 = vadd.f32 %v752, %v753
  %v755 = vrot.slane %v754, 1
  %v756 = vadd.f32 %v754, %v755
  %757 = vst [vmem:[%s3] sm:$0x1] %v756
  %v758 = vmul.f32 %v370, %v370
  %v759 = vmul.f32 %v373, %v373
  %v760 = vmul.f32 %v378, %v378
  %v761 = vmul.f32 %v381, %v381
  %v762 = vmul.f32 %v386, %v386
  %v763 = vmul.f32 %v389, %v389
  %v764 = vmul.f32 %v394, %v394
  %v765 = vmul.f32 %v397, %v397
  %v766 = vmul.f32 %v402, %v402
  %v767 = vmul.f32 %v405, %v405
  %v768 = vmul.f32 %v410, %v410
  %v769 = vmul.f32 %v413, %v413
  %v770 = vmul.f32 %v418, %v418
  %v771 = vmul.f32 %v421, %v421
  %v772 = vmul.f32 %v426, %v426
  %v773 = vmul.f32 %v429, %v429
  %v774 = vmul.f32 %v434, %v434
  %v775 = vmul.f32 %v437, %v437
  %v776 = vmul.f32 %v442, %v442
  %v777 = vmul.f32 %v445, %v445
  %v778 = vmul.f32 %v450, %v450
  %v779 = vmul.f32 %v453, %v453
  %v780 = vmul.f32 %v458, %v458
  %v781 = vmul.f32 %v461, %v461
  %v782 = vmul.f32 %v466, %v466
  %v783 = vmul.f32 %v469, %v469
  %v784 = vmul.f32 %v474, %v474
  %v785 = vmul.f32 %v477, %v477
  %v786 = vmul.f32 %v482, %v482
  %v787 = vmul.f32 %v485, %v485
  %v788 = vmul.f32 %v490, %v490
  %v789 = vmul.f32 %v493, %v493
  %v790 = vmul.f32 %v498, %v498
  %v791 = vmul.f32 %v501, %v501
  %v792 = vmul.f32 %v506, %v506
  %v793 = vmul.f32 %v509, %v509
  %v794 = vmul.f32 %v514, %v514
  %v795 = vmul.f32 %v517, %v517
  %v796 = vmul.f32 %v522, %v522
  %v797 = vmul.f32 %v525, %v525
  %v798 = vmul.f32 %v530, %v530
  %v799 = vmul.f32 %v533, %v533
  %v800 = vmul.f32 %v538, %v538
  %v801 = vmul.f32 %v541, %v541
  %v802 = vmul.f32 %v546, %v546
  %v803 = vmul.f32 %v549, %v549
  %v804 = vmul.f32 %v554, %v554
  %v805 = vmul.f32 %v557, %v557
  %v806 = vmul.f32 %v562, %v562
  %v807 = vmul.f32 %v565, %v565
  %v808 = vmul.f32 %v570, %v570
  %v809 = vmul.f32 %v573, %v573
  %v810 = vmul.f32 %v578, %v578
  %v811 = vmul.f32 %v581, %v581
  %v812 = vmul.f32 %v586, %v586
  %v813 = vmul.f32 %v589, %v589
  %v814 = vmul.f32 %v594, %v594
  %v815 = vmul.f32 %v597, %v597
  %v816 = vmul.f32 %v602, %v602
  %v817 = vmul.f32 %v605, %v605
  %v818 = vmul.f32 %v610, %v610
  %v819 = vmul.f32 %v613, %v613
  %v820 = vmul.f32 %v618, %v618
  %v821 = vmul.f32 %v621, %v621
  %v822 = vadd.f32 %v758, %v759
  %v823 = vadd.f32 %v822, %v760
  %v824 = vadd.f32 %v823, %v761
  %v825 = vadd.f32 %v824, %v762
  %v826 = vadd.f32 %v825, %v763
  %v827 = vadd.f32 %v826, %v764
  %v828 = vadd.f32 %v827, %v765
  %v829 = vadd.f32 %v828, %v766
  %v830 = vadd.f32 %v829, %v767
  %v831 = vadd.f32 %v830, %v768
  %v832 = vadd.f32 %v831, %v769
  %v833 = vadd.f32 %v832, %v770
  %v834 = vadd.f32 %v833, %v771
  %v835 = vadd.f32 %v834, %v772
  %v836 = vadd.f32 %v835, %v773
  %v837 = vadd.f32 %v836, %v774
  %v838 = vadd.f32 %v837, %v775
  %v839 = vadd.f32 %v838, %v776
  %v840 = vadd.f32 %v839, %v777
  %v841 = vadd.f32 %v840, %v778
  %v842 = vadd.f32 %v841, %v779
  %v843 = vadd.f32 %v842, %v780
  %v844 = vadd.f32 %v843, %v781
  %v845 = vadd.f32 %v844, %v782
  %v846 = vadd.f32 %v845, %v783
  %v847 = vadd.f32 %v846, %v784
  %v848 = vadd.f32 %v847, %v785
  %v849 = vadd.f32 %v848, %v786
  %v850 = vadd.f32 %v849, %v787
  %v851 = vadd.f32 %v850, %v788
  %v852 = vadd.f32 %v851, %v789
  %v853 = vadd.f32 %v852, %v790
  %v854 = vadd.f32 %v853, %v791
  %v855 = vadd.f32 %v854, %v792
  %v856 = vadd.f32 %v855, %v793
  %v857 = vadd.f32 %v856, %v794
  %v858 = vadd.f32 %v857, %v795
  %v859 = vadd.f32 %v858, %v796
  %v860 = vadd.f32 %v859, %v797
  %v861 = vadd.f32 %v860, %v798
  %v862 = vadd.f32 %v861, %v799
  %v863 = vadd.f32 %v862, %v800
  %v864 = vadd.f32 %v863, %v801
  %v865 = vadd.f32 %v864, %v802
  %v866 = vadd.f32 %v865, %v803
  %v867 = vadd.f32 %v866, %v804
  %v868 = vadd.f32 %v867, %v805
  %v869 = vadd.f32 %v868, %v806
  %v870 = vadd.f32 %v869, %v807
  %v871 = vadd.f32 %v870, %v808
  %v872 = vadd.f32 %v871, %v809
  %v873 = vadd.f32 %v872, %v810
  %v874 = vadd.f32 %v873, %v811
  %v875 = vadd.f32 %v874, %v812
  %v876 = vadd.f32 %v875, %v813
  %v877 = vadd.f32 %v876, %v814
  %v878 = vadd.f32 %v877, %v815
  %v879 = vadd.f32 %v878, %v816
  %v880 = vadd.f32 %v879, %v817
  %v881 = vadd.f32 %v880, %v818
  %v882 = vadd.f32 %v881, %v819
  %v883 = vadd.f32 %v882, %v820
  %v884 = vadd.f32 %v883, %v821
  %v885 = vrot.slane %v884, 4
  %v886 = vadd.f32 %v884, %v885
  %v887 = vrot.slane %v886, 2
  %v888 = vadd.f32 %v886, %v887
  %v889 = vrot.slane %v888, 1
  %v890 = vadd.f32 %v888, %v889
  %891 = vst [vmem:[%s4] sm:$0x1] %v890
  // Predicated region
  $region10: #{_lambda_.6} parent=0 // pred_check
    _
  $region11: #{_lambda_.6} parent=0 // pred_check_branch
    %893 = sbr.rel (0) target = $region13
  $region12: #{_lambda_.6} parent=0 // pred_region
    _
  $region13: #{_lambda_.6} parent=0 // pred_fallthru
    _
  // Predicated region
  $region14: #{_lambda_.6} parent=0 // pred_check
    _
  $region15: #{_lambda_.6} parent=0 // pred_check_branch
    %895 = sbr.rel (0) target = $region17
  $region16: #{_lambda_.6} parent=0 // pred_region
    _
  $region17: #{_lambda_.6} parent=0 // pred_fallthru
    _
  // Predicated region
  $region18: #{_lambda_.6} parent=0 // pred_check
    _
  $region19: #{_lambda_.6} parent=0 // pred_check_branch
    %897 = sbr.rel (0) target = $region21
  $region20: #{_lambda_.6} parent=0 // pred_region
    _
  $region21: #{_lambda_.6} parent=0 // pred_fallthru
    _
  // Predicated region
  $region22: #{_lambda_.6} parent=0 // pred_check
    _
  $region23: #{_lambda_.6} parent=0 // pred_check_branch
    %899 = sbr.rel (0) target = $region25
  $region24: #{_lambda_.6} parent=0 // pred_region
    _
  $region25: #{_lambda_.6} parent=0 // pred_fallthru
    _
  // Predicated region
  $region26: #{_lambda_.6} parent=0 // pred_check
    _
  $region27: #{_lambda_.6} parent=0 // pred_check_branch
    %901 = sbr.rel (0) target = $region29
  $region28: #{_lambda_.6} parent=0 // pred_region
    _
  $region29: #{_lambda_.6} parent=0 // pred_fallthru
    _
  // Predicated region
  $region30: #{_lambda_.6} parent=0 // pred_check
    _
  $region31: #{_lambda_.6} parent=0 // pred_check_branch
    %903 = sbr.rel (0) target = $region33
  $region32: #{_lambda_.6} parent=0 // pred_region
    _
  $region33: #{_lambda_.6} parent=0 // pred_fallthru
    _

// kernel: _lambda_.7
$region0: #{_lambda_.7}
  #allocation0 [shape = 'u32[]', space=smem, size = 0x4, offset = 0x4, fixed_abs, tag = 'smem constant byte address 0x4 - core index']
  #allocation1 [shape = 'u32[144,128]{1,0:T(1,128)}', space=vmem, size = 0x12000, scoped, tag = 'internal scratch']
  %s0 = inlined_call_operand.vmem [shape: f32[512,128], index: 0, kind: input, shape index: {}]
  %s1 = inlined_call_operand.vmem [shape: f32[1,128], index: 1, kind: input, shape index: {}]
  %s2 = inlined_call_operand.vmem [shape: f32[1,128], index: 2, kind: input, shape index: {}]
  %s3 = inlined_call_operand.vmem [shape: bf16[512,128], index: 3, kind: output, shape index: {}]
  %s4 = sld [smem:[#allocation0]]
  $region22: #{_lambda_.7} parent=0
    _
  %s6 = ssub.s32 1, %s4
  %s7 = scalar_select 0, %s6, %s4
  // Predicated region
  $region2: #{_lambda_.7} parent=0 // pred_check
    _
  $region3: #{_lambda_.7} parent=0 // pred_check_branch
    %9 = sbr.rel (0) target = $region5
  $region4: #{_lambda_.7} parent=0 // pred_region
    _
  $region5: #{_lambda_.7} parent=0 // pred_fallthru
    _
  // Predicated region
  $region6: #{_lambda_.7} parent=0 // pred_check
    _
  $region7: #{_lambda_.7} parent=0 // pred_check_branch
    %11 = sbr.rel (0) target = $region9
  $region8: #{_lambda_.7} parent=0 // pred_region
    _
  $region9: #{_lambda_.7} parent=0 // pred_fallthru
    _
  // Predicated region
  $region10: #{_lambda_.7} parent=0 // pred_check
    _
  $region11: #{_lambda_.7} parent=0 // pred_check_branch
    %13 = sbr.rel (0) target = $region13
  $region12: #{_lambda_.7} parent=0 // pred_region
    _
  $region13: #{_lambda_.7} parent=0 // pred_fallthru
    _
  %v14 = vld [vmem:[%s0] sm:$0xff]
  %v15 = vld [vmem:[%s0 + $0x8] sm:$0xff]
  %v16 = vld [vmem:[%s0 + $0x10] sm:$0xff]
  %v17 = vld [vmem:[%s0 + $0x18] sm:$0xff]
  %v18 = vld [vmem:[%s0 + $0x20] sm:$0xff]
  %v19 = vld [vmem:[%s0 + $0x28] sm:$0xff]
  %v20 = vld [vmem:[%s0 + $0x30] sm:$0xff]
  %v21 = vld [vmem:[%s0 + $0x38] sm:$0xff]
  %v22 = vld [vmem:[%s0 + $0x40] sm:$0xff]
  %v23 = vld [vmem:[%s0 + $0x48] sm:$0xff]
  %v24 = vld [vmem:[%s0 + $0x50] sm:$0xff]
  %v25 = vld [vmem:[%s0 + $0x58] sm:$0xff]
  %v26 = vld [vmem:[%s0 + $0x60] sm:$0xff]
  %v27 = vld [vmem:[%s0 + $0x68] sm:$0xff]
  %v28 = vld [vmem:[%s0 + $0x70] sm:$0xff]
  %v29 = vld [vmem:[%s0 + $0x78] sm:$0xff]
  %v30 = vld [vmem:[%s0 + $0x80] sm:$0xff]
  %v31 = vld [vmem:[%s0 + $0x88] sm:$0xff]
  %v32 = vld [vmem:[%s0 + $0x90] sm:$0xff]
  %v33 = vld [vmem:[%s0 + $0x98] sm:$0xff]
  %v34 = vld [vmem:[%s0 + $0xa0] sm:$0xff]
  %v35 = vld [vmem:[%s0 + $0xa8] sm:$0xff]
  %v36 = vld [vmem:[%s0 + $0xb0] sm:$0xff]
  %v37 = vld [vmem:[%s0 + $0xb8] sm:$0xff]
  %v38 = vld [vmem:[%s0 + $0xc0] sm:$0xff]
  %v39 = vld [vmem:[%s0 + $0xc8] sm:$0xff]
  %v40 = vld [vmem:[%s0 + $0xd0] sm:$0xff]
  %v41 = vld [vmem:[%s0 + $0xd8] sm:$0xff]
  %v42 = vld [vmem:[%s0 + $0xe0] sm:$0xff]
  %v43 = vld [vmem:[%s0 + $0xe8] sm:$0xff]
  %v44 = vld [vmem:[%s0 + $0xf0] sm:$0xff]
  %v45 = vld [vmem:[%s0 + $0xf8] sm:$0xff]
  %v46 = vld [vmem:[%s0 + $0x100] sm:$0xff]
  %v47 = vld [vmem:[%s0 + $0x108] sm:$0xff]
  %v48 = vld [vmem:[%s0 + $0x110] sm:$0xff]
  %v49 = vld [vmem:[%s0 + $0x118] sm:$0xff]
  %v50 = vld [vmem:[%s0 + $0x120] sm:$0xff]
  %v51 = vld [vmem:[%s0 + $0x128] sm:$0xff]
  %v52 = vld [vmem:[%s0 + $0x130] sm:$0xff]
  %v53 = vld [vmem:[%s0 + $0x138] sm:$0xff]
  %v54 = vld [vmem:[%s0 + $0x140] sm:$0xff]
  %v55 = vld [vmem:[%s0 + $0x148] sm:$0xff]
  %v56 = vld [vmem:[%s0 + $0x150] sm:$0xff]
  %v57 = vld [vmem:[%s0 + $0x158] sm:$0xff]
  %v58 = vld [vmem:[%s0 + $0x160] sm:$0xff]
  %v59 = vld [vmem:[%s0 + $0x168] sm:$0xff]
  %v60 = vld [vmem:[%s0 + $0x170] sm:$0xff]
  %v61 = vld [vmem:[%s0 + $0x178] sm:$0xff]
  %v62 = vld [vmem:[%s0 + $0x180] sm:$0xff]
  %v63 = vld [vmem:[%s0 + $0x188] sm:$0xff]
  %v64 = vld [vmem:[%s0 + $0x190] sm:$0xff]
  %v65 = vld [vmem:[%s0 + $0x198] sm:$0xff]
  %v66 = vld [vmem:[%s0 + $0x1a0] sm:$0xff]
  %v67 = vld [vmem:[%s0 + $0x1a8] sm:$0xff]
  %v68 = vld [vmem:[%s0 + $0x1b0] sm:$0xff]
  %v69 = vld [vmem:[%s0 + $0x1b8] sm:$0xff]
  %v70 = vld [vmem:[%s0 + $0x1c0] sm:$0xff]
  %v71 = vld [vmem:[%s0 + $0x1c8] sm:$0xff]
  %v72 = vld [vmem:[%s0 + $0x1d0] sm:$0xff]
  %v73 = vld [vmem:[%s0 + $0x1d8] sm:$0xff]
  %v74 = vld [vmem:[%s0 + $0x1e0] sm:$0xff]
  %v75 = vld [vmem:[%s0 + $0x1e8] sm:$0xff]
  %v76 = vld [vmem:[%s0 + $0x1f0] sm:$0xff]
  %v77 = vld [vmem:[%s0 + $0x1f8] sm:$0xff]
  %v78 = vld [vmem:[%s1] sm:$0x1]
  %v80 = vlaneseq
  %v81 = vshrl.u32 %v80, 7
  %v82 = vsub.s32 0, %v81
  %v83 = vrot.slane %v78, %v82
  %v85 = vmul.f32 %v14, %v83
  %v86 = vmul.f32 %v15, %v83
  %v87 = vmul.f32 %v16, %v83
  %v88 = vmul.f32 %v17, %v83
  %v89 = vmul.f32 %v18, %v83
  %v90 = vmul.f32 %v19, %v83
  %v91 = vmul.f32 %v20, %v83
  %v92 = vmul.f32 %v21, %v83
  %v93 = vmul.f32 %v22, %v83
  %v94 = vmul.f32 %v23, %v83
  %v95 = vmul.f32 %v24, %v83
  %v96 = vmul.f32 %v25, %v83
  %v97 = vmul.f32 %v26, %v83
  %v98 = vmul.f32 %v27, %v83
  %v99 = vmul.f32 %v28, %v83
  %v100 = vmul.f32 %v29, %v83
  %v101 = vmul.f32 %v30, %v83
  %v102 = vmul.f32 %v31, %v83
  %v103 = vmul.f32 %v32, %v83
  %v104 = vmul.f32 %v33, %v83
  %v105 = vmul.f32 %v34, %v83
  %v106 = vmul.f32 %v35, %v83
  %v107 = vmul.f32 %v36, %v83
  %v108 = vmul.f32 %v37, %v83
  %v109 = vmul.f32 %v38, %v83
  %v110 = vmul.f32 %v39, %v83
  %v111 = vmul.f32 %v40, %v83
  %v112 = vmul.f32 %v41, %v83
  %v113 = vmul.f32 %v42, %v83
  %v114 = vmul.f32 %v43, %v83
  %v115 = vmul.f32 %v44, %v83
  %v116 = vmul.f32 %v45, %v83
  %v117 = vmul.f32 %v46, %v83
  %v118 = vmul.f32 %v47, %v83
  %v119 = vmul.f32 %v48, %v83
  %v120 = vmul.f32 %v49, %v83
  %v121 = vmul.f32 %v50, %v83
  %v122 = vmul.f32 %v51, %v83
  %v123 = vmul.f32 %v52, %v83
  %v124 = vmul.f32 %v53, %v83
  %v125 = vmul.f32 %v54, %v83
  %v126 = vmul.f32 %v55, %v83
  %v127 = vmul.f32 %v56, %v83
  %v128 = vmul.f32 %v57, %v83
  %v129 = vmul.f32 %v58, %v83
  %v130 = vmul.f32 %v59, %v83
  %v131 = vmul.f32 %v60, %v83
  %v132 = vmul.f32 %v61, %v83
  %v133 = vmul.f32 %v62, %v83
  %v134 = vmul.f32 %v63, %v83
  %v135 = vmul.f32 %v64, %v83
  %v136 = vmul.f32 %v65, %v83
  %v137 = vmul.f32 %v66, %v83
  %v138 = vmul.f32 %v67, %v83
  %v139 = vmul.f32 %v68, %v83
  %v140 = vmul.f32 %v69, %v83
  %v141 = vmul.f32 %v70, %v83
  %v142 = vmul.f32 %v71, %v83
  %v143 = vmul.f32 %v72, %v83
  %v144 = vmul.f32 %v73, %v83
  %v145 = vmul.f32 %v74, %v83
  %v146 = vmul.f32 %v75, %v83
  %v147 = vmul.f32 %v76, %v83
  %v148 = vmul.f32 %v77, %v83
  %v149 = vld [vmem:[%s2] sm:$0x1]
  %v151 = vlaneseq
  %v152 = vshrl.u32 %v151, 7
  %v153 = vsub.s32 0, %v152
  %v154 = vrot.slane %v149, %v153
  %v156 = vadd.f32 %v85, %v154
  %v157 = vadd.f32 %v86, %v154
  %v158 = vadd.f32 %v87, %v154
  %v159 = vadd.f32 %v88, %v154
  %v160 = vadd.f32 %v89, %v154
  %v161 = vadd.f32 %v90, %v154
  %v162 = vadd.f32 %v91, %v154
  %v163 = vadd.f32 %v92, %v154
  %v164 = vadd.f32 %v93, %v154
  %v165 = vadd.f32 %v94, %v154
  %v166 = vadd.f32 %v95, %v154
  %v167 = vadd.f32 %v96, %v154
  %v168 = vadd.f32 %v97, %v154
  %v169 = vadd.f32 %v98, %v154
  %v170 = vadd.f32 %v99, %v154
  %v171 = vadd.f32 %v100, %v154
  %v172 = vadd.f32 %v101, %v154
  %v173 = vadd.f32 %v102, %v154
  %v174 = vadd.f32 %v103, %v154
  %v175 = vadd.f32 %v104, %v154
  %v176 = vadd.f32 %v105, %v154
  %v177 = vadd.f32 %v106, %v154
  %v178 = vadd.f32 %v107, %v154
  %v179 = vadd.f32 %v108, %v154
  %v180 = vadd.f32 %v109, %v154
  %v181 = vadd.f32 %v110, %v154
  %v182 = vadd.f32 %v111, %v154
  %v183 = vadd.f32 %v112, %v154
  %v184 = vadd.f32 %v113, %v154
  %v185 = vadd.f32 %v114, %v154
  %v186 = vadd.f32 %v115, %v154
  %v187 = vadd.f32 %v116, %v154
  %v188 = vadd.f32 %v117, %v154
  %v189 = vadd.f32 %v118, %v154
  %v190 = vadd.f32 %v119, %v154
  %v191 = vadd.f32 %v120, %v154
  %v192 = vadd.f32 %v121, %v154
  %v193 = vadd.f32 %v122, %v154
  %v194 = vadd.f32 %v123, %v154
  %v195 = vadd.f32 %v124, %v154
  %v196 = vadd.f32 %v125, %v154
  %v197 = vadd.f32 %v126, %v154
  %v198 = vadd.f32 %v127, %v154
  %v199 = vadd.f32 %v128, %v154
  %v200 = vadd.f32 %v129, %v154
  %v201 = vadd.f32 %v130, %v154
  %v202 = vadd.f32 %v131, %v154
  %v203 = vadd.f32 %v132, %v154
  %v204 = vadd.f32 %v133, %v154
  %v205 = vadd.f32 %v134, %v154
  %v206 = vadd.f32 %v135, %v154
  %v207 = vadd.f32 %v136, %v154
  %v208 = vadd.f32 %v137, %v154
  %v209 = vadd.f32 %v138, %v154
  %v210 = vadd.f32 %v139, %v154
  %v211 = vadd.f32 %v140, %v154
  %v212 = vadd.f32 %v141, %v154
  %v213 = vadd.f32 %v142, %v154
  %v214 = vadd.f32 %v143, %v154
  %v215 = vadd.f32 %v144, %v154
  %v216 = vadd.f32 %v145, %v154
  %v217 = vadd.f32 %v146, %v154
  %v218 = vadd.f32 %v147, %v154
  %v219 = vadd.f32 %v148, %v154
  %v220 = vmax.f32 %v156, 0.0
  %v221 = vmax.f32 %v157, 0.0
  %v222 = vmax.f32 %v158, 0.0
  %v223 = vmax.f32 %v159, 0.0
  %v224 = vmax.f32 %v160, 0.0
  %v225 = vmax.f32 %v161, 0.0
  %v226 = vmax.f32 %v162, 0.0
  %v227 = vmax.f32 %v163, 0.0
  %v228 = vmax.f32 %v164, 0.0
  %v229 = vmax.f32 %v165, 0.0
  %v230 = vmax.f32 %v166, 0.0
  %v231 = vmax.f32 %v167, 0.0
  %v232 = vmax.f32 %v168, 0.0
  %v233 = vmax.f32 %v169, 0.0
  %v234 = vmax.f32 %v170, 0.0
  %v235 = vmax.f32 %v171, 0.0
  %v236 = vmax.f32 %v172, 0.0
  %v237 = vmax.f32 %v173, 0.0
  %v238 = vmax.f32 %v174, 0.0
  %v239 = vmax.f32 %v175, 0.0
  %v240 = vmax.f32 %v176, 0.0
  %v241 = vmax.f32 %v177, 0.0
  %v242 = vmax.f32 %v178, 0.0
  %v243 = vmax.f32 %v179, 0.0
  %v244 = vmax.f32 %v180, 0.0
  %v245 = vmax.f32 %v181, 0.0
  %v246 = vmax.f32 %v182, 0.0
  %v247 = vmax.f32 %v183, 0.0
  %v248 = vmax.f32 %v184, 0.0
  %v249 = vmax.f32 %v185, 0.0
  %v250 = vmax.f32 %v186, 0.0
  %v251 = vmax.f32 %v187, 0.0
  %v252 = vmax.f32 %v188, 0.0
  %v253 = vmax.f32 %v189, 0.0
  %v254 = vmax.f32 %v190, 0.0
  %v255 = vmax.f32 %v191, 0.0
  %v256 = vmax.f32 %v192, 0.0
  %v257 = vmax.f32 %v193, 0.0
  %v258 = vmax.f32 %v194, 0.0
  %v259 = vmax.f32 %v195, 0.0
  %v260 = vmax.f32 %v196, 0.0
  %v261 = vmax.f32 %v197, 0.0
  %v262 = vmax.f32 %v198, 0.0
  %v263 = vmax.f32 %v199, 0.0
  %v264 = vmax.f32 %v200, 0.0
  %v265 = vmax.f32 %v201, 0.0
  %v266 = vmax.f32 %v202, 0.0
  %v267 = vmax.f32 %v203, 0.0
  %v268 = vmax.f32 %v204, 0.0
  %v269 = vmax.f32 %v205, 0.0
  %v270 = vmax.f32 %v206, 0.0
  %v271 = vmax.f32 %v207, 0.0
  %v272 = vmax.f32 %v208, 0.0
  %v273 = vmax.f32 %v209, 0.0
  %v274 = vmax.f32 %v210, 0.0
  %v275 = vmax.f32 %v211, 0.0
  %v276 = vmax.f32 %v212, 0.0
  %v277 = vmax.f32 %v213, 0.0
  %v278 = vmax.f32 %v214, 0.0
  %v279 = vmax.f32 %v215, 0.0
  %v280 = vmax.f32 %v216, 0.0
  %v281 = vmax.f32 %v217, 0.0
  %v282 = vmax.f32 %v218, 0.0
  %v283 = vmax.f32 %v219, 0.0
  %v284 = vpack.c.bf16 %v221, %v220
  %v285 = vpack.c.bf16 %v223, %v222
  %v286 = vpack.c.bf16 %v225, %v224
  %v287 = vpack.c.bf16 %v227, %v226
  %v288 = vpack.c.bf16 %v229, %v228
  %v289 = vpack.c.bf16 %v231, %v230
  %v290 = vpack.c.bf16 %v233, %v232
  %v291 = vpack.c.bf16 %v235, %v234
  %v292 = vpack.c.bf16 %v237, %v236
  %v293 = vpack.c.bf16 %v239, %v238
  %v294 = vpack.c.bf16 %v241, %v240
  %v295 = vpack.c.bf16 %v243, %v242
  %v296 = vpack.c.bf16 %v245, %v244
  %v297 = vpack.c.bf16 %v247, %v246
  %v298 = vpack.c.bf16 %v249, %v248
  %v299 = vpack.c.bf16 %v251, %v250
  %v300 = vpack.c.bf16 %v253, %v252
  %v301 = vpack.c.bf16 %v255, %v254
  %v302 = vpack.c.bf16 %v257, %v256
  %v303 = vpack.c.bf16 %v259, %v258
  %v304 = vpack.c.bf16 %v261, %v260
  %v305 = vpack.c.bf16 %v263, %v262
  %v306 = vpack.c.bf16 %v265, %v264
  %v307 = vpack.c.bf16 %v267, %v266
  %v308 = vpack.c.bf16 %v269, %v268
  %v309 = vpack.c.bf16 %v271, %v270
  %v310 = vpack.c.bf16 %v273, %v272
  %v311 = vpack.c.bf16 %v275, %v274
  %v312 = vpack.c.bf16 %v277, %v276
  %v313 = vpack.c.bf16 %v279, %v278
  %v314 = vpack.c.bf16 %v281, %v280
  %v315 = vpack.c.bf16 %v283, %v282
  %v348 = vunpack.c.l.b16 %v284
  %v349 = vunpack.c.h.b16 %v284
  %v350 = vunpack.c.l.b16 %v285
  %v351 = vunpack.c.h.b16 %v285
  %v352 = vunpack.c.l.b16 %v286
  %v353 = vunpack.c.h.b16 %v286
  %v354 = vunpack.c.l.b16 %v287
  %v355 = vunpack.c.h.b16 %v287
  %v356 = vunpack.c.l.b16 %v288
  %v357 = vunpack.c.h.b16 %v288
  %v358 = vunpack.c.l.b16 %v289
  %v359 = vunpack.c.h.b16 %v289
  %v360 = vunpack.c.l.b16 %v290
  %v361 = vunpack.c.h.b16 %v290
  %v362 = vunpack.c.l.b16 %v291
  %v363 = vunpack.c.h.b16 %v291
  %v364 = vunpack.c.l.b16 %v292
  %v365 = vunpack.c.h.b16 %v292
  %v366 = vunpack.c.l.b16 %v293
  %v367 = vunpack.c.h.b16 %v293
  %v368 = vunpack.c.l.b16 %v294
  %v369 = vunpack.c.h.b16 %v294
  %v370 = vunpack.c.l.b16 %v295
  %v371 = vunpack.c.h.b16 %v295
  %v372 = vunpack.c.l.b16 %v296
  %v373 = vunpack.c.h.b16 %v296
  %v374 = vunpack.c.l.b16 %v297
  %v375 = vunpack.c.h.b16 %v297
  %v376 = vunpack.c.l.b16 %v298
  %v377 = vunpack.c.h.b16 %v298
  %v378 = vunpack.c.l.b16 %v299
  %v379 = vunpack.c.h.b16 %v299
  %v380 = vunpack.c.l.b16 %v300
  %v381 = vunpack.c.h.b16 %v300
  %v382 = vunpack.c.l.b16 %v301
  %v383 = vunpack.c.h.b16 %v301
  %v384 = vunpack.c.l.b16 %v302
  %v385 = vunpack.c.h.b16 %v302
  %v386 = vunpack.c.l.b16 %v303
  %v387 = vunpack.c.h.b16 %v303
  %v388 = vunpack.c.l.b16 %v304
  %v389 = vunpack.c.h.b16 %v304
  %v390 = vunpack.c.l.b16 %v305
  %v391 = vunpack.c.h.b16 %v305
  %v392 = vunpack.c.l.b16 %v306
  %v393 = vunpack.c.h.b16 %v306
  %v394 = vunpack.c.l.b16 %v307
  %v395 = vunpack.c.h.b16 %v307
  %v396 = vunpack.c.l.b16 %v308
  %v397 = vunpack.c.h.b16 %v308
  %v398 = vunpack.c.l.b16 %v309
  %v399 = vunpack.c.h.b16 %v309
  %v400 = vunpack.c.l.b16 %v310
  %v401 = vunpack.c.h.b16 %v310
  %v402 = vunpack.c.l.b16 %v311
  %v403 = vunpack.c.h.b16 %v311
  %v404 = vunpack.c.l.b16 %v312
  %v405 = vunpack.c.h.b16 %v312
  %v406 = vunpack.c.l.b16 %v313
  %v407 = vunpack.c.h.b16 %v313
  %v408 = vunpack.c.l.b16 %v314
  %v409 = vunpack.c.h.b16 %v314
  %v410 = vunpack.c.l.b16 %v315
  %v411 = vunpack.c.h.b16 %v315
  %v412 = vpack.c.b16 %v348, %v348
  %v413 = vpack.c.b16 %v349, %v349
  %v414 = vpack.c.b16 %v350, %v350
  %v415 = vpack.c.b16 %v351, %v351
  %v416 = vpack.c.b16 %v352, %v352
  %v417 = vpack.c.b16 %v353, %v353
  %v418 = vpack.c.b16 %v354, %v354
  %v419 = vpack.c.b16 %v355, %v355
  %v420 = vpack.c.b16 %v356, %v356
  %v421 = vpack.c.b16 %v357, %v357
  %v422 = vpack.c.b16 %v358, %v358
  %v423 = vpack.c.b16 %v359, %v359
  %v424 = vpack.c.b16 %v360, %v360
  %v425 = vpack.c.b16 %v361, %v361
  %v426 = vpack.c.b16 %v362, %v362
  %v427 = vpack.c.b16 %v363, %v363
  %v428 = vpack.c.b16 %v364, %v364
  %v429 = vpack.c.b16 %v365, %v365
  %v430 = vpack.c.b16 %v366, %v366
  %v431 = vpack.c.b16 %v367, %v367
  %v432 = vpack.c.b16 %v368, %v368
  %v433 = vpack.c.b16 %v369, %v369
  %v434 = vpack.c.b16 %v370, %v370
  %v435 = vpack.c.b16 %v371, %v371
  %v436 = vpack.c.b16 %v372, %v372
  %v437 = vpack.c.b16 %v373, %v373
  %v438 = vpack.c.b16 %v374, %v374
  %v439 = vpack.c.b16 %v375, %v375
  %v440 = vpack.c.b16 %v376, %v376
  %v441 = vpack.c.b16 %v377, %v377
  %v442 = vpack.c.b16 %v378, %v378
  %v443 = vpack.c.b16 %v379, %v379
  %v444 = vpack.c.b16 %v380, %v380
  %v445 = vpack.c.b16 %v381, %v381
  %v446 = vpack.c.b16 %v382, %v382
  %v447 = vpack.c.b16 %v383, %v383
  %v448 = vpack.c.b16 %v384, %v384
  %v449 = vpack.c.b16 %v385, %v385
  %v450 = vpack.c.b16 %v386, %v386
  %v451 = vpack.c.b16 %v387, %v387
  %v452 = vpack.c.b16 %v388, %v388
  %v453 = vpack.c.b16 %v389, %v389
  %v454 = vpack.c.b16 %v390, %v390
  %v455 = vpack.c.b16 %v391, %v391
  %v456 = vpack.c.b16 %v392, %v392
  %v457 = vpack.c.b16 %v393, %v393
  %v458 = vpack.c.b16 %v394, %v394
  %v459 = vpack.c.b16 %v395, %v395
  %v460 = vpack.c.b16 %v396, %v396
  %v461 = vpack.c.b16 %v397, %v397
  %v462 = vpack.c.b16 %v398, %v398
  %v463 = vpack.c.b16 %v399, %v399
  %v464 = vpack.c.b16 %v400, %v400
  %v465 = vpack.c.b16 %v401, %v401
  %v466 = vpack.c.b16 %v402, %v402
  %v467 = vpack.c.b16 %v403, %v403
  %v468 = vpack.c.b16 %v404, %v404
  %v469 = vpack.c.b16 %v405, %v405
  %v470 = vpack.c.b16 %v406, %v406
  %v471 = vpack.c.b16 %v407, %v407
  %v472 = vpack.c.b16 %v408, %v408
  %v473 = vpack.c.b16 %v409, %v409
  %v474 = vpack.c.b16 %v410, %v410
  %v475 = vpack.c.b16 %v411, %v411
  %540 = vst [vmem:[%s3] sm:$0xf] %v412
  %541 = vst [vmem:[%s3 + $0x4] sm:$0xf] %v413
  %542 = vst [vmem:[%s3 + $0x8] sm:$0xf] %v414
  %543 = vst [vmem:[%s3 + $0xc] sm:$0xf] %v415
  %544 = vst [vmem:[%s3 + $0x10] sm:$0xf] %v416
  %545 = vst [vmem:[%s3 + $0x14] sm:$0xf] %v417
  %546 = vst [vmem:[%s3 + $0x18] sm:$0xf] %v418
  %547 = vst [vmem:[%s3 + $0x1c] sm:$0xf] %v419
  %548 = vst [vmem:[%s3 + $0x20] sm:$0xf] %v420
  %549 = vst [vmem:[%s3 + $0x24] sm:$0xf] %v421
  %550 = vst [vmem:[%s3 + $0x28] sm:$0xf] %v422
  %551 = vst [vmem:[%s3 + $0x2c] sm:$0xf] %v423
  %552 = vst [vmem:[%s3 + $0x30] sm:$0xf] %v424
  %553 = vst [vmem:[%s3 + $0x34] sm:$0xf] %v425
  %554 = vst [vmem:[%s3 + $0x38] sm:$0xf] %v426
  %555 = vst [vmem:[%s3 + $0x3c] sm:$0xf] %v427
  %556 = vst [vmem:[%s3 + $0x40] sm:$0xf] %v428
  %557 = vst [vmem:[%s3 + $0x44] sm:$0xf] %v429
  %558 = vst [vmem:[%s3 + $0x48] sm:$0xf] %v430
  %559 = vst [vmem:[%s3 + $0x4c] sm:$0xf] %v431
  %560 = vst [vmem:[%s3 + $0x50] sm:$0xf] %v432
  %561 = vst [vmem:[%s3 + $0x54] sm:$0xf] %v433
  %562 = vst [vmem:[%s3 + $0x58] sm:$0xf] %v434
  %563 = vst [vmem:[%s3 + $0x5c] sm:$0xf] %v435
  %564 = vst [vmem:[%s3 + $0x60] sm:$0xf] %v436
  %565 = vst [vmem:[%s3 + $0x64] sm:$0xf] %v437
  %566 = vst [vmem:[%s3 + $0x68] sm:$0xf] %v438
  %567 = vst [vmem:[%s3 + $0x6c] sm:$0xf] %v439
  %568 = vst [vmem:[%s3 + $0x70] sm:$0xf] %v440
  %569 = vst [vmem:[%s3 + $0x74] sm:$0xf] %v441
  %570 = vst [vmem:[%s3 + $0x78] sm:$0xf] %v442
  %571 = vst [vmem:[%s3 + $0x7c] sm:$0xf] %v443
  %572 = vst [vmem:[%s3 + $0x80] sm:$0xf] %v444
  %573 = vst [vmem:[%s3 + $0x84] sm:$0xf] %v445
  %574 = vst [vmem:[%s3 + $0x88] sm:$0xf] %v446
  %575 = vst [vmem:[%s3 + $0x8c] sm:$0xf] %v447
  %576 = vst [vmem:[%s3 + $0x90] sm:$0xf] %v448
  %577 = vst [vmem:[%s3 + $0x94] sm:$0xf] %v449
  %578 = vst [vmem:[%s3 + $0x98] sm:$0xf] %v450
  %579 = vst [vmem:[%s3 + $0x9c] sm:$0xf] %v451
  %580 = vst [vmem:[%s3 + $0xa0] sm:$0xf] %v452
  %581 = vst [vmem:[%s3 + $0xa4] sm:$0xf] %v453
  %582 = vst [vmem:[%s3 + $0xa8] sm:$0xf] %v454
  %583 = vst [vmem:[%s3 + $0xac] sm:$0xf] %v455
  %584 = vst [vmem:[%s3 + $0xb0] sm:$0xf] %v456
  %585 = vst [vmem:[%s3 + $0xb4] sm:$0xf] %v457
  %586 = vst [vmem:[%s3 + $0xb8] sm:$0xf] %v458
  %587 = vst [vmem:[%s3 + $0xbc] sm:$0xf] %v459
  %588 = vst [vmem:[%s3 + $0xc0] sm:$0xf] %v460
  %589 = vst [vmem:[%s3 + $0xc4] sm:$0xf] %v461
  %590 = vst [vmem:[%s3 + $0xc8] sm:$0xf] %v462
  %591 = vst [vmem:[%s3 + $0xcc] sm:$0xf] %v463
  %592 = vst [vmem:[%s3 + $0xd0] sm:$0xf] %v464
  %593 = vst [vmem:[%s3 + $0xd4] sm:$0xf] %v465
  %594 = vst [vmem:[%s3 + $0xd8] sm:$0xf] %v466
  %595 = vst [vmem:[%s3 + $0xdc] sm:$0xf] %v467
  %596 = vst [vmem:[%s3 + $0xe0] sm:$0xf] %v468
  %597 = vst [vmem:[%s3 + $0xe4] sm:$0xf] %v469
  %598 = vst [vmem:[%s3 + $0xe8] sm:$0xf] %v470
  %599 = vst [vmem:[%s3 + $0xec] sm:$0xf] %v471
  %600 = vst [vmem:[%s3 + $0xf0] sm:$0xf] %v472
  %601 = vst [vmem:[%s3 + $0xf4] sm:$0xf] %v473
  %602 = vst [vmem:[%s3 + $0xf8] sm:$0xf] %v474
  %603 = vst [vmem:[%s3 + $0xfc] sm:$0xf] %v475
  // Predicated region
  $region14: #{_lambda_.7} parent=0 // pred_check
    _
  $region15: #{_lambda_.7} parent=0 // pred_check_branch
    %605 = sbr.rel (0) target = $region17
  $region16: #{_lambda_.7} parent=0 // pred_region
    _
  $region17: #{_lambda_.7} parent=0 // pred_fallthru
    _
  // Predicated region
  $region18: #{_lambda_.7} parent=0 // pred_check
    _
  $region19: #{_lambda_.7} parent=0 // pred_check_branch
    %607 = sbr.rel (0) target = $region21
  $region20: #{_lambda_.7} parent=0 // pred_region
    _
  $region21: #{_lambda_.7} parent=0 // pred_fallthru
    _

// kernel: _lambda_.11
$region0: #{_lambda_.11}
  #allocation0 [shape = 'u32[]', space=smem, size = 0x4, offset = 0x4, fixed_abs, tag = 'smem constant byte address 0x4 - core index']
  #allocation1 [shape = 'u32[144,128]{1,0:T(1,128)}', space=vmem, size = 0x12000, scoped, tag = 'internal scratch']
  %s0 = inlined_call_operand.vmem [shape: f32[128,128], index: 0, kind: input, shape index: {}]
  %s1 = inlined_call_operand.vmem [shape: f32[1,128], index: 1, kind: input, shape index: {}]
  %s2 = inlined_call_operand.vmem [shape: f32[1,128], index: 2, kind: input, shape index: {}]
  %s3 = inlined_call_operand.vmem [shape: f32[128,128], index: 3, kind: input, shape index: {}]
  %s4 = inlined_call_operand.vmem [shape: f32[1,128], index: 4, kind: input, shape index: {}]
  %s5 = inlined_call_operand.vmem [shape: f32[1,128], index: 5, kind: input, shape index: {}]
  %s6 = inlined_call_operand.vmem [shape: f32[128,128], index: 6, kind: output, shape index: {}]
  %s7 = sld [smem:[#allocation0]]
  $region34: #{_lambda_.11} parent=0
    _
  %s9 = ssub.s32 1, %s7
  %s10 = scalar_select 0, %s9, %s7
  // Predicated region
  $region2: #{_lambda_.11} parent=0 // pred_check
    _
  $region3: #{_lambda_.11} parent=0 // pred_check_branch
    %12 = sbr.rel (0) target = $region5
  $region4: #{_lambda_.11} parent=0 // pred_region
    _
  $region5: #{_lambda_.11} parent=0 // pred_fallthru
    _
  // Predicated region
  $region6: #{_lambda_.11} parent=0 // pred_check
    _
  $region7: #{_lambda_.11} parent=0 // pred_check_branch
    %14 = sbr.rel (0) target = $region9
  $region8: #{_lambda_.11} parent=0 // pred_region
    _
  $region9: #{_lambda_.11} parent=0 // pred_fallthru
    _
  // Predicated region
  $region10: #{_lambda_.11} parent=0 // pred_check
    _
  $region11: #{_lambda_.11} parent=0 // pred_check_branch
    %16 = sbr.rel (0) target = $region13
  $region12: #{_lambda_.11} parent=0 // pred_region
    _
  $region13: #{_lambda_.11} parent=0 // pred_fallthru
    _
  // Predicated region
  $region14: #{_lambda_.11} parent=0 // pred_check
    _
  $region15: #{_lambda_.11} parent=0 // pred_check_branch
    %18 = sbr.rel (0) target = $region17
  $region16: #{_lambda_.11} parent=0 // pred_region
    _
  $region17: #{_lambda_.11} parent=0 // pred_fallthru
    _
  // Predicated region
  $region18: #{_lambda_.11} parent=0 // pred_check
    _
  $region19: #{_lambda_.11} parent=0 // pred_check_branch
    %20 = sbr.rel (0) target = $region21
  $region20: #{_lambda_.11} parent=0 // pred_region
    _
  $region21: #{_lambda_.11} parent=0 // pred_fallthru
    _
  // Predicated region
  $region22: #{_lambda_.11} parent=0 // pred_check
    _
  $region23: #{_lambda_.11} parent=0 // pred_check_branch
    %22 = sbr.rel (0) target = $region25
  $region24: #{_lambda_.11} parent=0 // pred_region
    _
  $region25: #{_lambda_.11} parent=0 // pred_fallthru
    _
  %v23 = vld [vmem:[%s0] sm:$0xff]
  %v24 = vld [vmem:[%s0 + $0x8] sm:$0xff]
  %v25 = vld [vmem:[%s0 + $0x10] sm:$0xff]
  %v26 = vld [vmem:[%s0 + $0x18] sm:$0xff]
  %v27 = vld [vmem:[%s0 + $0x20] sm:$0xff]
  %v28 = vld [vmem:[%s0 + $0x28] sm:$0xff]
  %v29 = vld [vmem:[%s0 + $0x30] sm:$0xff]
  %v30 = vld [vmem:[%s0 + $0x38] sm:$0xff]
  %v31 = vld [vmem:[%s0 + $0x40] sm:$0xff]
  %v32 = vld [vmem:[%s0 + $0x48] sm:$0xff]
  %v33 = vld [vmem:[%s0 + $0x50] sm:$0xff]
  %v34 = vld [vmem:[%s0 + $0x58] sm:$0xff]
  %v35 = vld [vmem:[%s0 + $0x60] sm:$0xff]
  %v36 = vld [vmem:[%s0 + $0x68] sm:$0xff]
  %v37 = vld [vmem:[%s0 + $0x70] sm:$0xff]
  %v38 = vld [vmem:[%s0 + $0x78] sm:$0xff]
  %v39 = vld [vmem:[%s1] sm:$0x1]
  %v41 = vlaneseq
  %v42 = vshrl.u32 %v41, 7
  %v43 = vsub.s32 0, %v42
  %v44 = vrot.slane %v39, %v43
  %v46 = vmul.f32 %v23, %v44
  %v47 = vmul.f32 %v24, %v44
  %v48 = vmul.f32 %v25, %v44
  %v49 = vmul.f32 %v26, %v44
  %v50 = vmul.f32 %v27, %v44
  %v51 = vmul.f32 %v28, %v44
  %v52 = vmul.f32 %v29, %v44
  %v53 = vmul.f32 %v30, %v44
  %v54 = vmul.f32 %v31, %v44
  %v55 = vmul.f32 %v32, %v44
  %v56 = vmul.f32 %v33, %v44
  %v57 = vmul.f32 %v34, %v44
  %v58 = vmul.f32 %v35, %v44
  %v59 = vmul.f32 %v36, %v44
  %v60 = vmul.f32 %v37, %v44
  %v61 = vmul.f32 %v38, %v44
  %v62 = vld [vmem:[%s2] sm:$0x1]
  %v64 = vlaneseq
  %v65 = vshrl.u32 %v64, 7
  %v66 = vsub.s32 0, %v65
  %v67 = vrot.slane %v62, %v66
  %v69 = vadd.f32 %v46, %v67
  %v70 = vadd.f32 %v47, %v67
  %v71 = vadd.f32 %v48, %v67
  %v72 = vadd.f32 %v49, %v67
  %v73 = vadd.f32 %v50, %v67
  %v74 = vadd.f32 %v51, %v67
  %v75 = vadd.f32 %v52, %v67
  %v76 = vadd.f32 %v53, %v67
  %v77 = vadd.f32 %v54, %v67
  %v78 = vadd.f32 %v55, %v67
  %v79 = vadd.f32 %v56, %v67
  %v80 = vadd.f32 %v57, %v67
  %v81 = vadd.f32 %v58, %v67
  %v82 = vadd.f32 %v59, %v67
  %v83 = vadd.f32 %v60, %v67
  %v84 = vadd.f32 %v61, %v67
  %v85 = vld [vmem:[%s3] sm:$0xff]
  %v86 = vld [vmem:[%s3 + $0x8] sm:$0xff]
  %v87 = vld [vmem:[%s3 + $0x10] sm:$0xff]
  %v88 = vld [vmem:[%s3 + $0x18] sm:$0xff]
  %v89 = vld [vmem:[%s3 + $0x20] sm:$0xff]
  %v90 = vld [vmem:[%s3 + $0x28] sm:$0xff]
  %v91 = vld [vmem:[%s3 + $0x30] sm:$0xff]
  %v92 = vld [vmem:[%s3 + $0x38] sm:$0xff]
  %v93 = vld [vmem:[%s3 + $0x40] sm:$0xff]
  %v94 = vld [vmem:[%s3 + $0x48] sm:$0xff]
  %v95 = vld [vmem:[%s3 + $0x50] sm:$0xff]
  %v96 = vld [vmem:[%s3 + $0x58] sm:$0xff]
  %v97 = vld [vmem:[%s3 + $0x60] sm:$0xff]
  %v98 = vld [vmem:[%s3 + $0x68] sm:$0xff]
  %v99 = vld [vmem:[%s3 + $0x70] sm:$0xff]
  %v100 = vld [vmem:[%s3 + $0x78] sm:$0xff]
  %v101 = vld [vmem:[%s4] sm:$0x1]
  %v103 = vlaneseq
  %v104 = vshrl.u32 %v103, 7
  %v105 = vsub.s32 0, %v104
  %v106 = vrot.slane %v101, %v105
  %v108 = vmul.f32 %v85, %v106
  %v109 = vmul.f32 %v86, %v106
  %v110 = vmul.f32 %v87, %v106
  %v111 = vmul.f32 %v88, %v106
  %v112 = vmul.f32 %v89, %v106
  %v113 = vmul.f32 %v90, %v106
  %v114 = vmul.f32 %v91, %v106
  %v115 = vmul.f32 %v92, %v106
  %v116 = vmul.f32 %v93, %v106
  %v117 = vmul.f32 %v94, %v106
  %v118 = vmul.f32 %v95, %v106
  %v119 = vmul.f32 %v96, %v106
  %v120 = vmul.f32 %v97, %v106
  %v121 = vmul.f32 %v98, %v106
  %v122 = vmul.f32 %v99, %v106
  %v123 = vmul.f32 %v100, %v106
  %v124 = vld [vmem:[%s5] sm:$0x1]
  %v126 = vlaneseq
  %v127 = vshrl.u32 %v126, 7
  %v128 = vsub.s32 0, %v127
  %v129 = vrot.slane %v124, %v128
  %v131 = vadd.f32 %v108, %v129
  %v132 = vadd.f32 %v109, %v129
  %v133 = vadd.f32 %v110, %v129
  %v134 = vadd.f32 %v111, %v129
  %v135 = vadd.f32 %v112, %v129
  %v136 = vadd.f32 %v113, %v129
  %v137 = vadd.f32 %v114, %v129
  %v138 = vadd.f32 %v115, %v129
  %v139 = vadd.f32 %v116, %v129
  %v140 = vadd.f32 %v117, %v129
  %v141 = vadd.f32 %v118, %v129
  %v142 = vadd.f32 %v119, %v129
  %v143 = vadd.f32 %v120, %v129
  %v144 = vadd.f32 %v121, %v129
  %v145 = vadd.f32 %v122, %v129
  %v146 = vadd.f32 %v123, %v129
  %v147 = vadd.f32 %v69, %v131
  %v148 = vadd.f32 %v70, %v132
  %v149 = vadd.f32 %v71, %v133
  %v150 = vadd.f32 %v72, %v134
  %v151 = vadd.f32 %v73, %v135
  %v152 = vadd.f32 %v74, %v136
  %v153 = vadd.f32 %v75, %v137
  %v154 = vadd.f32 %v76, %v138
  %v155 = vadd.f32 %v77, %v139
  %v156 = vadd.f32 %v78, %v140
  %v157 = vadd.f32 %v79, %v141
  %v158 = vadd.f32 %v80, %v142
  %v159 = vadd.f32 %v81, %v143
  %v160 = vadd.f32 %v82, %v144
  %v161 = vadd.f32 %v83, %v145
  %v162 = vadd.f32 %v84, %v146
  %v163 = vmax.f32 %v147, 0.0
  %v164 = vmax.f32 %v148, 0.0
  %v165 = vmax.f32 %v149, 0.0
  %v166 = vmax.f32 %v150, 0.0
  %v167 = vmax.f32 %v151, 0.0
  %v168 = vmax.f32 %v152, 0.0
  %v169 = vmax.f32 %v153, 0.0
  %v170 = vmax.f32 %v154, 0.0
  %v171 = vmax.f32 %v155, 0.0
  %v172 = vmax.f32 %v156, 0.0
  %v173 = vmax.f32 %v157, 0.0
  %v174 = vmax.f32 %v158, 0.0
  %v175 = vmax.f32 %v159, 0.0
  %v176 = vmax.f32 %v160, 0.0
  %v177 = vmax.f32 %v161, 0.0
  %v178 = vmax.f32 %v162, 0.0
  %179 = vst [vmem:[%s6] sm:$0xff] %v163
  %180 = vst [vmem:[%s6 + $0x8] sm:$0xff] %v164
  %181 = vst [vmem:[%s6 + $0x10] sm:$0xff] %v165
  %182 = vst [vmem:[%s6 + $0x18] sm:$0xff] %v166
  %183 = vst [vmem:[%s6 + $0x20] sm:$0xff] %v167
  %184 = vst [vmem:[%s6 + $0x28] sm:$0xff] %v168
  %185 = vst [vmem:[%s6 + $0x30] sm:$0xff] %v169
  %186 = vst [vmem:[%s6 + $0x38] sm:$0xff] %v170
  %187 = vst [vmem:[%s6 + $0x40] sm:$0xff] %v171
  %188 = vst [vmem:[%s6 + $0x48] sm:$0xff] %v172
  %189 = vst [vmem:[%s6 + $0x50] sm:$0xff] %v173
  %190 = vst [vmem:[%s6 + $0x58] sm:$0xff] %v174
  %191 = vst [vmem:[%s6 + $0x60] sm:$0xff] %v175
  %192 = vst [vmem:[%s6 + $0x68] sm:$0xff] %v176
  %193 = vst [vmem:[%s6 + $0x70] sm:$0xff] %v177
  %194 = vst [vmem:[%s6 + $0x78] sm:$0xff] %v178
  // Predicated region
  $region26: #{_lambda_.11} parent=0 // pred_check
    _
  $region27: #{_lambda_.11} parent=0 // pred_check_branch
    %196 = sbr.rel (0) target = $region29
  $region28: #{_lambda_.11} parent=0 // pred_region
    _
  $region29: #{_lambda_.11} parent=0 // pred_fallthru
    _
  // Predicated region
  $region30: #{_lambda_.11} parent=0 // pred_check
    _
  $region31: #{_lambda_.11} parent=0 // pred_check_branch
    %198 = sbr.rel (0) target = $region33
  $region32: #{_lambda_.11} parent=0 // pred_region
    _
  $region33: #{_lambda_.11} parent=0 // pred_fallthru
    _

// kernel: _lambda_.9
$region0: #{_lambda_.9}
  #allocation0 [shape = 'u32[]', space=smem, size = 0x4, offset = 0x4, fixed_abs, tag = 'smem constant byte address 0x4 - core index']
  #allocation1 [shape = 'u32[144,128]{1,0:T(1,128)}', space=vmem, size = 0x12000, scoped, tag = 'internal scratch']
  %s0 = inlined_call_operand.vmem [shape: f32[128,128], index: 0, kind: input, shape index: {}]
  %s1 = inlined_call_operand.vmem [shape: f32[1,128], index: 1, kind: input, shape index: {}]
  %s2 = inlined_call_operand.vmem [shape: f32[1,128], index: 2, kind: input, shape index: {}]
  %s3 = inlined_call_operand.vmem [shape: bf16[128,128], index: 3, kind: input, shape index: {}]
  %s4 = inlined_call_operand.vmem [shape: f32[128,128], index: 4, kind: output, shape index: {0}]
  %s5 = inlined_call_operand.vmem [shape: f32[1,1,128], index: 5, kind: output, shape index: {1}]
  %s6 = inlined_call_operand.vmem [shape: f32[1,1,128], index: 6, kind: output, shape index: {2}]
  %7 = xla_tuple %s4, %s5, %s6
  %s8 = sld [smem:[#allocation0]]
  $region42: #{_lambda_.9} parent=0
    _
  %s10 = ssub.s32 1, %s8
  %s11 = scalar_select 0, %s10, %s8
  // Predicated region
  $region2: #{_lambda_.9} parent=0 // pred_check
    _
  $region3: #{_lambda_.9} parent=0 // pred_check_branch
    %13 = sbr.rel (0) target = $region5
  $region4: #{_lambda_.9} parent=0 // pred_region
    _
  $region5: #{_lambda_.9} parent=0 // pred_fallthru
    _
  // Predicated region
  $region6: #{_lambda_.9} parent=0 // pred_check
    _
  $region7: #{_lambda_.9} parent=0 // pred_check_branch
    %15 = sbr.rel (0) target = $region9
  $region8: #{_lambda_.9} parent=0 // pred_region
    _
  $region9: #{_lambda_.9} parent=0 // pred_fallthru
    _
  // Predicated region
  $region10: #{_lambda_.9} parent=0 // pred_check
    _
  $region11: #{_lambda_.9} parent=0 // pred_check_branch
    %17 = sbr.rel (0) target = $region13
  $region12: #{_lambda_.9} parent=0 // pred_region
    _
  $region13: #{_lambda_.9} parent=0 // pred_fallthru
    _
  // Predicated region
  $region14: #{_lambda_.9} parent=0 // pred_check
    _
  $region15: #{_lambda_.9} parent=0 // pred_check_branch
    %19 = sbr.rel (0) target = $region17
  $region16: #{_lambda_.9} parent=0 // pred_region
    _
  $region17: #{_lambda_.9} parent=0 // pred_fallthru
    _
  %v21 = vld [vmem:[%s0] sm:$0xff]
  %v22 = vld [vmem:[%s0 + $0x8] sm:$0xff]
  %v23 = vld [vmem:[%s0 + $0x10] sm:$0xff]
  %v24 = vld [vmem:[%s0 + $0x18] sm:$0xff]
  %v25 = vld [vmem:[%s0 + $0x20] sm:$0xff]
  %v26 = vld [vmem:[%s0 + $0x28] sm:$0xff]
  %v27 = vld [vmem:[%s0 + $0x30] sm:$0xff]
  %v28 = vld [vmem:[%s0 + $0x38] sm:$0xff]
  %v29 = vld [vmem:[%s0 + $0x40] sm:$0xff]
  %v30 = vld [vmem:[%s0 + $0x48] sm:$0xff]
  %v31 = vld [vmem:[%s0 + $0x50] sm:$0xff]
  %v32 = vld [vmem:[%s0 + $0x58] sm:$0xff]
  %v33 = vld [vmem:[%s0 + $0x60] sm:$0xff]
  %v34 = vld [vmem:[%s0 + $0x68] sm:$0xff]
  %v35 = vld [vmem:[%s0 + $0x70] sm:$0xff]
  %v36 = vld [vmem:[%s0 + $0x78] sm:$0xff]
  %v37 = vld [vmem:[%s1] sm:$0x1]
  %v39 = vlaneseq
  %v40 = vshrl.u32 %v39, 7
  %v41 = vsub.s32 0, %v40
  %v42 = vrot.slane %v37, %v41
  %v44 = vmul.f32 %v21, %v42
  %v45 = vmul.f32 %v22, %v42
  %v46 = vmul.f32 %v23, %v42
  %v47 = vmul.f32 %v24, %v42
  %v48 = vmul.f32 %v25, %v42
  %v49 = vmul.f32 %v26, %v42
  %v50 = vmul.f32 %v27, %v42
  %v51 = vmul.f32 %v28, %v42
  %v52 = vmul.f32 %v29, %v42
  %v53 = vmul.f32 %v30, %v42
  %v54 = vmul.f32 %v31, %v42
  %v55 = vmul.f32 %v32, %v42
  %v56 = vmul.f32 %v33, %v42
  %v57 = vmul.f32 %v34, %v42
  %v58 = vmul.f32 %v35, %v42
  %v59 = vmul.f32 %v36, %v42
  %v60 = vld [vmem:[%s2] sm:$0x1]
  %v62 = vlaneseq
  %v63 = vshrl.u32 %v62, 7
  %v64 = vsub.s32 0, %v63
  %v65 = vrot.slane %v60, %v64
  %v67 = vadd.f32 %v44, %v65
  %v68 = vadd.f32 %v45, %v65
  %v69 = vadd.f32 %v46, %v65
  %v70 = vadd.f32 %v47, %v65
  %v71 = vadd.f32 %v48, %v65
  %v72 = vadd.f32 %v49, %v65
  %v73 = vadd.f32 %v50, %v65
  %v74 = vadd.f32 %v51, %v65
  %v75 = vadd.f32 %v52, %v65
  %v76 = vadd.f32 %v53, %v65
  %v77 = vadd.f32 %v54, %v65
  %v78 = vadd.f32 %v55, %v65
  %v79 = vadd.f32 %v56, %v65
  %v80 = vadd.f32 %v57, %v65
  %v81 = vadd.f32 %v58, %v65
  %v82 = vadd.f32 %v59, %v65
  %v83 = vmax.f32 %v67, 0.0
  %v84 = vmax.f32 %v68, 0.0
  %v85 = vmax.f32 %v69, 0.0
  %v86 = vmax.f32 %v70, 0.0
  %v87 = vmax.f32 %v71, 0.0
  %v88 = vmax.f32 %v72, 0.0
  %v89 = vmax.f32 %v73, 0.0
  %v90 = vmax.f32 %v74, 0.0
  %v91 = vmax.f32 %v75, 0.0
  %v92 = vmax.f32 %v76, 0.0
  %v93 = vmax.f32 %v77, 0.0
  %v94 = vmax.f32 %v78, 0.0
  %v95 = vmax.f32 %v79, 0.0
  %v96 = vmax.f32 %v80, 0.0
  %v97 = vmax.f32 %v81, 0.0
  %v98 = vmax.f32 %v82, 0.0
  %v99 = vpack.c.bf16 %v84, %v83
  %v100 = vpack.c.bf16 %v86, %v85
  %v101 = vpack.c.bf16 %v88, %v87
  %v102 = vpack.c.bf16 %v90, %v89
  %v103 = vpack.c.bf16 %v92, %v91
  %v104 = vpack.c.bf16 %v94, %v93
  %v105 = vpack.c.bf16 %v96, %v95
  %v106 = vpack.c.bf16 %v98, %v97
  %v107 = vld [vmem:[%s3] sm:$0xf]
  %v108 = vld [vmem:[%s3 + $0x4] sm:$0xf]
  %v109 = vld [vmem:[%s3 + $0x8] sm:$0xf]
  %v110 = vld [vmem:[%s3 + $0xc] sm:$0xf]
  %v111 = vld [vmem:[%s3 + $0x10] sm:$0xf]
  %v112 = vld [vmem:[%s3 + $0x14] sm:$0xf]
  %v113 = vld [vmem:[%s3 + $0x18] sm:$0xf]
  %v114 = vld [vmem:[%s3 + $0x1c] sm:$0xf]
  %v115 = vld [vmem:[%s3 + $0x20] sm:$0xf]
  %v116 = vld [vmem:[%s3 + $0x24] sm:$0xf]
  %v117 = vld [vmem:[%s3 + $0x28] sm:$0xf]
  %v118 = vld [vmem:[%s3 + $0x2c] sm:$0xf]
  %v119 = vld [vmem:[%s3 + $0x30] sm:$0xf]
  %v120 = vld [vmem:[%s3 + $0x34] sm:$0xf]
  %v121 = vld [vmem:[%s3 + $0x38] sm:$0xf]
  %v122 = vld [vmem:[%s3 + $0x3c] sm:$0xf]
  %v139 = vunpack.c.l.b16 %v107
  %v140 = vunpack.c.l.b16 %v108
  %v141 = vunpack.c.l.b16 %v109
  %v142 = vunpack.c.l.b16 %v110
  %v143 = vunpack.c.l.b16 %v111
  %v144 = vunpack.c.l.b16 %v112
  %v145 = vunpack.c.l.b16 %v113
  %v146 = vunpack.c.l.b16 %v114
  %v147 = vunpack.c.l.b16 %v115
  %v148 = vunpack.c.l.b16 %v116
  %v149 = vunpack.c.l.b16 %v117
  %v150 = vunpack.c.l.b16 %v118
  %v151 = vunpack.c.l.b16 %v119
  %v152 = vunpack.c.l.b16 %v120
  %v153 = vunpack.c.l.b16 %v121
  %v154 = vunpack.c.l.b16 %v122
  %v155 = vpack.c.b16 %v140, %v139
  %v156 = vpack.c.b16 %v142, %v141
  %v157 = vpack.c.b16 %v144, %v143
  %v158 = vpack.c.b16 %v146, %v145
  %v159 = vpack.c.b16 %v148, %v147
  %v160 = vpack.c.b16 %v150, %v149
  %v161 = vpack.c.b16 %v152, %v151
  %v162 = vpack.c.b16 %v154, %v153
  %171 = vmatprep.subr.bf16.mxu0 0
  %172 = vmatpush1.bf16.msra.mxu0 %v162
  %173 = vmatprep.subr.bf16.mxu0 0
  %174 = vmatpush1.bf16.msra.mxu0 %v161
  %175 = vmatprep.subr.bf16.mxu0 0
  %176 = vmatpush1.bf16.msra.mxu0 %v160
  %177 = vmatprep.subr.bf16.mxu0 0
  %178 = vmatpush1.bf16.msra.mxu0 %v159
  %179 = vmatprep.subr.bf16.mxu0 0
  %180 = vmatpush1.bf16.msra.mxu0 %v158
  %181 = vmatprep.subr.bf16.mxu0 0
  %182 = vmatpush1.bf16.msra.mxu0 %v157
  %183 = vmatprep.subr.bf16.mxu0 0
  %184 = vmatpush1.bf16.msra.mxu0 %v156
  %185 = vmatprep.subr.bf16.mxu0 0
  %186 = vmatpush1.bf16.msra.mxu0 %v155
  %187 = vmatprep.subr.bf16.mxu0 0
  %188 = vmatpush2.bf16.msra.mxu0 0
  %189 = vmatprep.subr.bf16.mxu0 0
  %190 = vmatpush2.bf16.msra.mxu0 0
  %191 = vmatprep.subr.bf16.mxu0 0
  %192 = vmatpush2.bf16.msra.mxu0 0
  %193 = vmatprep.subr.bf16.mxu0 0
  %194 = vmatpush2.bf16.msra.mxu0 0
  %195 = vmatprep.subr.bf16.mxu0 0
  %196 = vmatpush2.bf16.msra.mxu0 0
  %197 = vmatprep.subr.bf16.mxu0 0
  %198 = vmatpush2.bf16.msra.mxu0 0
  %199 = vmatprep.subr.bf16.mxu0 0
  %200 = vmatpush2.bf16.msra.mxu0 0
  %201 = vmatprep.subr.bf16.mxu0 0
  %202 = vmatpush2.bf16.msra.mxu0 0
  %203 = vmatprep.mubr.bf16.mxu0 0
  %204 = vmatmul.mubr.bf16.gmra.mxu0 %v99
  %v205 = vpop.f32.mrf.mxu0
  %v206 = vadd.f32 0.0, %v205
  %v207 = vpop.f32.mrf.mxu0
  %v208 = vpop.f32.mrf.mxu0
  %v209 = vadd.f32 0.0, %v208
  %v210 = vpop.f32.mrf.mxu0
  %211 = vmatprep.mubr.bf16.mxu0 0
  %212 = vmatmul.mubr.bf16.gmra.mxu0 %v100
  %v213 = vpop.f32.mrf.mxu0
  %v214 = vadd.f32 0.0, %v213
  %v215 = vpop.f32.mrf.mxu0
  %v216 = vpop.f32.mrf.mxu0
  %v217 = vadd.f32 0.0, %v216
  %v218 = vpop.f32.mrf.mxu0
  %219 = vmatprep.mubr.bf16.mxu0 0
  %220 = vmatmul.mubr.bf16.gmra.mxu0 %v101
  %v221 = vpop.f32.mrf.mxu0
  %v222 = vadd.f32 0.0, %v221
  %v223 = vpop.f32.mrf.mxu0
  %v224 = vpop.f32.mrf.mxu0
  %v225 = vadd.f32 0.0, %v224
  %v226 = vpop.f32.mrf.mxu0
  %227 = vmatprep.mubr.bf16.mxu0 0
  %228 = vmatmul.mubr.bf16.gmra.mxu0 %v102
  %v229 = vpop.f32.mrf.mxu0
  %v230 = vadd.f32 0.0, %v229
  %v231 = vpop.f32.mrf.mxu0
  %v232 = vpop.f32.mrf.mxu0
  %v233 = vadd.f32 0.0, %v232
  %v234 = vpop.f32.mrf.mxu0
  %235 = vmatprep.mubr.bf16.mxu0 0
  %236 = vmatmul.mubr.bf16.gmra.mxu0 %v103
  %v237 = vpop.f32.mrf.mxu0
  %v238 = vadd.f32 0.0, %v237
  %v239 = vpop.f32.mrf.mxu0
  %v240 = vpop.f32.mrf.mxu0
  %v241 = vadd.f32 0.0, %v240
  %v242 = vpop.f32.mrf.mxu0
  %243 = vmatprep.mubr.bf16.mxu0 0
  %244 = vmatmul.mubr.bf16.gmra.mxu0 %v104
  %v245 = vpop.f32.mrf.mxu0
  %v246 = vadd.f32 0.0, %v245
  %v247 = vpop.f32.mrf.mxu0
  %v248 = vpop.f32.mrf.mxu0
  %v249 = vadd.f32 0.0, %v248
  %v250 = vpop.f32.mrf.mxu0
  %251 = vmatprep.mubr.bf16.mxu0 0
  %252 = vmatmul.mubr.bf16.gmra.mxu0 %v105
  %v253 = vpop.f32.mrf.mxu0
  %v254 = vadd.f32 0.0, %v253
  %v255 = vpop.f32.mrf.mxu0
  %v256 = vpop.f32.mrf.mxu0
  %v257 = vadd.f32 0.0, %v256
  %v258 = vpop.f32.mrf.mxu0
  %259 = vmatprep.mubr.bf16.mxu0 0
  %260 = vmatmul.mubr.bf16.gmra.mxu0 %v106
  %v261 = vpop.f32.mrf.mxu0
  %v262 = vadd.f32 0.0, %v261
  %v263 = vpop.f32.mrf.mxu0
  %v264 = vpop.f32.mrf.mxu0
  %v265 = vadd.f32 0.0, %v264
  %v266 = vpop.f32.mrf.mxu0
  %267 = vdwg.mxu0
  %268 = vst [vmem:[%s4] sm:$0xff] %v206
  %269 = vst [vmem:[%s4 + $0x8] sm:$0xff] %v209
  %270 = vst [vmem:[%s4 + $0x10] sm:$0xff] %v214
  %271 = vst [vmem:[%s4 + $0x18] sm:$0xff] %v217
  %272 = vst [vmem:[%s4 + $0x20] sm:$0xff] %v222
  %273 = vst [vmem:[%s4 + $0x28] sm:$0xff] %v225
  %274 = vst [vmem:[%s4 + $0x30] sm:$0xff] %v230
  %275 = vst [vmem:[%s4 + $0x38] sm:$0xff] %v233
  %276 = vst [vmem:[%s4 + $0x40] sm:$0xff] %v238
  %277 = vst [vmem:[%s4 + $0x48] sm:$0xff] %v241
  %278 = vst [vmem:[%s4 + $0x50] sm:$0xff] %v246
  %279 = vst [vmem:[%s4 + $0x58] sm:$0xff] %v249
  %280 = vst [vmem:[%s4 + $0x60] sm:$0xff] %v254
  %281 = vst [vmem:[%s4 + $0x68] sm:$0xff] %v257
  %282 = vst [vmem:[%s4 + $0x70] sm:$0xff] %v262
  %283 = vst [vmem:[%s4 + $0x78] sm:$0xff] %v265
  %v284 = vadd.f32 %v206, %v209
  %v285 = vadd.f32 %v284, %v214
  %v286 = vadd.f32 %v285, %v217
  %v287 = vadd.f32 %v286, %v222
  %v288 = vadd.f32 %v287, %v225
  %v289 = vadd.f32 %v288, %v230
  %v290 = vadd.f32 %v289, %v233
  %v291 = vadd.f32 %v290, %v238
  %v292 = vadd.f32 %v291, %v241
  %v293 = vadd.f32 %v292, %v246
  %v294 = vadd.f32 %v293, %v249
  %v295 = vadd.f32 %v294, %v254
  %v296 = vadd.f32 %v295, %v257
  %v297 = vadd.f32 %v296, %v262
  %v298 = vadd.f32 %v297, %v265
  %v299 = vrot.slane %v298, 4
  %v300 = vadd.f32 %v298, %v299
  %v301 = vrot.slane %v300, 2
  %v302 = vadd.f32 %v300, %v301
  %v303 = vrot.slane %v302, 1
  %v304 = vadd.f32 %v302, %v303
  %305 = vst [vmem:[%s5] sm:$0x1] %v304
  %v306 = vmul.f32 %v206, %v206
  %v307 = vmul.f32 %v209, %v209
  %v308 = vmul.f32 %v214, %v214
  %v309 = vmul.f32 %v217, %v217
  %v310 = vmul.f32 %v222, %v222
  %v311 = vmul.f32 %v225, %v225
  %v312 = vmul.f32 %v230, %v230
  %v313 = vmul.f32 %v233, %v233
  %v314 = vmul.f32 %v238, %v238
  %v315 = vmul.f32 %v241, %v241
  %v316 = vmul.f32 %v246, %v246
  %v317 = vmul.f32 %v249, %v249
  %v318 = vmul.f32 %v254, %v254
  %v319 = vmul.f32 %v257, %v257
  %v320 = vmul.f32 %v262, %v262
  %v321 = vmul.f32 %v265, %v265
  %v322 = vadd.f32 %v306, %v307
  %v323 = vadd.f32 %v322, %v308
  %v324 = vadd.f32 %v323, %v309
  %v325 = vadd.f32 %v324, %v310
  %v326 = vadd.f32 %v325, %v311
  %v327 = vadd.f32 %v326, %v312
  %v328 = vadd.f32 %v327, %v313
  %v329 = vadd.f32 %v328, %v314
  %v330 = vadd.f32 %v329, %v315
  %v331 = vadd.f32 %v330, %v316
  %v332 = vadd.f32 %v331, %v317
  %v333 = vadd.f32 %v332, %v318
  %v334 = vadd.f32 %v333, %v319
  %v335 = vadd.f32 %v334, %v320
  %v336 = vadd.f32 %v335, %v321
  %v337 = vrot.slane %v336, 4
  %v338 = vadd.f32 %v336, %v337
  %v339 = vrot.slane %v338, 2
  %v340 = vadd.f32 %v338, %v339
  %v341 = vrot.slane %v340, 1
  %v342 = vadd.f32 %v340, %v341
  %343 = vst [vmem:[%s6] sm:$0x1] %v342
  // Predicated region
  $region18: #{_lambda_.9} parent=0 // pred_check
    _
  $region19: #{_lambda_.9} parent=0 // pred_check_branch
    %345 = sbr.rel (0) target = $region21
  $region20: #{_lambda_.9} parent=0 // pred_region
    _
  $region21: #{_lambda_.9} parent=0 // pred_fallthru
    _
  // Predicated region
  $region22: #{_lambda_.9} parent=0 // pred_check
    _
  $region23: #{_lambda_.9} parent=0 // pred_check_branch
    %347 = sbr.rel (0) target = $region25
  $region24: #{_lambda_.9} parent=0 // pred_region
    _
  $region25: #{_lambda_.9} parent=0 // pred_fallthru
    _
  // Predicated region
  $region26: #{_lambda_.9} parent=0 // pred_check
    _
  $region27: #{_lambda_.9} parent=0 // pred_check_branch
    %349 = sbr.rel (0) target = $region29
  $region28: #{_lambda_.9} parent=0 // pred_region
    _
  $region29: #{_lambda_.9} parent=0 // pred_fallthru
    _
  // Predicated region
  $region30: #{_lambda_.9} parent=0 // pred_check
    _
  $region31: #{_lambda_.9} parent=0 // pred_check_branch
    %351 = sbr.rel (0) target = $region33
  $region32: #{_lambda_.9} parent=0 // pred_region
    _
  $region33: #{_lambda_.9} parent=0 // pred_fallthru
    _
  // Predicated region
  $region34: #{_lambda_.9} parent=0 // pred_check
    _
  $region35: #{_lambda_.9} parent=0 // pred_check_branch
    %353 = sbr.rel (0) target = $region37
  $region36: #{_lambda_.9} parent=0 // pred_region
    _
  $region37: #{_lambda_.9} parent=0 // pred_fallthru
    _
  // Predicated region
  $region38: #{_lambda_.9} parent=0 // pred_check
    _
  $region39: #{_lambda_.9} parent=0 // pred_check_branch
    %355 = sbr.rel (0) target = $region41
  $region40: #{_lambda_.9} parent=0 // pred_region
    _
  $region41: #{_lambda_.9} parent=0 // pred_fallthru
    _

// kernel: _lambda_.8
$region0: #{_lambda_.8}
  #allocation0 [shape = 'u32[]', space=smem, size = 0x4, offset = 0x4, fixed_abs, tag = 'smem constant byte address 0x4 - core index']
  #allocation1 [shape = 'u32[144,128]{1,0:T(1,128)}', space=vmem, size = 0x12000, scoped, tag = 'internal scratch']
  %s0 = inlined_call_operand.vmem [shape: bf16[8,9,9,128], index: 0, kind: input, shape index: {}]
  %s1 = inlined_call_operand.vmem [shape: bf16[9,128,128], index: 1, kind: input, shape index: {}]
  %s2 = inlined_call_operand.vmem [shape: f32[2,64,128], index: 2, kind: output, shape index: {0}]
  %s3 = inlined_call_operand.vmem [shape: f32[2,1,128], index: 3, kind: output, shape index: {1}]
  %s4 = inlined_call_operand.vmem [shape: f32[2,1,128], index: 4, kind: output, shape index: {2}]
  %5 = xla_tuple %s2, %s3, %s4
  %s6 = sld [smem:[#allocation0]]
  $region57: #{_lambda_.8} parent=0
    _
  %s8 = ssub.s32 1, %s6
  %s9 = scalar_select 0, %s8, %s6
  loop: start=0, step=1, limit=4
  $region2: #{_lambda_.8} parent=0 // loop_pre_header
    _
  $region3: #{_lambda_.8} parent=0 // loop_header
    %s11 = sphi 0, %s15
    %p12 = scmp.ge.s32.totalorder %s11, 4
    %s21 = sphi 0, %s23
    %s24 = sphi 0, %s21
    %s25 = sphi 0, %s24
    %s41 = sphi 0, %s25
    %s45 = sphi 0, %s45
    %s47 = sphi 0, %s45
    %s48 = sphi 0, %s47
    %s62 = sphi 0, %s48
    %s68 = sphi 0, %s70
    %s71 = sphi 0, %s68
    %s72 = sphi 0, %s71
    %s88 = sphi 0, %s72
    %s94 = sphi 0, %s96
    %s97 = sphi 0, %s94
    %s98 = sphi 0, %s97
    %s114 = sphi 0, %s98
    %s120 = sphi 0, %s122
    %s123 = sphi 0, %s120
    %s124 = sphi 0, %s123
    %s140 = sphi 0, %s124
  $region4: #{_lambda_.8} parent=0 // loop_header_branch
    %14 = sbr.rel (%p12) target = $region8
  $region5: #{_lambda_.8} parent=0 // loop_body
    %s16 = ssub.s32 %s11, 1
    %s17 = ssub.s32 %s11, 2
    %s18 = sadd.s32 %s11, 1
    %s19 = ssub.s32 %s11, %s18
    %p20 = scmp.eq.s32.totalorder %s19, 0
    %s22 = sadd.s32 %s21, 1
    %s23 = scalar_select %p20, %s21, %s22
    %p26 = pneg %p20
    %p27 = scmp.eq.s32.totalorder %s11, 1
    %p28 = por %p26, %p27
    %p29 = scmp.ne.s32.totalorder %s21, %s24
    %p30 = scmp.eq.s32.totalorder %s11, 0
    %p31 = por %p29, %p30
    %p32 = scmp.ne.s32.totalorder %s21, %s24
    %p33 = scmp.eq.s32.totalorder %s16, 1
    %p34 = por %p32, %p33
    %p35 = scmp.ne.s32.totalorder %s24, %s25
    %p36 = scmp.eq.s32.totalorder %s16, 0
    %p37 = por %p35, %p36
    %p38 = scmp.ne.s32.totalorder %s24, %s25
    %p39 = scmp.eq.s32.totalorder %s17, 1
    %p40 = por %p38, %p39
    %p42 = scmp.ne.s32.totalorder %s25, %s41
    %p43 = scmp.eq.s32.totalorder %s17, 0
    %p44 = por %p42, %p43
    %s46 = sadd.s32 %s45, 1
    %p49 = scmp.eq.s32.totalorder %s11, 1
    %p50 = scmp.ne.s32.totalorder %s45, %s47
    %p51 = scmp.eq.s32.totalorder %s11, 0
    %p52 = por %p50, %p51
    %p53 = scmp.ne.s32.totalorder %s45, %s47
    %p54 = scmp.eq.s32.totalorder %s16, 1
    %p55 = por %p53, %p54
    %p56 = scmp.ne.s32.totalorder %s47, %s48
    %p57 = scmp.eq.s32.totalorder %s16, 0
    %p58 = por %p56, %p57
    %p59 = scmp.ne.s32.totalorder %s47, %s48
    %p60 = scmp.eq.s32.totalorder %s17, 1
    %p61 = por %p59, %p60
    %p63 = scmp.ne.s32.totalorder %s48, %s62
    %p64 = scmp.eq.s32.totalorder %s17, 0
    %p65 = por %p63, %p64
    %s66 = ssub.s32 %s11, %s18
    %p67 = scmp.eq.s32.totalorder %s66, 0
    %s69 = sadd.s32 %s68, 1
    %s70 = scalar_select %p67, %s68, %s69
    %p73 = pneg %p67
    %p74 = scmp.eq.s32.totalorder %s11, 1
    %p75 = por %p73, %p74
    %p76 = scmp.ne.s32.totalorder %s68, %s71
    %p77 = scmp.eq.s32.totalorder %s11, 0
    %p78 = por %p76, %p77
    %p79 = scmp.ne.s32.totalorder %s68, %s71
    %p80 = scmp.eq.s32.totalorder %s16, 1
    %p81 = por %p79, %p80
    %p82 = scmp.ne.s32.totalorder %s71, %s72
    %p83 = scmp.eq.s32.totalorder %s16, 0
    %p84 = por %p82, %p83
    %p85 = scmp.ne.s32.totalorder %s71, %s72
    %p86 = scmp.eq.s32.totalorder %s17, 1
    %p87 = por %p85, %p86
    %p89 = scmp.ne.s32.totalorder %s72, %s88
    %p90 = scmp.eq.s32.totalorder %s17, 0
    %p91 = por %p89, %p90
    %s92 = ssub.s32 %s11, %s18
    %p93 = scmp.eq.s32.totalorder %s92, 0
    %s95 = sadd.s32 %s94, 1
    %s96 = scalar_select %p93, %s94, %s95
    %p99 = pneg %p93
    %p100 = scmp.eq.s32.totalorder %s11, 1
    %p101 = por %p99, %p100
    %p102 = scmp.ne.s32.totalorder %s94, %s97
    %p103 = scmp.eq.s32.totalorder %s11, 0
    %p104 = por %p102, %p103
    %p105 = scmp.ne.s32.totalorder %s94, %s97
    %p106 = scmp.eq.s32.totalorder %s16, 1
    %p107 = por %p105, %p106
    %p108 = scmp.ne.s32.totalorder %s97, %s98
    %p109 = scmp.eq.s32.totalorder %s16, 0
    %p110 = por %p108, %p109
    %p111 = scmp.ne.s32.totalorder %s97, %s98
    %p112 = scmp.eq.s32.totalorder %s17, 1
    %p113 = por %p111, %p112
    %p115 = scmp.ne.s32.totalorder %s98, %s114
    %p116 = scmp.eq.s32.totalorder %s17, 0
    %p117 = por %p115, %p116
    %s118 = ssub.s32 %s11, %s18
    %p119 = scmp.eq.s32.totalorder %s118, 0
    %s121 = sadd.s32 %s120, 1
    %s122 = scalar_select %p119, %s120, %s121
    %p125 = pneg %p119
    %p126 = scmp.eq.s32.totalorder %s11, 1
    %p127 = por %p125, %p126
    %p128 = scmp.ne.s32.totalorder %s120, %s123
    %p129 = scmp.eq.s32.totalorder %s11, 0
    %p130 = por %p128, %p129
    %p131 = scmp.ne.s32.totalorder %s120, %s123
    %p132 = scmp.eq.s32.totalorder %s16, 1
    %p133 = por %p131, %p132
    %p134 = scmp.ne.s32.totalorder %s123, %s124
    %p135 = scmp.eq.s32.totalorder %s16, 0
    %p136 = por %p134, %p135
    %p137 = scmp.ne.s32.totalorder %s123, %s124
    %p138 = scmp.eq.s32.totalorder %s17, 1
    %p139 = por %p137, %p138
    %p141 = scmp.ne.s32.totalorder %s124, %s140
    %p142 = scmp.eq.s32.totalorder %s17, 0
    %p143 = por %p141, %p142
    %p144 = scmp.le.s32.totalorder 1, %s11
    %p145 = scmp.lt.s32.totalorder %s11, 3
    %p146 = pnand %p144, %p145
    %p147 = pneg %p146
    // Predicated region
    $region9: #{_lambda_.8} parent=5 // pred_check
      _
    $region10: #{_lambda_.8} parent=5 // pred_check_branch
      %149 = sbr.rel (%p146) target = $region12
    $region11: #{_lambda_.8} parent=5 // pred_region
      %s150 = ssub.s32 %s11, 1
      // Predicated region
      $region13: #{_lambda_.8} parent=11 // pred_check
        %p151 = pneg %p58
      $region14: #{_lambda_.8} parent=11 // pred_check_branch
        %153 = sbr.rel (%p151) target = $region16
      $region15: #{_lambda_.8} parent=11 // pred_region
        _
      $region16: #{_lambda_.8} parent=11 // pred_fallthru
        _
    $region12: #{_lambda_.8} parent=5 // pred_fallthru
      _
    %p154 = scmp.lt.s32.totalorder %s11, 2
    // Predicated region
    $region17: #{_lambda_.8} parent=5 // pred_check
      %p155 = pneg %p154
    $region18: #{_lambda_.8} parent=5 // pred_check_branch
      %157 = sbr.rel (%p155) target = $region20
    $region19: #{_lambda_.8} parent=5 // pred_region
      // Predicated region
      $region21: #{_lambda_.8} parent=19 // pred_check
        %p158 = pneg %p31
      $region22: #{_lambda_.8} parent=19 // pred_check_branch
        %160 = sbr.rel (%p158) target = $region24
      $region23: #{_lambda_.8} parent=19 // pred_region
        %s161 = smul.u32 4, %s11
        %p162 = scmp.lt.s32.totalorder %s161, 7
        %s163 = scalar_select %p162, %s161, 7
        %s164 = smul.addr %s163, 18
        %s165 = smul.addr %s164, 4
        %s166 = scalar_lea.vmem %s0, %s165
        %s167 = smul.u32 4, %s11
      $region24: #{_lambda_.8} parent=19 // pred_fallthru
        _
    $region20: #{_lambda_.8} parent=5 // pred_fallthru
      _
    %p168 = scmp.le.s32.totalorder 1, %s11
    %p169 = scmp.lt.s32.totalorder %s11, 3
    %p170 = pnand %p168, %p169
    %p171 = pneg %p170
    // Predicated region
    $region25: #{_lambda_.8} parent=5 // pred_check
      _
    $region26: #{_lambda_.8} parent=5 // pred_check_branch
      %173 = sbr.rel (%p170) target = $region28
    $region27: #{_lambda_.8} parent=5 // pred_region
      %s174 = ssub.s32 %s11, 1
      %s175 = smul.u32 4, %s16
      %p176 = scmp.lt.s32.totalorder %s175, 7
      %s177 = scalar_select %p176, %s175, 7
      %s178 = smul.addr %s177, 18
      %s179 = smul.addr %s178, 4
      %s180 = scalar_lea.vmem %s0, %s179
      %p181 = pneg %p37
      %p182 = pneg %p34
      %p183 = pneg %p58
      %p184 = pneg %p55
      %p185 = pneg %p84
      %p186 = pneg %p81
      %p187 = scmp.lt.s32.totalorder %s16, 1
      %s188 = scalar_select %p187, %s16, 1
      %s189 = smul.addr %s188, 8
      %s190 = smul.addr %s189, 8
      %s191 = scalar_lea.vmem %s2, %s190
      %p192 = pneg %p110
      %p193 = pneg %p107
      %p194 = scmp.lt.s32.totalorder %s16, 1
      %s195 = scalar_select %p194, %s16, 1
      %s196 = scalar_lea.vmem %s3, %s195
      %p197 = pneg %p136
      %p198 = pneg %p133
      %p199 = scmp.lt.s32.totalorder %s16, 1
      %s200 = scalar_select %p199, %s16, 1
      %s201 = scalar_lea.vmem %s4, %s200
      %s202 = smul.u32 4, %s16
      %p203 = scmp.lt.s32.totalorder %s202, 7
      %s204 = scalar_select %p203, %s202, 7
      %s205 = smul.addr %s204, 18
      %s206 = smul.addr %s205, 4
      %s207 = scalar_lea.vmem %s0, %s206
      %s208 = smul.u32 4, %s16
      %p209 = scmp.lt.s32.totalorder %s16, 1
      %s210 = scalar_select %p209, %s16, 1
      %s211 = smul.addr %s210, 8
      %s212 = smul.addr %s211, 8
      %s213 = scalar_lea.vmem %s2, %s212
      %p214 = scmp.lt.s32.totalorder %s16, 1
      %s215 = scalar_select %p214, %s16, 1
      %s216 = scalar_lea.vmem %s3, %s215
      %p217 = scmp.lt.s32.totalorder %s16, 1
      %s218 = scalar_select %p217, %s16, 1
      %s219 = scalar_lea.vmem %s4, %s218
      %v221 = vld [vmem:[%s207] sm:$0xf]
      %v222 = vld [vmem:[%s207 + $0x8] sm:$0xf]
      %v223 = vld [vmem:[%s207 + $0x10] sm:$0xf]
      %v224 = vld [vmem:[%s207 + $0x18] sm:$0xf]
      %v225 = vld [vmem:[%s207 + $0x20] sm:$0xf]
      %v226 = vld [vmem:[%s207 + $0x28] sm:$0xf]
      %v227 = vld [vmem:[%s207 + $0x30] sm:$0xf]
      %v228 = vld [vmem:[%s207 + $0x38] sm:$0xf]
      %v229 = vld [vmem:[%s1] sm:$0xf]
      %v230 = vld [vmem:[%s1 + $0x4] sm:$0xf]
      %v231 = vld [vmem:[%s1 + $0x8] sm:$0xf]
      %v232 = vld [vmem:[%s1 + $0xc] sm:$0xf]
      %v233 = vld [vmem:[%s1 + $0x10] sm:$0xf]
      %v234 = vld [vmem:[%s1 + $0x14] sm:$0xf]
      %v235 = vld [vmem:[%s1 + $0x18] sm:$0xf]
      %v236 = vld [vmem:[%s1 + $0x1c] sm:$0xf]
      %v237 = vld [vmem:[%s1 + $0x20] sm:$0xf]
      %v238 = vld [vmem:[%s1 + $0x24] sm:$0xf]
      %v239 = vld [vmem:[%s1 + $0x28] sm:$0xf]
      %v240 = vld [vmem:[%s1 + $0x2c] sm:$0xf]
      %v241 = vld [vmem:[%s1 + $0x30] sm:$0xf]
      %v242 = vld [vmem:[%s1 + $0x34] sm:$0xf]
      %v243 = vld [vmem:[%s1 + $0x38] sm:$0xf]
      %v244 = vld [vmem:[%s1 + $0x3c] sm:$0xf]
      %s245 = scalar_lea.vmem %s207, 72
      %v246 = vld [vmem:[%s245] sm:$0xf]
      %v247 = vld [vmem:[%s245 + $0x8] sm:$0xf]
      %v248 = vld [vmem:[%s245 + $0x10] sm:$0xf]
      %v249 = vld [vmem:[%s245 + $0x18] sm:$0xf]
      %v250 = vld [vmem:[%s245 + $0x20] sm:$0xf]
      %v251 = vld [vmem:[%s245 + $0x28] sm:$0xf]
      %v252 = vld [vmem:[%s245 + $0x30] sm:$0xf]
      %v253 = vld [vmem:[%s245 + $0x38] sm:$0xf]
      %s254 = scalar_lea.vmem %s1, 64
      %v255 = vld [vmem:[%s254] sm:$0xf]
      %v256 = vld [vmem:[%s254 + $0x4] sm:$0xf]
      %v257 = vld [vmem:[%s254 + $0x8] sm:$0xf]
      %v258 = vld [vmem:[%s254 + $0xc] sm:$0xf]
      %v259 = vld [vmem:[%s254 + $0x10] sm:$0xf]
      %v260 = vld [vmem:[%s254 + $0x14] sm:$0xf]
      %v261 = vld [vmem:[%s254 + $0x18] sm:$0xf]
      %v262 = vld [vmem:[%s254 + $0x1c] sm:$0xf]
      %v263 = vld [vmem:[%s254 + $0x20] sm:$0xf]
      %v264 = vld [vmem:[%s254 + $0x24] sm:$0xf]
      %v265 = vld [vmem:[%s254 + $0x28] sm:$0xf]
      %v266 = vld [vmem:[%s254 + $0x2c] sm:$0xf]
      %v267 = vld [vmem:[%s254 + $0x30] sm:$0xf]
      %v268 = vld [vmem:[%s254 + $0x34] sm:$0xf]
      %v269 = vld [vmem:[%s254 + $0x38] sm:$0xf]
      %v270 = vld [vmem:[%s254 + $0x3c] sm:$0xf]
      %v279 = vunpack.c.l.b16 %v246
      %v280 = vunpack.c.l.b16 %v247
      %v281 = vunpack.c.l.b16 %v248
      %v282 = vunpack.c.l.b16 %v249
      %v283 = vunpack.c.l.b16 %v250
      %v284 = vunpack.c.l.b16 %v251
      %v285 = vunpack.c.l.b16 %v252
      %v286 = vunpack.c.l.b16 %v253
      %v287 = vpack.c.b16 %v280, %v279
      %v288 = vpack.c.b16 %v282, %v281
      %v289 = vpack.c.b16 %v284, %v283
      %v290 = vpack.c.b16 %v286, %v285
      %v311 = vunpack.c.l.b16 %v255
      %v312 = vunpack.c.l.b16 %v256
      %v313 = vunpack.c.l.b16 %v257
      %v314 = vunpack.c.l.b16 %v258
      %v315 = vunpack.c.l.b16 %v259
      %v316 = vunpack.c.l.b16 %v260
      %v317 = vunpack.c.l.b16 %v261
      %v318 = vunpack.c.l.b16 %v262
      %v319 = vunpack.c.l.b16 %v263
      %v320 = vunpack.c.l.b16 %v264
      %v321 = vunpack.c.l.b16 %v265
      %v322 = vunpack.c.l.b16 %v266
      %v323 = vunpack.c.l.b16 %v267
      %v324 = vunpack.c.l.b16 %v268
      %v325 = vunpack.c.l.b16 %v269
      %v326 = vunpack.c.l.b16 %v270
      %v327 = vpack.c.b16 %v312, %v311
      %v328 = vpack.c.b16 %v314, %v313
      %v329 = vpack.c.b16 %v316, %v315
      %v330 = vpack.c.b16 %v318, %v317
      %v331 = vpack.c.b16 %v320, %v319
      %v332 = vpack.c.b16 %v322, %v321
      %v333 = vpack.c.b16 %v324, %v323
      %v334 = vpack.c.b16 %v326, %v325
      %343 = vmatprep.subr.bf16.mxu0 0
      %344 = vmatpush1.bf16.msra.mxu0 %v334
      %345 = vmatprep.subr.bf16.mxu0 0
      %346 = vmatpush1.bf16.msra.mxu0 %v333
      %347 = vmatprep.subr.bf16.mxu0 0
      %348 = vmatpush1.bf16.msra.mxu0 %v332
      %349 = vmatprep.subr.bf16.mxu0 0
      %350 = vmatpush1.bf16.msra.mxu0 %v331
      %351 = vmatprep.subr.bf16.mxu0 0
      %352 = vmatpush1.bf16.msra.mxu0 %v330
      %353 = vmatprep.subr.bf16.mxu0 0
      %354 = vmatpush1.bf16.msra.mxu0 %v329
      %355 = vmatprep.subr.bf16.mxu0 0
      %356 = vmatpush1.bf16.msra.mxu0 %v328
      %357 = vmatprep.subr.bf16.mxu0 0
      %358 = vmatpush1.bf16.msra.mxu0 %v327
      %359 = vmatprep.subr.bf16.mxu0 0
      %360 = vmatpush2.bf16.msra.mxu0 0
      %361 = vmatprep.subr.bf16.mxu0 0
      %362 = vmatpush2.bf16.msra.mxu0 0
      %363 = vmatprep.subr.bf16.mxu0 0
      %364 = vmatpush2.bf16.msra.mxu0 0
      %365 = vmatprep.subr.bf16.mxu0 0
      %366 = vmatpush2.bf16.msra.mxu0 0
      %367 = vmatprep.subr.bf16.mxu0 0
      %368 = vmatpush2.bf16.msra.mxu0 0
      %369 = vmatprep.subr.bf16.mxu0 0
      %370 = vmatpush2.bf16.msra.mxu0 0
      %371 = vmatprep.subr.bf16.mxu0 0
      %372 = vmatpush2.bf16.msra.mxu0 0
      %373 = vmatprep.subr.bf16.mxu0 0
      %374 = vmatpush2.bf16.msra.mxu0 0
      %375 = vmatprep.mubr.bf16.mxu0 0
      %376 = vmatmul.mubr.bf16.gmra.mxu0 %v287
      %v377 = vpop.f32.mrf.mxu0
      %v378 = vadd.f32 0.0, %v377
      %v379 = vpop.f32.mrf.mxu0
      %v380 = vpop.f32.mrf.mxu0
      %v381 = vadd.f32 0.0, %v380
      %v382 = vpop.f32.mrf.mxu0
      %383 = vmatprep.mubr.bf16.mxu0 0
      %384 = vmatmul.mubr.bf16.gmra.mxu0 %v288
      %v385 = vpop.f32.mrf.mxu0
      %v386 = vadd.f32 0.0, %v385
      %v387 = vpop.f32.mrf.mxu0
      %v388 = vpop.f32.mrf.mxu0
      %v389 = vadd.f32 0.0, %v388
      %v390 = vpop.f32.mrf.mxu0
      %391 = vmatprep.mubr.bf16.mxu0 0
      %392 = vmatmul.mubr.bf16.gmra.mxu0 %v289
      %v393 = vpop.f32.mrf.mxu0
      %v394 = vadd.f32 0.0, %v393
      %v395 = vpop.f32.mrf.mxu0
      %v396 = vpop.f32.mrf.mxu0
      %v397 = vadd.f32 0.0, %v396
      %v398 = vpop.f32.mrf.mxu0
      %399 = vmatprep.mubr.bf16.mxu0 0
      %400 = vmatmul.mubr.bf16.gmra.mxu0 %v290
      %v401 = vpop.f32.mrf.mxu0
      %v402 = vadd.f32 0.0, %v401
      %v403 = vpop.f32.mrf.mxu0
      %v404 = vpop.f32.mrf.mxu0
      %v405 = vadd.f32 0.0, %v404
      %v406 = vpop.f32.mrf.mxu0
      %407 = vdwg.mxu0
      %v416 = vunpack.c.l.b16 %v221
      %v417 = vunpack.c.l.b16 %v222
      %v418 = vunpack.c.l.b16 %v223
      %v419 = vunpack.c.l.b16 %v224
      %v420 = vunpack.c.l.b16 %v225
      %v421 = vunpack.c.l.b16 %v226
      %v422 = vunpack.c.l.b16 %v227
      %v423 = vunpack.c.l.b16 %v228
      %v424 = vpack.c.b16 %v417, %v416
      %v425 = vpack.c.b16 %v419, %v418
      %v426 = vpack.c.b16 %v421, %v420
      %v427 = vpack.c.b16 %v423, %v422
      %v448 = vunpack.c.l.b16 %v229
      %v449 = vunpack.c.l.b16 %v230
      %v450 = vunpack.c.l.b16 %v231
      %v451 = vunpack.c.l.b16 %v232
      %v452 = vunpack.c.l.b16 %v233
      %v453 = vunpack.c.l.b16 %v234
      %v454 = vunpack.c.l.b16 %v235
      %v455 = vunpack.c.l.b16 %v236
      %v456 = vunpack.c.l.b16 %v237
      %v457 = vunpack.c.l.b16 %v238
      %v458 = vunpack.c.l.b16 %v239
      %v459 = vunpack.c.l.b16 %v240
      %v460 = vunpack.c.l.b16 %v241
      %v461 = vunpack.c.l.b16 %v242
      %v462 = vunpack.c.l.b16 %v243
      %v463 = vunpack.c.l.b16 %v244
      %v464 = vpack.c.b16 %v449, %v448
      %v465 = vpack.c.b16 %v451, %v450
      %v466 = vpack.c.b16 %v453, %v452
      %v467 = vpack.c.b16 %v455, %v454
      %v468 = vpack.c.b16 %v457, %v456
      %v469 = vpack.c.b16 %v459, %v458
      %v470 = vpack.c.b16 %v461, %v460
      %v471 = vpack.c.b16 %v463, %v462
      %480 = vmatprep.subr.bf16.mxu0 0
      %481 = vmatpush1.bf16.msra.mxu0 %v471
      %482 = vmatprep.subr.bf16.mxu0 0
      %483 = vmatpush1.bf16.msra.mxu0 %v470
      %484 = vmatprep.subr.bf16.mxu0 0
      %485 = vmatpush1.bf16.msra.mxu0 %v469
      %486 = vmatprep.subr.bf16.mxu0 0
      %487 = vmatpush1.bf16.msra.mxu0 %v468
      %488 = vmatprep.subr.bf16.mxu0 0
      %489 = vmatpush1.bf16.msra.mxu0 %v467
      %490 = vmatprep.subr.bf16.mxu0 0
      %491 = vmatpush1.bf16.msra.mxu0 %v466
      %492 = vmatprep.subr.bf16.mxu0 0
      %493 = vmatpush1.bf16.msra.mxu0 %v465
      %494 = vmatprep.subr.bf16.mxu0 0
      %495 = vmatpush1.bf16.msra.mxu0 %v464
      %496 = vmatprep.subr.bf16.mxu0 0
      %497 = vmatpush2.bf16.msra.mxu0 0
      %498 = vmatprep.subr.bf16.mxu0 0
      %499 = vmatpush2.bf16.msra.mxu0 0
      %500 = vmatprep.subr.bf16.mxu0 0
      %501 = vmatpush2.bf16.msra.mxu0 0
      %502 = vmatprep.subr.bf16.mxu0 0
      %503 = vmatpush2.bf16.msra.mxu0 0
      %504 = vmatprep.subr.bf16.mxu0 0
      %505 = vmatpush2.bf16.msra.mxu0 0
      %506 = vmatprep.subr.bf16.mxu0 0
      %507 = vmatpush2.bf16.msra.mxu0 0
      %508 = vmatprep.subr.bf16.mxu0 0
      %509 = vmatpush2.bf16.msra.mxu0 0
      %510 = vmatprep.subr.bf16.mxu0 0
      %511 = vmatpush2.bf16.msra.mxu0 0
      %512 = vmatprep.mubr.bf16.mxu0 0
      %513 = vmatmul.mubr.bf16.gmra.mxu0 %v424
      %v514 = vpop.f32.mrf.mxu0
      %v515 = vadd.f32 %v378, %v514
      %v516 = vpop.f32.mrf.mxu0
      %v517 = vpop.f32.mrf.mxu0
      %v518 = vadd.f32 %v381, %v517
      %v519 = vpop.f32.mrf.mxu0
      %520 = vmatprep.mubr.bf16.mxu0 0
      %521 = vmatmul.mubr.bf16.gmra.mxu0 %v425
      %v522 = vpop.f32.mrf.mxu0
      %v523 = vadd.f32 %v386, %v522
      %v524 = vpop.f32.mrf.mxu0
      %v525 = vpop.f32.mrf.mxu0
      %v526 = vadd.f32 %v389, %v525
      %v527 = vpop.f32.mrf.mxu0
      %528 = vmatprep.mubr.bf16.mxu0 0
      %529 = vmatmul.mubr.bf16.gmra.mxu0 %v426
      %v530 = vpop.f32.mrf.mxu0
      %v531 = vadd.f32 %v394, %v530
      %v532 = vpop.f32.mrf.mxu0
      %v533 = vpop.f32.mrf.mxu0
      %v534 = vadd.f32 %v397, %v533
      %v535 = vpop.f32.mrf.mxu0
      %536 = vmatprep.mubr.bf16.mxu0 0
      %537 = vmatmul.mubr.bf16.gmra.mxu0 %v427
      %v538 = vpop.f32.mrf.mxu0
      %v539 = vadd.f32 %v402, %v538
      %v540 = vpop.f32.mrf.mxu0
      %v541 = vpop.f32.mrf.mxu0
      %v542 = vadd.f32 %v405, %v541
      %v543 = vpop.f32.mrf.mxu0
      %544 = vdwg.mxu0
      %v545 = vld [vmem:[%s207] sm:$0xf]
      %v546 = vld [vmem:[%s207 + $0x4] sm:$0x1]
      %v547 = vld [vmem:[%s207 + $0x8] sm:$0xf]
      %v548 = vld [vmem:[%s207 + $0xc] sm:$0x1]
      %v549 = vld [vmem:[%s207 + $0x10] sm:$0xf]
      %v550 = vld [vmem:[%s207 + $0x14] sm:$0x1]
      %v551 = vld [vmem:[%s207 + $0x18] sm:$0xf]
      %v552 = vld [vmem:[%s207 + $0x1c] sm:$0x1]
      %v553 = vld [vmem:[%s207 + $0x20] sm:$0xf]
      %v554 = vld [vmem:[%s207 + $0x24] sm:$0x1]
      %v555 = vld [vmem:[%s207 + $0x28] sm:$0xf]
      %v556 = vld [vmem:[%s207 + $0x2c] sm:$0x1]
      %v557 = vld [vmem:[%s207 + $0x30] sm:$0xf]
      %v558 = vld [vmem:[%s207 + $0x34] sm:$0x1]
      %v559 = vld [vmem:[%s207 + $0x38] sm:$0xf]
      %v560 = vld [vmem:[%s207 + $0x3c] sm:$0x1]
      %vm561 = vsmask.f32 3328
      %vm562 = vsmask.f32 7440
      %vm563 = vmor %vm561, %vm562
      %v565 = vshrl.u32 %v545, 16
      %v567 = vrot.slane %v565, 4
      %v568 = vshll.u32 %v545, 16
      %v570 = vrot.slane %v568, 5
      %v571 = vor.u32 %v567, %v570
      %v572 = vrot.slane %v571, 4
      %v574 = vshll.u32 %v546, 16
      %v576 = vrot.slane %v574, 5
      %v577 = vsel %vm563, %v572, %v576
      %v579 = vshrl.u32 %v547, 16
      %v581 = vrot.slane %v579, 4
      %v582 = vshll.u32 %v547, 16
      %v584 = vrot.slane %v582, 5
      %v585 = vor.u32 %v581, %v584
      %v586 = vrot.slane %v585, 4
      %v588 = vshll.u32 %v548, 16
      %v590 = vrot.slane %v588, 5
      %v591 = vsel %vm563, %v586, %v590
      %v593 = vshrl.u32 %v549, 16
      %v595 = vrot.slane %v593, 4
      %v596 = vshll.u32 %v549, 16
      %v598 = vrot.slane %v596, 5
      %v599 = vor.u32 %v595, %v598
      %v600 = vrot.slane %v599, 4
      %v602 = vshll.u32 %v550, 16
      %v604 = vrot.slane %v602, 5
      %v605 = vsel %vm563, %v600, %v604
      %v607 = vshrl.u32 %v551, 16
      %v609 = vrot.slane %v607, 4
      %v610 = vshll.u32 %v551, 16
      %v612 = vrot.slane %v610, 5
      %v613 = vor.u32 %v609, %v612
      %v614 = vrot.slane %v613, 4
      %v616 = vshll.u32 %v552, 16
      %v618 = vrot.slane %v616, 5
      %v619 = vsel %vm563, %v614, %v618
      %v621 = vshrl.u32 %v553, 16
      %v623 = vrot.slane %v621, 4
      %v624 = vshll.u32 %v553, 16
      %v626 = vrot.slane %v624, 5
      %v627 = vor.u32 %v623, %v626
      %v628 = vrot.slane %v627, 4
      %v630 = vshll.u32 %v554, 16
      %v632 = vrot.slane %v630, 5
      %v633 = vsel %vm563, %v628, %v632
      %v635 = vshrl.u32 %v555, 16
      %v637 = vrot.slane %v635, 4
      %v638 = vshll.u32 %v555, 16
      %v640 = vrot.slane %v638, 5
      %v641 = vor.u32 %v637, %v640
      %v642 = vrot.slane %v641, 4
      %v644 = vshll.u32 %v556, 16
      %v646 = vrot.slane %v644, 5
      %v647 = vsel %vm563, %v642, %v646
      %v649 = vshrl.u32 %v557, 16
      %v651 = vrot.slane %v649, 4
      %v652 = vshll.u32 %v557, 16
      %v654 = vrot.slane %v652, 5
      %v655 = vor.u32 %v651, %v654
      %v656 = vrot.slane %v655, 4
      %v658 = vshll.u32 %v558, 16
      %v660 = vrot.slane %v658, 5
      %v661 = vsel %vm563, %v656, %v660
      %v663 = vshrl.u32 %v559, 16
      %v665 = vrot.slane %v663, 4
      %v666 = vshll.u32 %v559, 16
      %v668 = vrot.slane %v666, 5
      %v669 = vor.u32 %v665, %v668
      %v670 = vrot.slane %v669, 4
      %v672 = vshll.u32 %v560, 16
      %v674 = vrot.slane %v672, 5
      %v675 = vsel %vm563, %v670, %v674
      %s676 = scalar_lea.vmem %s1, 128
      %v677 = vld [vmem:[%s676] sm:$0xf]
      %v678 = vld [vmem:[%s676 + $0x4] sm:$0xf]
      %v679 = vld [vmem:[%s676 + $0x8] sm:$0xf]
      %v680 = vld [vmem:[%s676 + $0xc] sm:$0xf]
      %v681 = vld [vmem:[%s676 + $0x10] sm:$0xf]
      %v682 = vld [vmem:[%s676 + $0x14] sm:$0xf]
      %v683 = vld [vmem:[%s676 + $0x18] sm:$0xf]
      %v684 = vld [vmem:[%s676 + $0x1c] sm:$0xf]
      %v685 = vld [vmem:[%s676 + $0x20] sm:$0xf]
      %v686 = vld [vmem:[%s676 + $0x24] sm:$0xf]
      %v687 = vld [vmem:[%s676 + $0x28] sm:$0xf]
      %v688 = vld [vmem:[%s676 + $0x2c] sm:$0xf]
      %v689 = vld [vmem:[%s676 + $0x30] sm:$0xf]
      %v690 = vld [vmem:[%s676 + $0x34] sm:$0xf]
      %v691 = vld [vmem:[%s676 + $0x38] sm:$0xf]
      %v692 = vld [vmem:[%s676 + $0x3c] sm:$0xf]
      %v693 = vunpack.c.l.b16 %v577
      %v694 = vunpack.c.l.b16 %v591
      %v695 = vunpack.c.l.b16 %v605
      %v696 = vunpack.c.l.b16 %v619
      %v697 = vunpack.c.l.b16 %v633
      %v698 = vunpack.c.l.b16 %v647
      %v699 = vunpack.c.l.b16 %v661
      %v700 = vunpack.c.l.b16 %v675
      %v701 = vpack.c.b16 %v694, %v693
      %v702 = vpack.c.b16 %v696, %v695
      %v703 = vpack.c.b16 %v698, %v697
      %v704 = vpack.c.b16 %v700, %v699
      %v725 = vunpack.c.l.b16 %v677
      %v726 = vunpack.c.l.b16 %v678
      %v727 = vunpack.c.l.b16 %v679
      %v728 = vunpack.c.l.b16 %v680
      %v729 = vunpack.c.l.b16 %v681
      %v730 = vunpack.c.l.b16 %v682
      %v731 = vunpack.c.l.b16 %v683
      %v732 = vunpack.c.l.b16 %v684
      %v733 = vunpack.c.l.b16 %v685
      %v734 = vunpack.c.l.b16 %v686
      %v735 = vunpack.c.l.b16 %v687
      %v736 = vunpack.c.l.b16 %v688
      %v737 = vunpack.c.l.b16 %v689
      %v738 = vunpack.c.l.b16 %v690
      %v739 = vunpack.c.l.b16 %v691
      %v740 = vunpack.c.l.b16 %v692
      %v741 = vpack.c.b16 %v726, %v725
      %v742 = vpack.c.b16 %v728, %v727
      %v743 = vpack.c.b16 %v730, %v729
      %v744 = vpack.c.b16 %v732, %v731
      %v745 = vpack.c.b16 %v734, %v733
      %v746 = vpack.c.b16 %v736, %v735
      %v747 = vpack.c.b16 %v738, %v737
      %v748 = vpack.c.b16 %v740, %v739
      %757 = vmatprep.subr.bf16.mxu0 0
      %758 = vmatpush1.bf16.msra.mxu0 %v748
      %759 = vmatprep.subr.bf16.mxu0 0
      %760 = vmatpush1.bf16.msra.mxu0 %v747
      %761 = vmatprep.subr.bf16.mxu0 0
      %762 = vmatpush1.bf16.msra.mxu0 %v746
      %763 = vmatprep.subr.bf16.mxu0 0
      %764 = vmatpush1.bf16.msra.mxu0 %v745
      %765 = vmatprep.subr.bf16.mxu0 0
      %766 = vmatpush1.bf16.msra.mxu0 %v744
      %767 = vmatprep.subr.bf16.mxu0 0
      %768 = vmatpush1.bf16.msra.mxu0 %v743
      %769 = vmatprep.subr.bf16.mxu0 0
      %770 = vmatpush1.bf16.msra.mxu0 %v742
      %771 = vmatprep.subr.bf16.mxu0 0
      %772 = vmatpush1.bf16.msra.mxu0 %v741
      %773 = vmatprep.subr.bf16.mxu0 0
      %774 = vmatpush2.bf16.msra.mxu0 0
      %775 = vmatprep.subr.bf16.mxu0 0
      %776 = vmatpush2.bf16.msra.mxu0 0
      %777 = vmatprep.subr.bf16.mxu0 0
      %778 = vmatpush2.bf16.msra.mxu0 0
      %779 = vmatprep.subr.bf16.mxu0 0
      %780 = vmatpush2.bf16.msra.mxu0 0
      %781 = vmatprep.subr.bf16.mxu0 0
      %782 = vmatpush2.bf16.msra.mxu0 0
      %783 = vmatprep.subr.bf16.mxu0 0
      %784 = vmatpush2.bf16.msra.mxu0 0
      %785 = vmatprep.subr.bf16.mxu0 0
      %786 = vmatpush2.bf16.msra.mxu0 0
      %787 = vmatprep.subr.bf16.mxu0 0
      %788 = vmatpush2.bf16.msra.mxu0 0
      %789 = vmatprep.mubr.bf16.mxu0 0
      %790 = vmatmul.mubr.bf16.gmra.mxu0 %v701
      %v791 = vpop.f32.mrf.mxu0
      %v792 = vadd.f32 0.0, %v791
      %v793 = vpop.f32.mrf.mxu0
      %v794 = vpop.f32.mrf.mxu0
      %v795 = vadd.f32 0.0, %v794
      %v796 = vpop.f32.mrf.mxu0
      %797 = vmatprep.mubr.bf16.mxu0 0
      %798 = vmatmul.mubr.bf16.gmra.mxu0 %v702
      %v799 = vpop.f32.mrf.mxu0
      %v800 = vadd.f32 0.0, %v799
      %v801 = vpop.f32.mrf.mxu0
      %v802 = vpop.f32.mrf.mxu0
      %v803 = vadd.f32 0.0, %v802
      %v804 = vpop.f32.mrf.mxu0
      %805 = vmatprep.mubr.bf16.mxu0 0
      %806 = vmatmul.mubr.bf16.gmra.mxu0 %v703
      %v807 = vpop.f32.mrf.mxu0
      %v808 = vadd.f32 0.0, %v807
      %v809 = vpop.f32.mrf.mxu0
      %v810 = vpop.f32.mrf.mxu0
      %v811 = vadd.f32 0.0, %v810
      %v812 = vpop.f32.mrf.mxu0
      %813 = vmatprep.mubr.bf16.mxu0 0
      %814 = vmatmul.mubr.bf16.gmra.mxu0 %v704
      %v815 = vpop.f32.mrf.mxu0
      %v816 = vadd.f32 0.0, %v815
      %v817 = vpop.f32.mrf.mxu0
      %v818 = vpop.f32.mrf.mxu0
      %v819 = vadd.f32 0.0, %v818
      %v820 = vpop.f32.mrf.mxu0
      %821 = vdwg.mxu0
      %v822 = vadd.f32 %v515, %v792
      %v823 = vadd.f32 %v518, %v795
      %v824 = vadd.f32 %v523, %v800
      %v825 = vadd.f32 %v526, %v803
      %v826 = vadd.f32 %v531, %v808
      %v827 = vadd.f32 %v534, %v811
      %v828 = vadd.f32 %v539, %v816
      %v829 = vadd.f32 %v542, %v819
      %s830 = scalar_lea.vmem %s207, 144
      %v831 = vld [vmem:[%s830] sm:$0xf]
      %v832 = vld [vmem:[%s830 + $0x8] sm:$0xf]
      %v833 = vld [vmem:[%s830 + $0x10] sm:$0xf]
      %v834 = vld [vmem:[%s830 + $0x18] sm:$0xf]
      %v835 = vld [vmem:[%s830 + $0x20] sm:$0xf]
      %v836 = vld [vmem:[%s830 + $0x28] sm:$0xf]
      %v837 = vld [vmem:[%s830 + $0x30] sm:$0xf]
      %v838 = vld [vmem:[%s830 + $0x38] sm:$0xf]
      %s839 = scalar_lea.vmem %s1, 192
      %v840 = vld [vmem:[%s839] sm:$0xf]
      %v841 = vld [vmem:[%s839 + $0x4] sm:$0xf]
      %v842 = vld [vmem:[%s839 + $0x8] sm:$0xf]
      %v843 = vld [vmem:[%s839 + $0xc] sm:$0xf]
      %v844 = vld [vmem:[%s839 + $0x10] sm:$0xf]
      %v845 = vld [vmem:[%s839 + $0x14] sm:$0xf]
      %v846 = vld [vmem:[%s839 + $0x18] sm:$0xf]
      %v847 = vld [vmem:[%s839 + $0x1c] sm:$0xf]
      %v848 = vld [vmem:[%s839 + $0x20] sm:$0xf]
      %v849 = vld [vmem:[%s839 + $0x24] sm:$0xf]
      %v850 = vld [vmem:[%s839 + $0x28] sm:$0xf]
      %v851 = vld [vmem:[%s839 + $0x2c] sm:$0xf]
      %v852 = vld [vmem:[%s839 + $0x30] sm:$0xf]
      %v853 = vld [vmem:[%s839 + $0x34] sm:$0xf]
      %v854 = vld [vmem:[%s839 + $0x38] sm:$0xf]
      %v855 = vld [vmem:[%s839 + $0x3c] sm:$0xf]
      %v864 = vunpack.c.l.b16 %v831
      %v865 = vunpack.c.l.b16 %v832
      %v866 = vunpack.c.l.b16 %v833
      %v867 = vunpack.c.l.b16 %v834
      %v868 = vunpack.c.l.b16 %v835
      %v869 = vunpack.c.l.b16 %v836
      %v870 = vunpack.c.l.b16 %v837
      %v871 = vunpack.c.l.b16 %v838
      %v872 = vpack.c.b16 %v865, %v864
      %v873 = vpack.c.b16 %v867, %v866
      %v874 = vpack.c.b16 %v869, %v868
      %v875 = vpack.c.b16 %v871, %v870
      %v896 = vunpack.c.l.b16 %v840
      %v897 = vunpack.c.l.b16 %v841
      %v898 = vunpack.c.l.b16 %v842
      %v899 = vunpack.c.l.b16 %v843
      %v900 = vunpack.c.l.b16 %v844
      %v901 = vunpack.c.l.b16 %v845
      %v902 = vunpack.c.l.b16 %v846
      %v903 = vunpack.c.l.b16 %v847
      %v904 = vunpack.c.l.b16 %v848
      %v905 = vunpack.c.l.b16 %v849
      %v906 = vunpack.c.l.b16 %v850
      %v907 = vunpack.c.l.b16 %v851
      %v908 = vunpack.c.l.b16 %v852
      %v909 = vunpack.c.l.b16 %v853
      %v910 = vunpack.c.l.b16 %v854
      %v911 = vunpack.c.l.b16 %v855
      %v912 = vpack.c.b16 %v897, %v896
      %v913 = vpack.c.b16 %v899, %v898
      %v914 = vpack.c.b16 %v901, %v900
      %v915 = vpack.c.b16 %v903, %v902
      %v916 = vpack.c.b16 %v905, %v904
      %v917 = vpack.c.b16 %v907, %v906
      %v918 = vpack.c.b16 %v909, %v908
      %v919 = vpack.c.b16 %v911, %v910
      %928 = vmatprep.subr.bf16.mxu0 0
      %929 = vmatpush1.bf16.msra.mxu0 %v919
      %930 = vmatprep.subr.bf16.mxu0 0
      %931 = vmatpush1.bf16.msra.mxu0 %v918
      %932 = vmatprep.subr.bf16.mxu0 0
      %933 = vmatpush1.bf16.msra.mxu0 %v917
      %934 = vmatprep.subr.bf16.mxu0 0
      %935 = vmatpush1.bf16.msra.mxu0 %v916
      %936 = vmatprep.subr.bf16.mxu0 0
      %937 = vmatpush1.bf16.msra.mxu0 %v915
      %938 = vmatprep.subr.bf16.mxu0 0
      %939 = vmatpush1.bf16.msra.mxu0 %v914
      %940 = vmatprep.subr.bf16.mxu0 0
      %941 = vmatpush1.bf16.msra.mxu0 %v913
      %942 = vmatprep.subr.bf16.mxu0 0
      %943 = vmatpush1.bf16.msra.mxu0 %v912
      %944 = vmatprep.subr.bf16.mxu0 0
      %945 = vmatpush2.bf16.msra.mxu0 0
      %946 = vmatprep.subr.bf16.mxu0 0
      %947 = vmatpush2.bf16.msra.mxu0 0
      %948 = vmatprep.subr.bf16.mxu0 0
      %949 = vmatpush2.bf16.msra.mxu0 0
      %950 = vmatprep.subr.bf16.mxu0 0
      %951 = vmatpush2.bf16.msra.mxu0 0
      %952 = vmatprep.subr.bf16.mxu0 0
      %953 = vmatpush2.bf16.msra.mxu0 0
      %954 = vmatprep.subr.bf16.mxu0 0
      %955 = vmatpush2.bf16.msra.mxu0 0
      %956 = vmatprep.subr.bf16.mxu0 0
      %957 = vmatpush2.bf16.msra.mxu0 0
      %958 = vmatprep.subr.bf16.mxu0 0
      %959 = vmatpush2.bf16.msra.mxu0 0
      %960 = vmatprep.mubr.bf16.mxu0 0
      %961 = vmatmul.mubr.bf16.gmra.mxu0 %v872
      %v962 = vpop.f32.mrf.mxu0
      %v963 = vadd.f32 0.0, %v962
      %v964 = vpop.f32.mrf.mxu0
      %v965 = vpop.f32.mrf.mxu0
      %v966 = vadd.f32 0.0, %v965
      %v967 = vpop.f32.mrf.mxu0
      %968 = vmatprep.mubr.bf16.mxu0 0
      %969 = vmatmul.mubr.bf16.gmra.mxu0 %v873
      %v970 = vpop.f32.mrf.mxu0
      %v971 = vadd.f32 0.0, %v970
      %v972 = vpop.f32.mrf.mxu0
      %v973 = vpop.f32.mrf.mxu0
      %v974 = vadd.f32 0.0, %v973
      %v975 = vpop.f32.mrf.mxu0
      %976 = vmatprep.mubr.bf16.mxu0 0
      %977 = vmatmul.mubr.bf16.gmra.mxu0 %v874
      %v978 = vpop.f32.mrf.mxu0
      %v979 = vadd.f32 0.0, %v978
      %v980 = vpop.f32.mrf.mxu0
      %v981 = vpop.f32.mrf.mxu0
      %v982 = vadd.f32 0.0, %v981
      %v983 = vpop.f32.mrf.mxu0
      %984 = vmatprep.mubr.bf16.mxu0 0
      %985 = vmatmul.mubr.bf16.gmra.mxu0 %v875
      %v986 = vpop.f32.mrf.mxu0
      %v987 = vadd.f32 0.0, %v986
      %v988 = vpop.f32.mrf.mxu0
      %v989 = vpop.f32.mrf.mxu0
      %v990 = vadd.f32 0.0, %v989
      %v991 = vpop.f32.mrf.mxu0
      %992 = vdwg.mxu0
      %v993 = vadd.f32 %v822, %v963
      %v994 = vadd.f32 %v823, %v966
      %v995 = vadd.f32 %v824, %v971
      %v996 = vadd.f32 %v825, %v974
      %v997 = vadd.f32 %v826, %v979
      %v998 = vadd.f32 %v827, %v982
      %v999 = vadd.f32 %v828, %v987
      %v1000 = vadd.f32 %v829, %v990
      %s1001 = scalar_lea.vmem %s207, 216
      %v1002 = vld [vmem:[%s1001] sm:$0xf]
      %v1003 = vld [vmem:[%s1001 + $0x8] sm:$0xf]
      %v1004 = vld [vmem:[%s1001 + $0x10] sm:$0xf]
      %v1005 = vld [vmem:[%s1001 + $0x18] sm:$0xf]
      %v1006 = vld [vmem:[%s1001 + $0x20] sm:$0xf]
      %v1007 = vld [vmem:[%s1001 + $0x28] sm:$0xf]
      %v1008 = vld [vmem:[%s1001 + $0x30] sm:$0xf]
      %v1009 = vld [vmem:[%s1001 + $0x38] sm:$0xf]
      %s1010 = scalar_lea.vmem %s1, 256
      %v1011 = vld [vmem:[%s1010] sm:$0xf]
      %v1012 = vld [vmem:[%s1010 + $0x4] sm:$0xf]
      %v1013 = vld [vmem:[%s1010 + $0x8] sm:$0xf]
      %v1014 = vld [vmem:[%s1010 + $0xc] sm:$0xf]
      %v1015 = vld [vmem:[%s1010 + $0x10] sm:$0xf]
      %v1016 = vld [vmem:[%s1010 + $0x14] sm:$0xf]
      %v1017 = vld [vmem:[%s1010 + $0x18] sm:$0xf]
      %v1018 = vld [vmem:[%s1010 + $0x1c] sm:$0xf]
      %v1019 = vld [vmem:[%s1010 + $0x20] sm:$0xf]
      %v1020 = vld [vmem:[%s1010 + $0x24] sm:$0xf]
      %v1021 = vld [vmem:[%s1010 + $0x28] sm:$0xf]
      %v1022 = vld [vmem:[%s1010 + $0x2c] sm:$0xf]
      %v1023 = vld [vmem:[%s1010 + $0x30] sm:$0xf]
      %v1024 = vld [vmem:[%s1010 + $0x34] sm:$0xf]
      %v1025 = vld [vmem:[%s1010 + $0x38] sm:$0xf]
      %v1026 = vld [vmem:[%s1010 + $0x3c] sm:$0xf]
      %v1035 = vunpack.c.l.b16 %v1002
      %v1036 = vunpack.c.l.b16 %v1003
      %v1037 = vunpack.c.l.b16 %v1004
      %v1038 = vunpack.c.l.b16 %v1005
      %v1039 = vunpack.c.l.b16 %v1006
      %v1040 = vunpack.c.l.b16 %v1007
      %v1041 = vunpack.c.l.b16 %v1008
      %v1042 = vunpack.c.l.b16 %v1009
      %v1043 = vpack.c.b16 %v1036, %v1035
      %v1044 = vpack.c.b16 %v1038, %v1037
      %v1045 = vpack.c.b16 %v1040, %v1039
      %v1046 = vpack.c.b16 %v1042, %v1041
      %v1067 = vunpack.c.l.b16 %v1011
      %v1068 = vunpack.c.l.b16 %v1012
      %v1069 = vunpack.c.l.b16 %v1013
      %v1070 = vunpack.c.l.b16 %v1014
      %v1071 = vunpack.c.l.b16 %v1015
      %v1072 = vunpack.c.l.b16 %v1016
      %v1073 = vunpack.c.l.b16 %v1017
      %v1074 = vunpack.c.l.b16 %v1018
      %v1075 = vunpack.c.l.b16 %v1019
      %v1076 = vunpack.c.l.b16 %v1020
      %v1077 = vunpack.c.l.b16 %v1021
      %v1078 = vunpack.c.l.b16 %v1022
      %v1079 = vunpack.c.l.b16 %v1023
      %v1080 = vunpack.c.l.b16 %v1024
      %v1081 = vunpack.c.l.b16 %v1025
      %v1082 = vunpack.c.l.b16 %v1026
      %v1083 = vpack.c.b16 %v1068, %v1067
      %v1084 = vpack.c.b16 %v1070, %v1069
      %v1085 = vpack.c.b16 %v1072, %v1071
      %v1086 = vpack.c.b16 %v1074, %v1073
      %v1087 = vpack.c.b16 %v1076, %v1075
      %v1088 = vpack.c.b16 %v1078, %v1077
      %v1089 = vpack.c.b16 %v1080, %v1079
      %v1090 = vpack.c.b16 %v1082, %v1081
      %1099 = vmatprep.subr.bf16.mxu0 0
      %1100 = vmatpush1.bf16.msra.mxu0 %v1090
      %1101 = vmatprep.subr.bf16.mxu0 0
      %1102 = vmatpush1.bf16.msra.mxu0 %v1089
      %1103 = vmatprep.subr.bf16.mxu0 0
      %1104 = vmatpush1.bf16.msra.mxu0 %v1088
      %1105 = vmatprep.subr.bf16.mxu0 0
      %1106 = vmatpush1.bf16.msra.mxu0 %v1087
      %1107 = vmatprep.subr.bf16.mxu0 0
      %1108 = vmatpush1.bf16.msra.mxu0 %v1086
      %1109 = vmatprep.subr.bf16.mxu0 0
      %1110 = vmatpush1.bf16.msra.mxu0 %v1085
      %1111 = vmatprep.subr.bf16.mxu0 0
      %1112 = vmatpush1.bf16.msra.mxu0 %v1084
      %1113 = vmatprep.subr.bf16.mxu0 0
      %1114 = vmatpush1.bf16.msra.mxu0 %v1083
      %1115 = vmatprep.subr.bf16.mxu0 0
      %1116 = vmatpush2.bf16.msra.mxu0 0
      %1117 = vmatprep.subr.bf16.mxu0 0
      %1118 = vmatpush2.bf16.msra.mxu0 0
      %1119 = vmatprep.subr.bf16.mxu0 0
      %1120 = vmatpush2.bf16.msra.mxu0 0
      %1121 = vmatprep.subr.bf16.mxu0 0
      %1122 = vmatpush2.bf16.msra.mxu0 0
      %1123 = vmatprep.subr.bf16.mxu0 0
      %1124 = vmatpush2.bf16.msra.mxu0 0
      %1125 = vmatprep.subr.bf16.mxu0 0
      %1126 = vmatpush2.bf16.msra.mxu0 0
      %1127 = vmatprep.subr.bf16.mxu0 0
      %1128 = vmatpush2.bf16.msra.mxu0 0
      %1129 = vmatprep.subr.bf16.mxu0 0
      %1130 = vmatpush2.bf16.msra.mxu0 0
      %1131 = vmatprep.mubr.bf16.mxu0 0
      %1132 = vmatmul.mubr.bf16.gmra.mxu0 %v1043
      %v1133 = vpop.f32.mrf.mxu0
      %v1134 = vadd.f32 0.0, %v1133
      %v1135 = vpop.f32.mrf.mxu0
      %v1136 = vpop.f32.mrf.mxu0
      %v1137 = vadd.f32 0.0, %v1136
      %v1138 = vpop.f32.mrf.mxu0
      %1139 = vmatprep.mubr.bf16.mxu0 0
      %1140 = vmatmul.mubr.bf16.gmra.mxu0 %v1044
      %v1141 = vpop.f32.mrf.mxu0
      %v1142 = vadd.f32 0.0, %v1141
      %v1143 = vpop.f32.mrf.mxu0
      %v1144 = vpop.f32.mrf.mxu0
      %v1145 = vadd.f32 0.0, %v1144
      %v1146 = vpop.f32.mrf.mxu0
      %1147 = vmatprep.mubr.bf16.mxu0 0
      %1148 = vmatmul.mubr.bf16.gmra.mxu0 %v1045
      %v1149 = vpop.f32.mrf.mxu0
      %v1150 = vadd.f32 0.0, %v1149
      %v1151 = vpop.f32.mrf.mxu0
      %v1152 = vpop.f32.mrf.mxu0
      %v1153 = vadd.f32 0.0, %v1152
      %v1154 = vpop.f32.mrf.mxu0
      %1155 = vmatprep.mubr.bf16.mxu0 0
      %1156 = vmatmul.mubr.bf16.gmra.mxu0 %v1046
      %v1157 = vpop.f32.mrf.mxu0
      %v1158 = vadd.f32 0.0, %v1157
      %v1159 = vpop.f32.mrf.mxu0
      %v1160 = vpop.f32.mrf.mxu0
      %v1161 = vadd.f32 0.0, %v1160
      %v1162 = vpop.f32.mrf.mxu0
      %1163 = vdwg.mxu0
      %v1164 = vadd.f32 %v993, %v1134
      %v1165 = vadd.f32 %v994, %v1137
      %v1166 = vadd.f32 %v995, %v1142
      %v1167 = vadd.f32 %v996, %v1145
      %v1168 = vadd.f32 %v997, %v1150
      %v1169 = vadd.f32 %v998, %v1153
      %v1170 = vadd.f32 %v999, %v1158
      %v1171 = vadd.f32 %v1000, %v1161
      %v1172 = vld [vmem:[%s830] sm:$0xf]
      %v1173 = vld [vmem:[%s830 + $0x4] sm:$0x1]
      %v1174 = vld [vmem:[%s830 + $0x8] sm:$0xf]
      %v1175 = vld [vmem:[%s830 + $0xc] sm:$0x1]
      %v1176 = vld [vmem:[%s830 + $0x10] sm:$0xf]
      %v1177 = vld [vmem:[%s830 + $0x14] sm:$0x1]
      %v1178 = vld [vmem:[%s830 + $0x18] sm:$0xf]
      %v1179 = vld [vmem:[%s830 + $0x1c] sm:$0x1]
      %v1180 = vld [vmem:[%s830 + $0x20] sm:$0xf]
      %v1181 = vld [vmem:[%s830 + $0x24] sm:$0x1]
      %v1182 = vld [vmem:[%s830 + $0x28] sm:$0xf]
      %v1183 = vld [vmem:[%s830 + $0x2c] sm:$0x1]
      %v1184 = vld [vmem:[%s830 + $0x30] sm:$0xf]
      %v1185 = vld [vmem:[%s830 + $0x34] sm:$0x1]
      %v1186 = vld [vmem:[%s830 + $0x38] sm:$0xf]
      %v1187 = vld [vmem:[%s830 + $0x3c] sm:$0x1]
      %v1189 = vshrl.u32 %v1172, 16
      %v1191 = vrot.slane %v1189, 4
      %v1192 = vshll.u32 %v1172, 16
      %v1194 = vrot.slane %v1192, 5
      %v1195 = vor.u32 %v1191, %v1194
      %v1196 = vrot.slane %v1195, 4
      %v1198 = vshll.u32 %v1173, 16
      %v1200 = vrot.slane %v1198, 5
      %v1201 = vsel %vm563, %v1196, %v1200
      %v1203 = vshrl.u32 %v1174, 16
      %v1205 = vrot.slane %v1203, 4
      %v1206 = vshll.u32 %v1174, 16
      %v1208 = vrot.slane %v1206, 5
      %v1209 = vor.u32 %v1205, %v1208
      %v1210 = vrot.slane %v1209, 4
      %v1212 = vshll.u32 %v1175, 16
      %v1214 = vrot.slane %v1212, 5
      %v1215 = vsel %vm563, %v1210, %v1214
      %v1217 = vshrl.u32 %v1176, 16
      %v1219 = vrot.slane %v1217, 4
      %v1220 = vshll.u32 %v1176, 16
      %v1222 = vrot.slane %v1220, 5
      %v1223 = vor.u32 %v1219, %v1222
      %v1224 = vrot.slane %v1223, 4
      %v1226 = vshll.u32 %v1177, 16
      %v1228 = vrot.slane %v1226, 5
      %v1229 = vsel %vm563, %v1224, %v1228
      %v1231 = vshrl.u32 %v1178, 16
      %v1233 = vrot.slane %v1231, 4
      %v1234 = vshll.u32 %v1178, 16
      %v1236 = vrot.slane %v1234, 5
      %v1237 = vor.u32 %v1233, %v1236
      %v1238 = vrot.slane %v1237, 4
      %v1240 = vshll.u32 %v1179, 16
      %v1242 = vrot.slane %v1240, 5
      %v1243 = vsel %vm563, %v1238, %v1242
      %v1245 = vshrl.u32 %v1180, 16
      %v1247 = vrot.slane %v1245, 4
      %v1248 = vshll.u32 %v1180, 16
      %v1250 = vrot.slane %v1248, 5
      %v1251 = vor.u32 %v1247, %v1250
      %v1252 = vrot.slane %v1251, 4
      %v1254 = vshll.u32 %v1181, 16
      %v1256 = vrot.slane %v1254, 5
      %v1257 = vsel %vm563, %v1252, %v1256
      %v1259 = vshrl.u32 %v1182, 16
      %v1261 = vrot.slane %v1259, 4
      %v1262 = vshll.u32 %v1182, 16
      %v1264 = vrot.slane %v1262, 5
      %v1265 = vor.u32 %v1261, %v1264
      %v1266 = vrot.slane %v1265, 4
      %v1268 = vshll.u32 %v1183, 16
      %v1270 = vrot.slane %v1268, 5
      %v1271 = vsel %vm563, %v1266, %v1270
      %v1273 = vshrl.u32 %v1184, 16
      %v1275 = vrot.slane %v1273, 4
      %v1276 = vshll.u32 %v1184, 16
      %v1278 = vrot.slane %v1276, 5
      %v1279 = vor.u32 %v1275, %v1278
      %v1280 = vrot.slane %v1279, 4
      %v1282 = vshll.u32 %v1185, 16
      %v1284 = vrot.slane %v1282, 5
      %v1285 = vsel %vm563, %v1280, %v1284
      %v1287 = vshrl.u32 %v1186, 16
      %v1289 = vrot.slane %v1287, 4
      %v1290 = vshll.u32 %v1186, 16
      %v1292 = vrot.slane %v1290, 5
      %v1293 = vor.u32 %v1289, %v1292
      %v1294 = vrot.slane %v1293, 4
      %v1296 = vshll.u32 %v1187, 16
      %v1298 = vrot.slane %v1296, 5
      %v1299 = vsel %vm563, %v1294, %v1298
      %s1300 = scalar_lea.vmem %s1, 320
      %v1301 = vld [vmem:[%s1300] sm:$0xf]
      %v1302 = vld [vmem:[%s1300 + $0x4] sm:$0xf]
      %v1303 = vld [vmem:[%s1300 + $0x8] sm:$0xf]
      %v1304 = vld [vmem:[%s1300 + $0xc] sm:$0xf]
      %v1305 = vld [vmem:[%s1300 + $0x10] sm:$0xf]
      %v1306 = vld [vmem:[%s1300 + $0x14] sm:$0xf]
      %v1307 = vld [vmem:[%s1300 + $0x18] sm:$0xf]
      %v1308 = vld [vmem:[%s1300 + $0x1c] sm:$0xf]
      %v1309 = vld [vmem:[%s1300 + $0x20] sm:$0xf]
      %v1310 = vld [vmem:[%s1300 + $0x24] sm:$0xf]
      %v1311 = vld [vmem:[%s1300 + $0x28] sm:$0xf]
      %v1312 = vld [vmem:[%s1300 + $0x2c] sm:$0xf]
      %v1313 = vld [vmem:[%s1300 + $0x30] sm:$0xf]
      %v1314 = vld [vmem:[%s1300 + $0x34] sm:$0xf]
      %v1315 = vld [vmem:[%s1300 + $0x38] sm:$0xf]
      %v1316 = vld [vmem:[%s1300 + $0x3c] sm:$0xf]
      %v1317 = vunpack.c.l.b16 %v1201
      %v1318 = vunpack.c.l.b16 %v1215
      %v1319 = vunpack.c.l.b16 %v1229
      %v1320 = vunpack.c.l.b16 %v1243
      %v1321 = vunpack.c.l.b16 %v1257
      %v1322 = vunpack.c.l.b16 %v1271
      %v1323 = vunpack.c.l.b16 %v1285
      %v1324 = vunpack.c.l.b16 %v1299
      %v1325 = vpack.c.b16 %v1318, %v1317
      %v1326 = vpack.c.b16 %v1320, %v1319
      %v1327 = vpack.c.b16 %v1322, %v1321
      %v1328 = vpack.c.b16 %v1324, %v1323
      %v1349 = vunpack.c.l.b16 %v1301
      %v1350 = vunpack.c.l.b16 %v1302
      %v1351 = vunpack.c.l.b16 %v1303
      %v1352 = vunpack.c.l.b16 %v1304
      %v1353 = vunpack.c.l.b16 %v1305
      %v1354 = vunpack.c.l.b16 %v1306
      %v1355 = vunpack.c.l.b16 %v1307
      %v1356 = vunpack.c.l.b16 %v1308
      %v1357 = vunpack.c.l.b16 %v1309
      %v1358 = vunpack.c.l.b16 %v1310
      %v1359 = vunpack.c.l.b16 %v1311
      %v1360 = vunpack.c.l.b16 %v1312
      %v1361 = vunpack.c.l.b16 %v1313
      %v1362 = vunpack.c.l.b16 %v1314
      %v1363 = vunpack.c.l.b16 %v1315
      %v1364 = vunpack.c.l.b16 %v1316
      %v1365 = vpack.c.b16 %v1350, %v1349
      %v1366 = vpack.c.b16 %v1352, %v1351
      %v1367 = vpack.c.b16 %v1354, %v1353
      %v1368 = vpack.c.b16 %v1356, %v1355
      %v1369 = vpack.c.b16 %v1358, %v1357
      %v1370 = vpack.c.b16 %v1360, %v1359
      %v1371 = vpack.c.b16 %v1362, %v1361
      %v1372 = vpack.c.b16 %v1364, %v1363
      %1381 = vmatprep.subr.bf16.mxu0 0
      %1382 = vmatpush1.bf16.msra.mxu0 %v1372
      %1383 = vmatprep.subr.bf16.mxu0 0
      %1384 = vmatpush1.bf16.msra.mxu0 %v1371
      %1385 = vmatprep.subr.bf16.mxu0 0
      %1386 = vmatpush1.bf16.msra.mxu0 %v1370
      %1387 = vmatprep.subr.bf16.mxu0 0
      %1388 = vmatpush1.bf16.msra.mxu0 %v1369
      %1389 = vmatprep.subr.bf16.mxu0 0
      %1390 = vmatpush1.bf16.msra.mxu0 %v1368
      %1391 = vmatprep.subr.bf16.mxu0 0
      %1392 = vmatpush1.bf16.msra.mxu0 %v1367
      %1393 = vmatprep.subr.bf16.mxu0 0
      %1394 = vmatpush1.bf16.msra.mxu0 %v1366
      %1395 = vmatprep.subr.bf16.mxu0 0
      %1396 = vmatpush1.bf16.msra.mxu0 %v1365
      %1397 = vmatprep.subr.bf16.mxu0 0
      %1398 = vmatpush2.bf16.msra.mxu0 0
      %1399 = vmatprep.subr.bf16.mxu0 0
      %1400 = vmatpush2.bf16.msra.mxu0 0
      %1401 = vmatprep.subr.bf16.mxu0 0
      %1402 = vmatpush2.bf16.msra.mxu0 0
      %1403 = vmatprep.subr.bf16.mxu0 0
      %1404 = vmatpush2.bf16.msra.mxu0 0
      %1405 = vmatprep.subr.bf16.mxu0 0
      %1406 = vmatpush2.bf16.msra.mxu0 0
      %1407 = vmatprep.subr.bf16.mxu0 0
      %1408 = vmatpush2.bf16.msra.mxu0 0
      %1409 = vmatprep.subr.bf16.mxu0 0
      %1410 = vmatpush2.bf16.msra.mxu0 0
      %1411 = vmatprep.subr.bf16.mxu0 0
      %1412 = vmatpush2.bf16.msra.mxu0 0
      %1413 = vmatprep.mubr.bf16.mxu0 0
      %1414 = vmatmul.mubr.bf16.gmra.mxu0 %v1325
      %v1415 = vpop.f32.mrf.mxu0
      %v1416 = vadd.f32 0.0, %v1415
      %v1417 = vpop.f32.mrf.mxu0
      %v1418 = vpop.f32.mrf.mxu0
      %v1419 = vadd.f32 0.0, %v1418
      %v1420 = vpop.f32.mrf.mxu0
      %1421 = vmatprep.mubr.bf16.mxu0 0
      %1422 = vmatmul.mubr.bf16.gmra.mxu0 %v1326
      %v1423 = vpop.f32.mrf.mxu0
      %v1424 = vadd.f32 0.0, %v1423
      %v1425 = vpop.f32.mrf.mxu0
      %v1426 = vpop.f32.mrf.mxu0
      %v1427 = vadd.f32 0.0, %v1426
      %v1428 = vpop.f32.mrf.mxu0
      %1429 = vmatprep.mubr.bf16.mxu0 0
      %1430 = vmatmul.mubr.bf16.gmra.mxu0 %v1327
      %v1431 = vpop.f32.mrf.mxu0
      %v1432 = vadd.f32 0.0, %v1431
      %v1433 = vpop.f32.mrf.mxu0
      %v1434 = vpop.f32.mrf.mxu0
      %v1435 = vadd.f32 0.0, %v1434
      %v1436 = vpop.f32.mrf.mxu0
      %1437 = vmatprep.mubr.bf16.mxu0 0
      %1438 = vmatmul.mubr.bf16.gmra.mxu0 %v1328
      %v1439 = vpop.f32.mrf.mxu0
      %v1440 = vadd.f32 0.0, %v1439
      %v1441 = vpop.f32.mrf.mxu0
      %v1442 = vpop.f32.mrf.mxu0
      %v1443 = vadd.f32 0.0, %v1442
      %v1444 = vpop.f32.mrf.mxu0
      %1445 = vdwg.mxu0
      %v1446 = vadd.f32 %v1164, %v1416
      %v1447 = vadd.f32 %v1165, %v1419
      %v1448 = vadd.f32 %v1166, %v1424
      %v1449 = vadd.f32 %v1167, %v1427
      %v1450 = vadd.f32 %v1168, %v1432
      %v1451 = vadd.f32 %v1169, %v1435
      %v1452 = vadd.f32 %v1170, %v1440
      %v1453 = vadd.f32 %v1171, %v1443
      %s1454 = scalar_lea.vmem %s207, 8
      %v1455 = vld [vmem:[%s1454] sm:$0xf]
      %v1456 = vld [vmem:[%s1454 + $0x8] sm:$0xf]
      %v1457 = vld [vmem:[%s1454 + $0x10] sm:$0xf]
      %v1458 = vld [vmem:[%s1454 + $0x18] sm:$0xf]
      %v1459 = vld [vmem:[%s1454 + $0x20] sm:$0xf]
      %v1460 = vld [vmem:[%s1454 + $0x28] sm:$0xf]
      %v1461 = vld [vmem:[%s1454 + $0x30] sm:$0xf]
      %v1462 = vld [vmem:[%s1454 + $0x38] sm:$0xf]
      %s1463 = scalar_lea.vmem %s1, 384
      %v1464 = vld [vmem:[%s1463] sm:$0xf]
      %v1465 = vld [vmem:[%s1463 + $0x4] sm:$0xf]
      %v1466 = vld [vmem:[%s1463 + $0x8] sm:$0xf]
      %v1467 = vld [vmem:[%s1463 + $0xc] sm:$0xf]
      %v1468 = vld [vmem:[%s1463 + $0x10] sm:$0xf]
      %v1469 = vld [vmem:[%s1463 + $0x14] sm:$0xf]
      %v1470 = vld [vmem:[%s1463 + $0x18] sm:$0xf]
      %v1471 = vld [vmem:[%s1463 + $0x1c] sm:$0xf]
      %v1472 = vld [vmem:[%s1463 + $0x20] sm:$0xf]
      %v1473 = vld [vmem:[%s1463 + $0x24] sm:$0xf]
      %v1474 = vld [vmem:[%s1463 + $0x28] sm:$0xf]
      %v1475 = vld [vmem:[%s1463 + $0x2c] sm:$0xf]
      %v1476 = vld [vmem:[%s1463 + $0x30] sm:$0xf]
      %v1477 = vld [vmem:[%s1463 + $0x34] sm:$0xf]
      %v1478 = vld [vmem:[%s1463 + $0x38] sm:$0xf]
      %v1479 = vld [vmem:[%s1463 + $0x3c] sm:$0xf]
      %v1488 = vunpack.c.l.b16 %v1455
      %v1489 = vunpack.c.l.b16 %v1456
      %v1490 = vunpack.c.l.b16 %v1457
      %v1491 = vunpack.c.l.b16 %v1458
      %v1492 = vunpack.c.l.b16 %v1459
      %v1493 = vunpack.c.l.b16 %v1460
      %v1494 = vunpack.c.l.b16 %v1461
      %v1495 = vunpack.c.l.b16 %v1462
      %v1496 = vpack.c.b16 %v1489, %v1488
      %v1497 = vpack.c.b16 %v1491, %v1490
      %v1498 = vpack.c.b16 %v1493, %v1492
      %v1499 = vpack.c.b16 %v1495, %v1494
      %v1520 = vunpack.c.l.b16 %v1464
      %v1521 = vunpack.c.l.b16 %v1465
      %v1522 = vunpack.c.l.b16 %v1466
      %v1523 = vunpack.c.l.b16 %v1467
      %v1524 = vunpack.c.l.b16 %v1468
      %v1525 = vunpack.c.l.b16 %v1469
      %v1526 = vunpack.c.l.b16 %v1470
      %v1527 = vunpack.c.l.b16 %v1471
      %v1528 = vunpack.c.l.b16 %v1472
      %v1529 = vunpack.c.l.b16 %v1473
      %v1530 = vunpack.c.l.b16 %v1474
      %v1531 = vunpack.c.l.b16 %v1475
      %v1532 = vunpack.c.l.b16 %v1476
      %v1533 = vunpack.c.l.b16 %v1477
      %v1534 = vunpack.c.l.b16 %v1478
      %v1535 = vunpack.c.l.b16 %v1479
      %v1536 = vpack.c.b16 %v1521, %v1520
      %v1537 = vpack.c.b16 %v1523, %v1522
      %v1538 = vpack.c.b16 %v1525, %v1524
      %v1539 = vpack.c.b16 %v1527, %v1526
      %v1540 = vpack.c.b16 %v1529, %v1528
      %v1541 = vpack.c.b16 %v1531, %v1530
      %v1542 = vpack.c.b16 %v1533, %v1532
      %v1543 = vpack.c.b16 %v1535, %v1534
      %1552 = vmatprep.subr.bf16.mxu0 0
      %1553 = vmatpush1.bf16.msra.mxu0 %v1543
      %1554 = vmatprep.subr.bf16.mxu0 0
      %1555 = vmatpush1.bf16.msra.mxu0 %v1542
      %1556 = vmatprep.subr.bf16.mxu0 0
      %1557 = vmatpush1.bf16.msra.mxu0 %v1541
      %1558 = vmatprep.subr.bf16.mxu0 0
      %1559 = vmatpush1.bf16.msra.mxu0 %v1540
      %1560 = vmatprep.subr.bf16.mxu0 0
      %1561 = vmatpush1.bf16.msra.mxu0 %v1539
      %1562 = vmatprep.subr.bf16.mxu0 0
      %1563 = vmatpush1.bf16.msra.mxu0 %v1538
      %1564 = vmatprep.subr.bf16.mxu0 0
      %1565 = vmatpush1.bf16.msra.mxu0 %v1537
      %1566 = vmatprep.subr.bf16.mxu0 0
      %1567 = vmatpush1.bf16.msra.mxu0 %v1536
      %1568 = vmatprep.subr.bf16.mxu0 0
      %1569 = vmatpush2.bf16.msra.mxu0 0
      %1570 = vmatprep.subr.bf16.mxu0 0
      %1571 = vmatpush2.bf16.msra.mxu0 0
      %1572 = vmatprep.subr.bf16.mxu0 0
      %1573 = vmatpush2.bf16.msra.mxu0 0
      %1574 = vmatprep.subr.bf16.mxu0 0
      %1575 = vmatpush2.bf16.msra.mxu0 0
      %1576 = vmatprep.subr.bf16.mxu0 0
      %1577 = vmatpush2.bf16.msra.mxu0 0
      %1578 = vmatprep.subr.bf16.mxu0 0
      %1579 = vmatpush2.bf16.msra.mxu0 0
      %1580 = vmatprep.subr.bf16.mxu0 0
      %1581 = vmatpush2.bf16.msra.mxu0 0
      %1582 = vmatprep.subr.bf16.mxu0 0
      %1583 = vmatpush2.bf16.msra.mxu0 0
      %1584 = vmatprep.mubr.bf16.mxu0 0
      %1585 = vmatmul.mubr.bf16.gmra.mxu0 %v1496
      %v1586 = vpop.f32.mrf.mxu0
      %v1587 = vadd.f32 0.0, %v1586
      %v1588 = vpop.f32.mrf.mxu0
      %v1589 = vpop.f32.mrf.mxu0
      %v1590 = vadd.f32 0.0, %v1589
      %v1591 = vpop.f32.mrf.mxu0
      %1592 = vmatprep.mubr.bf16.mxu0 0
      %1593 = vmatmul.mubr.bf16.gmra.mxu0 %v1497
      %v1594 = vpop.f32.mrf.mxu0
      %v1595 = vadd.f32 0.0, %v1594
      %v1596 = vpop.f32.mrf.mxu0
      %v1597 = vpop.f32.mrf.mxu0
      %v1598 = vadd.f32 0.0, %v1597
      %v1599 = vpop.f32.mrf.mxu0
      %1600 = vmatprep.mubr.bf16.mxu0 0
      %1601 = vmatmul.mubr.bf16.gmra.mxu0 %v1498
      %v1602 = vpop.f32.mrf.mxu0
      %v1603 = vadd.f32 0.0, %v1602
      %v1604 = vpop.f32.mrf.mxu0
      %v1605 = vpop.f32.mrf.mxu0
      %v1606 = vadd.f32 0.0, %v1605
      %v1607 = vpop.f32.mrf.mxu0
      %1608 = vmatprep.mubr.bf16.mxu0 0
      %1609 = vmatmul.mubr.bf16.gmra.mxu0 %v1499
      %v1610 = vpop.f32.mrf.mxu0
      %v1611 = vadd.f32 0.0, %v1610
      %v1612 = vpop.f32.mrf.mxu0
      %v1613 = vpop.f32.mrf.mxu0
      %v1614 = vadd.f32 0.0, %v1613
      %v1615 = vpop.f32.mrf.mxu0
      %1616 = vdwg.mxu0
      %v1617 = vadd.f32 %v1446, %v1587
      %v1618 = vadd.f32 %v1447, %v1590
      %v1619 = vadd.f32 %v1448, %v1595
      %v1620 = vadd.f32 %v1449, %v1598
      %v1621 = vadd.f32 %v1450, %v1603
      %v1622 = vadd.f32 %v1451, %v1606
      %v1623 = vadd.f32 %v1452, %v1611
      %v1624 = vadd.f32 %v1453, %v1614
      %s1625 = scalar_lea.vmem %s207, 80
      %v1626 = vld [vmem:[%s1625] sm:$0xf]
      %v1627 = vld [vmem:[%s1625 + $0x8] sm:$0xf]
      %v1628 = vld [vmem:[%s1625 + $0x10] sm:$0xf]
      %v1629 = vld [vmem:[%s1625 + $0x18] sm:$0xf]
      %v1630 = vld [vmem:[%s1625 + $0x20] sm:$0xf]
      %v1631 = vld [vmem:[%s1625 + $0x28] sm:$0xf]
      %v1632 = vld [vmem:[%s1625 + $0x30] sm:$0xf]
      %v1633 = vld [vmem:[%s1625 + $0x38] sm:$0xf]
      %s1634 = scalar_lea.vmem %s1, 448
      %v1635 = vld [vmem:[%s1634] sm:$0xf]
      %v1636 = vld [vmem:[%s1634 + $0x4] sm:$0xf]
      %v1637 = vld [vmem:[%s1634 + $0x8] sm:$0xf]
      %v1638 = vld [vmem:[%s1634 + $0xc] sm:$0xf]
      %v1639 = vld [vmem:[%s1634 + $0x10] sm:$0xf]
      %v1640 = vld [vmem:[%s1634 + $0x14] sm:$0xf]
      %v1641 = vld [vmem:[%s1634 + $0x18] sm:$0xf]
      %v1642 = vld [vmem:[%s1634 + $0x1c] sm:$0xf]
      %v1643 = vld [vmem:[%s1634 + $0x20] sm:$0xf]
      %v1644 = vld [vmem:[%s1634 + $0x24] sm:$0xf]
      %v1645 = vld [vmem:[%s1634 + $0x28] sm:$0xf]
      %v1646 = vld [vmem:[%s1634 + $0x2c] sm:$0xf]
      %v1647 = vld [vmem:[%s1634 + $0x30] sm:$0xf]
      %v1648 = vld [vmem:[%s1634 + $0x34] sm:$0xf]
      %v1649 = vld [vmem:[%s1634 + $0x38] sm:$0xf]
      %v1650 = vld [vmem:[%s1634 + $0x3c] sm:$0xf]
      %v1659 = vunpack.c.l.b16 %v1626
      %v1660 = vunpack.c.l.b16 %v1627
      %v1661 = vunpack.c.l.b16 %v1628
      %v1662 = vunpack.c.l.b16 %v1629
      %v1663 = vunpack.c.l.b16 %v1630
      %v1664 = vunpack.c.l.b16 %v1631
      %v1665 = vunpack.c.l.b16 %v1632
      %v1666 = vunpack.c.l.b16 %v1633
      %v1667 = vpack.c.b16 %v1660, %v1659
      %v1668 = vpack.c.b16 %v1662, %v1661
      %v1669 = vpack.c.b16 %v1664, %v1663
      %v1670 = vpack.c.b16 %v1666, %v1665
      %v1691 = vunpack.c.l.b16 %v1635
      %v1692 = vunpack.c.l.b16 %v1636
      %v1693 = vunpack.c.l.b16 %v1637
      %v1694 = vunpack.c.l.b16 %v1638
      %v1695 = vunpack.c.l.b16 %v1639
      %v1696 = vunpack.c.l.b16 %v1640
      %v1697 = vunpack.c.l.b16 %v1641
      %v1698 = vunpack.c.l.b16 %v1642
      %v1699 = vunpack.c.l.b16 %v1643
      %v1700 = vunpack.c.l.b16 %v1644
      %v1701 = vunpack.c.l.b16 %v1645
      %v1702 = vunpack.c.l.b16 %v1646
      %v1703 = vunpack.c.l.b16 %v1647
      %v1704 = vunpack.c.l.b16 %v1648
      %v1705 = vunpack.c.l.b16 %v1649
      %v1706 = vunpack.c.l.b16 %v1650
      %v1707 = vpack.c.b16 %v1692, %v1691
      %v1708 = vpack.c.b16 %v1694, %v1693
      %v1709 = vpack.c.b16 %v1696, %v1695
      %v1710 = vpack.c.b16 %v1698, %v1697
      %v1711 = vpack.c.b16 %v1700, %v1699
      %v1712 = vpack.c.b16 %v1702, %v1701
      %v1713 = vpack.c.b16 %v1704, %v1703
      %v1714 = vpack.c.b16 %v1706, %v1705
      %1723 = vmatprep.subr.bf16.mxu0 0
      %1724 = vmatpush1.bf16.msra.mxu0 %v1714
      %1725 = vmatprep.subr.bf16.mxu0 0
      %1726 = vmatpush1.bf16.msra.mxu0 %v1713
      %1727 = vmatprep.subr.bf16.mxu0 0
      %1728 = vmatpush1.bf16.msra.mxu0 %v1712
      %1729 = vmatprep.subr.bf16.mxu0 0
      %1730 = vmatpush1.bf16.msra.mxu0 %v1711
      %1731 = vmatprep.subr.bf16.mxu0 0
      %1732 = vmatpush1.bf16.msra.mxu0 %v1710
      %1733 = vmatprep.subr.bf16.mxu0 0
      %1734 = vmatpush1.bf16.msra.mxu0 %v1709
      %1735 = vmatprep.subr.bf16.mxu0 0
      %1736 = vmatpush1.bf16.msra.mxu0 %v1708
      %1737 = vmatprep.subr.bf16.mxu0 0
      %1738 = vmatpush1.bf16.msra.mxu0 %v1707
      %1739 = vmatprep.subr.bf16.mxu0 0
      %1740 = vmatpush2.bf16.msra.mxu0 0
      %1741 = vmatprep.subr.bf16.mxu0 0
      %1742 = vmatpush2.bf16.msra.mxu0 0
      %1743 = vmatprep.subr.bf16.mxu0 0
      %1744 = vmatpush2.bf16.msra.mxu0 0
      %1745 = vmatprep.subr.bf16.mxu0 0
      %1746 = vmatpush2.bf16.msra.mxu0 0
      %1747 = vmatprep.subr.bf16.mxu0 0
      %1748 = vmatpush2.bf16.msra.mxu0 0
      %1749 = vmatprep.subr.bf16.mxu0 0
      %1750 = vmatpush2.bf16.msra.mxu0 0
      %1751 = vmatprep.subr.bf16.mxu0 0
      %1752 = vmatpush2.bf16.msra.mxu0 0
      %1753 = vmatprep.subr.bf16.mxu0 0
      %1754 = vmatpush2.bf16.msra.mxu0 0
      %1755 = vmatprep.mubr.bf16.mxu0 0
      %1756 = vmatmul.mubr.bf16.gmra.mxu0 %v1667
      %v1757 = vpop.f32.mrf.mxu0
      %v1758 = vadd.f32 0.0, %v1757
      %v1759 = vpop.f32.mrf.mxu0
      %v1760 = vpop.f32.mrf.mxu0
      %v1761 = vadd.f32 0.0, %v1760
      %v1762 = vpop.f32.mrf.mxu0
      %1763 = vmatprep.mubr.bf16.mxu0 0
      %1764 = vmatmul.mubr.bf16.gmra.mxu0 %v1668
      %v1765 = vpop.f32.mrf.mxu0
      %v1766 = vadd.f32 0.0, %v1765
      %v1767 = vpop.f32.mrf.mxu0
      %v1768 = vpop.f32.mrf.mxu0
      %v1769 = vadd.f32 0.0, %v1768
      %v1770 = vpop.f32.mrf.mxu0
      %1771 = vmatprep.mubr.bf16.mxu0 0
      %1772 = vmatmul.mubr.bf16.gmra.mxu0 %v1669
      %v1773 = vpop.f32.mrf.mxu0
      %v1774 = vadd.f32 0.0, %v1773
      %v1775 = vpop.f32.mrf.mxu0
      %v1776 = vpop.f32.mrf.mxu0
      %v1777 = vadd.f32 0.0, %v1776
      %v1778 = vpop.f32.mrf.mxu0
      %1779 = vmatprep.mubr.bf16.mxu0 0
      %1780 = vmatmul.mubr.bf16.gmra.mxu0 %v1670
      %v1781 = vpop.f32.mrf.mxu0
      %v1782 = vadd.f32 0.0, %v1781
      %v1783 = vpop.f32.mrf.mxu0
      %v1784 = vpop.f32.mrf.mxu0
      %v1785 = vadd.f32 0.0, %v1784
      %v1786 = vpop.f32.mrf.mxu0
      %1787 = vdwg.mxu0
      %v1788 = vadd.f32 %v1617, %v1758
      %v1789 = vadd.f32 %v1618, %v1761
      %v1790 = vadd.f32 %v1619, %v1766
      %v1791 = vadd.f32 %v1620, %v1769
      %v1792 = vadd.f32 %v1621, %v1774
      %v1793 = vadd.f32 %v1622, %v1777
      %v1794 = vadd.f32 %v1623, %v1782
      %v1795 = vadd.f32 %v1624, %v1785
      %v1796 = vld [vmem:[%s1454] sm:$0xf]
      %v1797 = vld [vmem:[%s1454 + $0x4] sm:$0x1]
      %v1798 = vld [vmem:[%s1454 + $0x8] sm:$0xf]
      %v1799 = vld [vmem:[%s1454 + $0xc] sm:$0x1]
      %v1800 = vld [vmem:[%s1454 + $0x10] sm:$0xf]
      %v1801 = vld [vmem:[%s1454 + $0x14] sm:$0x1]
      %v1802 = vld [vmem:[%s1454 + $0x18] sm:$0xf]
      %v1803 = vld [vmem:[%s1454 + $0x1c] sm:$0x1]
      %v1804 = vld [vmem:[%s1454 + $0x20] sm:$0xf]
      %v1805 = vld [vmem:[%s1454 + $0x24] sm:$0x1]
      %v1806 = vld [vmem:[%s1454 + $0x28] sm:$0xf]
      %v1807 = vld [vmem:[%s1454 + $0x2c] sm:$0x1]
      %v1808 = vld [vmem:[%s1454 + $0x30] sm:$0xf]
      %v1809 = vld [vmem:[%s1454 + $0x34] sm:$0x1]
      %v1810 = vld [vmem:[%s1454 + $0x38] sm:$0xf]
      %v1811 = vld [vmem:[%s1454 + $0x3c] sm:$0x1]
      %v1813 = vshrl.u32 %v1796, 16
      %v1815 = vrot.slane %v1813, 4
      %v1816 = vshll.u32 %v1796, 16
      %v1818 = vrot.slane %v1816, 5
      %v1819 = vor.u32 %v1815, %v1818
      %v1820 = vrot.slane %v1819, 4
      %v1822 = vshll.u32 %v1797, 16
      %v1824 = vrot.slane %v1822, 5
      %v1825 = vsel %vm563, %v1820, %v1824
      %v1827 = vshrl.u32 %v1798, 16
      %v1829 = vrot.slane %v1827, 4
      %v1830 = vshll.u32 %v1798, 16
      %v1832 = vrot.slane %v1830, 5
      %v1833 = vor.u32 %v1829, %v1832
      %v1834 = vrot.slane %v1833, 4
      %v1836 = vshll.u32 %v1799, 16
      %v1838 = vrot.slane %v1836, 5
      %v1839 = vsel %vm563, %v1834, %v1838
      %v1841 = vshrl.u32 %v1800, 16
      %v1843 = vrot.slane %v1841, 4
      %v1844 = vshll.u32 %v1800, 16
      %v1846 = vrot.slane %v1844, 5
      %v1847 = vor.u32 %v1843, %v1846
      %v1848 = vrot.slane %v1847, 4
      %v1850 = vshll.u32 %v1801, 16
      %v1852 = vrot.slane %v1850, 5
      %v1853 = vsel %vm563, %v1848, %v1852
      %v1855 = vshrl.u32 %v1802, 16
      %v1857 = vrot.slane %v1855, 4
      %v1858 = vshll.u32 %v1802, 16
      %v1860 = vrot.slane %v1858, 5
      %v1861 = vor.u32 %v1857, %v1860
      %v1862 = vrot.slane %v1861, 4
      %v1864 = vshll.u32 %v1803, 16
      %v1866 = vrot.slane %v1864, 5
      %v1867 = vsel %vm563, %v1862, %v1866
      %v1869 = vshrl.u32 %v1804, 16
      %v1871 = vrot.slane %v1869, 4
      %v1872 = vshll.u32 %v1804, 16
      %v1874 = vrot.slane %v1872, 5
      %v1875 = vor.u32 %v1871, %v1874
      %v1876 = vrot.slane %v1875, 4
      %v1878 = vshll.u32 %v1805, 16
      %v1880 = vrot.slane %v1878, 5
      %v1881 = vsel %vm563, %v1876, %v1880
      %v1883 = vshrl.u32 %v1806, 16
      %v1885 = vrot.slane %v1883, 4
      %v1886 = vshll.u32 %v1806, 16
      %v1888 = vrot.slane %v1886, 5
      %v1889 = vor.u32 %v1885, %v1888
      %v1890 = vrot.slane %v1889, 4
      %v1892 = vshll.u32 %v1807, 16
      %v1894 = vrot.slane %v1892, 5
      %v1895 = vsel %vm563, %v1890, %v1894
      %v1897 = vshrl.u32 %v1808, 16
      %v1899 = vrot.slane %v1897, 4
      %v1900 = vshll.u32 %v1808, 16
      %v1902 = vrot.slane %v1900, 5
      %v1903 = vor.u32 %v1899, %v1902
      %v1904 = vrot.slane %v1903, 4
      %v1906 = vshll.u32 %v1809, 16
      %v1908 = vrot.slane %v1906, 5
      %v1909 = vsel %vm563, %v1904, %v1908
      %v1911 = vshrl.u32 %v1810, 16
      %v1913 = vrot.slane %v1911, 4
      %v1914 = vshll.u32 %v1810, 16
      %v1916 = vrot.slane %v1914, 5
      %v1917 = vor.u32 %v1913, %v1916
      %v1918 = vrot.slane %v1917, 4
      %v1920 = vshll.u32 %v1811, 16
      %v1922 = vrot.slane %v1920, 5
      %v1923 = vsel %vm563, %v1918, %v1922
      %s1924 = scalar_lea.vmem %s1, 512
      %v1925 = vld [vmem:[%s1924] sm:$0xf]
      %v1926 = vld [vmem:[%s1924 + $0x4] sm:$0xf]
      %v1927 = vld [vmem:[%s1924 + $0x8] sm:$0xf]
      %v1928 = vld [vmem:[%s1924 + $0xc] sm:$0xf]
      %v1929 = vld [vmem:[%s1924 + $0x10] sm:$0xf]
      %v1930 = vld [vmem:[%s1924 + $0x14] sm:$0xf]
      %v1931 = vld [vmem:[%s1924 + $0x18] sm:$0xf]
      %v1932 = vld [vmem:[%s1924 + $0x1c] sm:$0xf]
      %v1933 = vld [vmem:[%s1924 + $0x20] sm:$0xf]
      %v1934 = vld [vmem:[%s1924 + $0x24] sm:$0xf]
      %v1935 = vld [vmem:[%s1924 + $0x28] sm:$0xf]
      %v1936 = vld [vmem:[%s1924 + $0x2c] sm:$0xf]
      %v1937 = vld [vmem:[%s1924 + $0x30] sm:$0xf]
      %v1938 = vld [vmem:[%s1924 + $0x34] sm:$0xf]
      %v1939 = vld [vmem:[%s1924 + $0x38] sm:$0xf]
      %v1940 = vld [vmem:[%s1924 + $0x3c] sm:$0xf]
      %v1941 = vunpack.c.l.b16 %v1825
      %v1942 = vunpack.c.l.b16 %v1839
      %v1943 = vunpack.c.l.b16 %v1853
      %v1944 = vunpack.c.l.b16 %v1867
      %v1945 = vunpack.c.l.b16 %v1881
      %v1946 = vunpack.c.l.b16 %v1895
      %v1947 = vunpack.c.l.b16 %v1909
      %v1948 = vunpack.c.l.b16 %v1923
      %v1949 = vpack.c.b16 %v1942, %v1941
      %v1950 = vpack.c.b16 %v1944, %v1943
      %v1951 = vpack.c.b16 %v1946, %v1945
      %v1952 = vpack.c.b16 %v1948, %v1947
      %v1973 = vunpack.c.l.b16 %v1925
      %v1974 = vunpack.c.l.b16 %v1926
      %v1975 = vunpack.c.l.b16 %v1927
      %v1976 = vunpack.c.l.b16 %v1928
      %v1977 = vunpack.c.l.b16 %v1929
      %v1978 = vunpack.c.l.b16 %v1930
      %v1979 = vunpack.c.l.b16 %v1931
      %v1980 = vunpack.c.l.b16 %v1932
      %v1981 = vunpack.c.l.b16 %v1933
      %v1982 = vunpack.c.l.b16 %v1934
      %v1983 = vunpack.c.l.b16 %v1935
      %v1984 = vunpack.c.l.b16 %v1936
      %v1985 = vunpack.c.l.b16 %v1937
      %v1986 = vunpack.c.l.b16 %v1938
      %v1987 = vunpack.c.l.b16 %v1939
      %v1988 = vunpack.c.l.b16 %v1940
      %v1989 = vpack.c.b16 %v1974, %v1973
      %v1990 = vpack.c.b16 %v1976, %v1975
      %v1991 = vpack.c.b16 %v1978, %v1977
      %v1992 = vpack.c.b16 %v1980, %v1979
      %v1993 = vpack.c.b16 %v1982, %v1981
      %v1994 = vpack.c.b16 %v1984, %v1983
      %v1995 = vpack.c.b16 %v1986, %v1985
      %v1996 = vpack.c.b16 %v1988, %v1987
      %2005 = vmatprep.subr.bf16.mxu0 0
      %2006 = vmatpush1.bf16.msra.mxu0 %v1996
      %2007 = vmatprep.subr.bf16.mxu0 0
      %2008 = vmatpush1.bf16.msra.mxu0 %v1995
      %2009 = vmatprep.subr.bf16.mxu0 0
      %2010 = vmatpush1.bf16.msra.mxu0 %v1994
      %2011 = vmatprep.subr.bf16.mxu0 0
      %2012 = vmatpush1.bf16.msra.mxu0 %v1993
      %2013 = vmatprep.subr.bf16.mxu0 0
      %2014 = vmatpush1.bf16.msra.mxu0 %v1992
      %2015 = vmatprep.subr.bf16.mxu0 0
      %2016 = vmatpush1.bf16.msra.mxu0 %v1991
      %2017 = vmatprep.subr.bf16.mxu0 0
      %2018 = vmatpush1.bf16.msra.mxu0 %v1990
      %2019 = vmatprep.subr.bf16.mxu0 0
      %2020 = vmatpush1.bf16.msra.mxu0 %v1989
      %2021 = vmatprep.subr.bf16.mxu0 0
      %2022 = vmatpush2.bf16.msra.mxu0 0
      %2023 = vmatprep.subr.bf16.mxu0 0
      %2024 = vmatpush2.bf16.msra.mxu0 0
      %2025 = vmatprep.subr.bf16.mxu0 0
      %2026 = vmatpush2.bf16.msra.mxu0 0
      %2027 = vmatprep.subr.bf16.mxu0 0
      %2028 = vmatpush2.bf16.msra.mxu0 0
      %2029 = vmatprep.subr.bf16.mxu0 0
      %2030 = vmatpush2.bf16.msra.mxu0 0
      %2031 = vmatprep.subr.bf16.mxu0 0
      %2032 = vmatpush2.bf16.msra.mxu0 0
      %2033 = vmatprep.subr.bf16.mxu0 0
      %2034 = vmatpush2.bf16.msra.mxu0 0
      %2035 = vmatprep.subr.bf16.mxu0 0
      %2036 = vmatpush2.bf16.msra.mxu0 0
      %2037 = vmatprep.mubr.bf16.mxu0 0
      %2038 = vmatmul.mubr.bf16.gmra.mxu0 %v1949
      %v2039 = vpop.f32.mrf.mxu0
      %v2040 = vadd.f32 0.0, %v2039
      %v2041 = vpop.f32.mrf.mxu0
      %v2042 = vpop.f32.mrf.mxu0
      %v2043 = vadd.f32 0.0, %v2042
      %v2044 = vpop.f32.mrf.mxu0
      %2045 = vmatprep.mubr.bf16.mxu0 0
      %2046 = vmatmul.mubr.bf16.gmra.mxu0 %v1950
      %v2047 = vpop.f32.mrf.mxu0
      %v2048 = vadd.f32 0.0, %v2047
      %v2049 = vpop.f32.mrf.mxu0
      %v2050 = vpop.f32.mrf.mxu0
      %v2051 = vadd.f32 0.0, %v2050
      %v2052 = vpop.f32.mrf.mxu0
      %2053 = vmatprep.mubr.bf16.mxu0 0
      %2054 = vmatmul.mubr.bf16.gmra.mxu0 %v1951
      %v2055 = vpop.f32.mrf.mxu0
      %v2056 = vadd.f32 0.0, %v2055
      %v2057 = vpop.f32.mrf.mxu0
      %v2058 = vpop.f32.mrf.mxu0
      %v2059 = vadd.f32 0.0, %v2058
      %v2060 = vpop.f32.mrf.mxu0
      %2061 = vmatprep.mubr.bf16.mxu0 0
      %2062 = vmatmul.mubr.bf16.gmra.mxu0 %v1952
      %v2063 = vpop.f32.mrf.mxu0
      %v2064 = vadd.f32 0.0, %v2063
      %v2065 = vpop.f32.mrf.mxu0
      %v2066 = vpop.f32.mrf.mxu0
      %v2067 = vadd.f32 0.0, %v2066
      %v2068 = vpop.f32.mrf.mxu0
      %2069 = vdwg.mxu0
      %v2070 = vadd.f32 %v1788, %v2040
      %v2071 = vadd.f32 %v1789, %v2043
      %v2072 = vadd.f32 %v1790, %v2048
      %v2073 = vadd.f32 %v1791, %v2051
      %v2074 = vadd.f32 %v1792, %v2056
      %v2075 = vadd.f32 %v1793, %v2059
      %v2076 = vadd.f32 %v1794, %v2064
      %v2077 = vadd.f32 %v1795, %v2067
      %2078 = vst [vmem:[%s213] sm:$0xff] %v2070
      %2079 = vst [vmem:[%s213 + $0x8] sm:$0xff] %v2071
      %2080 = vst [vmem:[%s213 + $0x10] sm:$0xff] %v2072
      %2081 = vst [vmem:[%s213 + $0x18] sm:$0xff] %v2073
      %2082 = vst [vmem:[%s213 + $0x20] sm:$0xff] %v2074
      %2083 = vst [vmem:[%s213 + $0x28] sm:$0xff] %v2075
      %2084 = vst [vmem:[%s213 + $0x30] sm:$0xff] %v2076
      %2085 = vst [vmem:[%s213 + $0x38] sm:$0xff] %v2077
      %v2086 = vadd.f32 %v2070, %v2071
      %v2087 = vadd.f32 %v2086, %v2072
      %v2088 = vadd.f32 %v2087, %v2073
      %v2089 = vadd.f32 %v2088, %v2074
      %v2090 = vadd.f32 %v2089, %v2075
      %v2091 = vadd.f32 %v2090, %v2076
      %v2092 = vadd.f32 %v2091, %v2077
      %v2093 = vrot.slane %v2092, 4
      %v2094 = vadd.f32 %v2092, %v2093
      %v2095 = vrot.slane %v2094, 2
      %v2096 = vadd.f32 %v2094, %v2095
      %v2097 = vrot.slane %v2096, 1
      %v2098 = vadd.f32 %v2096, %v2097
      %2099 = vst [vmem:[%s216] sm:$0x1] %v2098
      %v2100 = vmul.f32 %v2070, %v2070
      %v2101 = vmul.f32 %v2071, %v2071
      %v2102 = vmul.f32 %v2072, %v2072
      %v2103 = vmul.f32 %v2073, %v2073
      %v2104 = vmul.f32 %v2074, %v2074
      %v2105 = vmul.f32 %v2075, %v2075
      %v2106 = vmul.f32 %v2076, %v2076
      %v2107 = vmul.f32 %v2077, %v2077
      %v2108 = vadd.f32 %v2100, %v2101
      %v2109 = vadd.f32 %v2108, %v2102
      %v2110 = vadd.f32 %v2109, %v2103
      %v2111 = vadd.f32 %v2110, %v2104
      %v2112 = vadd.f32 %v2111, %v2105
      %v2113 = vadd.f32 %v2112, %v2106
      %v2114 = vadd.f32 %v2113, %v2107
      %v2115 = vrot.slane %v2114, 4
      %v2116 = vadd.f32 %v2114, %v2115
      %v2117 = vrot.slane %v2116, 2
      %v2118 = vadd.f32 %v2116, %v2117
      %v2119 = vrot.slane %v2118, 1
      %v2120 = vadd.f32 %v2118, %v2119
      %2121 = vst [vmem:[%s219] sm:$0x1] %v2120
      %p2122 = scmp.lt.s32.totalorder %s16, 1
      %s2123 = scalar_select %p2122, %s16, 1
      %s2124 = smul.addr %s2123, 8
      %s2125 = smul.addr %s2124, 8
      %s2126 = scalar_lea.vmem %s2, %s2125
      %p2127 = scmp.lt.s32.totalorder %s16, 1
      %s2128 = scalar_select %p2127, %s16, 1
      %s2129 = scalar_lea.vmem %s3, %s2128
      %p2130 = scmp.lt.s32.totalorder %s16, 1
      %s2131 = scalar_select %p2130, %s16, 1
      %s2132 = scalar_lea.vmem %s4, %s2131
      // Predicated region
      $region29: #{_lambda_.8} parent=27 // pred_check
        %p2133 = pneg %p81
      $region30: #{_lambda_.8} parent=27 // pred_check_branch
        %2135 = sbr.rel (%p2133) target = $region32
      $region31: #{_lambda_.8} parent=27 // pred_region
        _
      $region32: #{_lambda_.8} parent=27 // pred_fallthru
        _
      // Predicated region
      $region33: #{_lambda_.8} parent=27 // pred_check
        %p2136 = pneg %p107
      $region34: #{_lambda_.8} parent=27 // pred_check_branch
        %2138 = sbr.rel (%p2136) target = $region36
      $region35: #{_lambda_.8} parent=27 // pred_region
        _
      $region36: #{_lambda_.8} parent=27 // pred_fallthru
        _
      // Predicated region
      $region37: #{_lambda_.8} parent=27 // pred_check
        %p2139 = pneg %p133
      $region38: #{_lambda_.8} parent=27 // pred_check_branch
        %2141 = sbr.rel (%p2139) target = $region40
      $region39: #{_lambda_.8} parent=27 // pred_region
        _
      $region40: #{_lambda_.8} parent=27 // pred_fallthru
        _
    $region28: #{_lambda_.8} parent=5 // pred_fallthru
      _
    %p2142 = scmp.le.s32.totalorder 2, %s11
    // Predicated region
    $region41: #{_lambda_.8} parent=5 // pred_check
      %p2143 = pneg %p2142
    $region42: #{_lambda_.8} parent=5 // pred_check_branch
      %2145 = sbr.rel (%p2143) target = $region44
    $region43: #{_lambda_.8} parent=5 // pred_region
      %s2146 = ssub.s32 %s11, 2
      // Predicated region
      $region45: #{_lambda_.8} parent=43 // pred_check
        %p2147 = pneg %p87
      $region46: #{_lambda_.8} parent=43 // pred_check_branch
        %2149 = sbr.rel (%p2147) target = $region48
      $region47: #{_lambda_.8} parent=43 // pred_region
        %p2150 = scmp.lt.s32.totalorder %s17, 1
        %s2151 = scalar_select %p2150, %s17, 1
        %s2152 = smul.addr %s2151, 8
        %s2153 = smul.addr %s2152, 8
        %s2154 = scalar_lea.vmem %s2, %s2153
      $region48: #{_lambda_.8} parent=43 // pred_fallthru
        _
      // Predicated region
      $region49: #{_lambda_.8} parent=43 // pred_check
        %p2155 = pneg %p113
      $region50: #{_lambda_.8} parent=43 // pred_check_branch
        %2157 = sbr.rel (%p2155) target = $region52
      $region51: #{_lambda_.8} parent=43 // pred_region
        %p2158 = scmp.lt.s32.totalorder %s17, 1
        %s2159 = scalar_select %p2158, %s17, 1
        %s2160 = scalar_lea.vmem %s3, %s2159
      $region52: #{_lambda_.8} parent=43 // pred_fallthru
        _
      // Predicated region
      $region53: #{_lambda_.8} parent=43 // pred_check
        %p2161 = pneg %p139
      $region54: #{_lambda_.8} parent=43 // pred_check_branch
        %2163 = sbr.rel (%p2161) target = $region56
      $region55: #{_lambda_.8} parent=43 // pred_region
        %p2164 = scmp.lt.s32.totalorder %s17, 1
        %s2165 = scalar_select %p2164, %s17, 1
        %s2166 = scalar_lea.vmem %s4, %s2165
      $region56: #{_lambda_.8} parent=43 // pred_fallthru
        _
    $region44: #{_lambda_.8} parent=5 // pred_fallthru
      _
  $region6: #{_lambda_.8} parent=0 // loop_footer
    %s15 = sadd.s32 1, %s11
  $region7: #{_lambda_.8} parent=0 // loop_footer_branch
    %10 = sbr.rel target = $region3
  $region8: #{_lambda_.8} parent=0 // loop_exit
    _

</llo_original>
